<compile_context>
chip_gen: v7x
topology: tpu7x:2x2x1
jax: 0.10.0
libtpu: 0.0.40
codegen_flags: <defaults>
</compile_context>

<pallas_src>
import functools

import jax
import jax.numpy as jnp
import numpy as np
from jax.experimental import pallas as pl
from jax.experimental.pallas import tpu as pltpu

_LANE = 128
_SUBLANE = 8


def _round_up(x, m):
    return (x + m - 1) // m * m


def _bottleneck_kernel(x_ref, mask_ref, wcat_ref, bcat_ref, w2_ref, b2_ref,
                       w3_ref, b3_ref, out_ref, *, Cmid_p, Wp):
    """B_blk padded/flattened images per grid step.

    x_ref:    (B_blk, R, Cin_p)        pooled input, flat zero-padded rows (bf16)
    mask_ref: (B_blk*R, 1)             1.0 interior rows, 0.0 pad/alignment rows (f32)
    wcat_ref: (Cin_p, Cmid_p+Cout_p)   [w1*s1 | wr*sr]  (BN scale folded, bf16)
    bcat_ref: (1, Cmid_p+Cout_p)       [b1 | br]        (f32)
    w2_ref:   (9*Cmid_p, Cmid_p)       3x3 taps stacked along K, s2 folded (bf16)
    b2_ref:   (1, Cmid_p)              f32
    w3_ref:   (Cmid_p, Cout_p)         s3 folded (bf16)
    b3_ref:   (1, Cout_p)              f32
    out_ref:  (B_blk, R, Cout_p)       bf16 (halves writeback vs f32)
    """
    B_blk, R, Cin_p = x_ref.shape
    M = B_blk * R
    xf = x_ref[...].reshape(M, Cin_p)                    # layout-preserving reshape

    # conv1_1 and conv_res read the same input: one fused MXU matmul.
    z = jnp.dot(xf, wcat_ref[...], preferred_element_type=jnp.float32)
    z = z + bcat_ref[...]
    # Mask re-imposes the 3x3 conv's zero padding after BN bias + ReLU.
    y1 = jnp.maximum(z[:, :Cmid_p], 0.0) * mask_ref[...]            # (M, Cmid_p) f32
    # Hold the residual in bf16 across the conv2/conv3 section (live-range diet).
    res = z[:, Cmid_p:].astype(out_ref.dtype)                        # (M, Cout_p)

    # 3x3 conv (padding=1): 9 static sublane rolls (XLU) each feeding an
    # accumulating MXU dot into one f32 accumulator.  Roll wrap-around
    # (including across images inside the batch block) only lands in
    # discarded pad/border rows, whose y1 is zeroed by the mask.
    # TODO(synk): roll in bf16 (single cast) once packed-sublane rotate is
    #             safe to rely on; f32 roll + per-tap cast kept for robustness.
    # TODO(synk): for Cmid < 128, pack two 3x3 taps per 128-lane group to cut
    #             MXU K-padding waste (matters most on v5e).
    acc = jnp.zeros((M, Cmid_p), jnp.float32)
    t = 0
    for dy in (-1, 0, 1):
        for dx in (-1, 0, 1):
            shift = (-(dy * Wp + dx)) % M                            # static int
            col = y1 if shift == 0 else pltpu.roll(y1, shift, axis=0)
            acc = acc + jnp.dot(col.astype(w2_ref.dtype),
                                w2_ref[t * Cmid_p:(t + 1) * Cmid_p, :],
                                preferred_element_type=jnp.float32)
            t += 1
    y2 = jnp.maximum(acc + b2_ref[...], 0.0)                         # (M, Cmid_p)

    # conv1_2 (1x1) + BN bias, residual add, final ReLU; bf16 writeback.
    y3 = jnp.dot(y2.astype(w3_ref.dtype), w3_ref[...],
                 preferred_element_type=jnp.float32)
    out = jnp.maximum(y3 + b3_ref[...] + res.astype(jnp.float32), 0.0)
    out_ref[...] = out.reshape(out_ref.shape).astype(out_ref.dtype)


def _pick_batch_block(N, R, Cin_p, Cmid_p, Cout_p):
    """Images per grid step: amortize ~0.35us step overhead on small planes,
    keep >= 2 grid steps (both v7x TensorCores) and a few-MiB live set."""
    bf16 = 2
    per_img = R * ((Cin_p + Cout_p) * 2 * bf16          # in/out double buffers
                   + (Cmid_p + Cout_p) * 4              # z (f32)
                   + Cmid_p * (4 + bf16 + 4)            # y1 + tap + acc
                   + Cout_p * (bf16 + 4))               # res + y3
    bb = max(1, min(N, (8 * 2**20) // max(per_img, 1)))
    while bb > 1 and (N + bb - 1) // bb < 2:
        bb -= 1
    while N % bb:
        bb -= 1
    return bb


def _pick_vmem_limit(M, Cin_p, Cmid_p, Cout_p):
    """Derive vmem_limit_bytes from the real footprint, capped by physical VMEM."""
    bf16 = 2
    consts = ((Cin_p * (Cmid_p + Cout_p) + 9 * Cmid_p * Cmid_p + Cmid_p * Cout_p) * bf16
              + 2 * (Cmid_p + Cout_p) * 4 + M * 4) * 2   # worst case: double-buffered
    io = 2 * M * (Cin_p + Cout_p) * bf16                 # double-buffered in/out blocks
    live = (M * (Cmid_p + Cout_p) * 4                    # z
            + M * Cmid_p * (4 + bf16 + 4)                # y1 + tap + acc
            + M * Cout_p * (bf16 + 4))                   # res + y3
    need = int(1.5 * (consts + io + live))
    try:
        cap = int(getattr(pltpu.get_tpu_info(), "vmem_capacity_bytes", 64 * 2**20))
    except Exception:
        cap = 64 * 2**20                                  # conservative (v7x per-TC)
    return int(max(32 * 2**20, min(need, (3 * cap) // 4)))


def bottleneck_forward(x_nchw, params, *, downsample=True,
                       compute_dtype=jnp.bfloat16):
    """x_nchw: (N, Cin, Hin, Win) float32.  Returns (N, Cout, H, W) float32."""
    (w1, s1, b1, w2, s2, b2, w3, s3, b3, wr, sr, br) = params
    x = jnp.transpose(x_nchw, (0, 2, 3, 1)).astype(jnp.float32)      # NCHW -> NHWC
    N, Hin, Win, Cin = x.shape
    if downsample:
        H, W = Hin // 2, Win // 2
        x = x.reshape(N, H, 2, W, 2, Cin).max(axis=(2, 4))           # 2x2 max-pool
    else:
        H, W = Hin, Win

    Cmid = w1.shape[1]
    Cout = w3.shape[1]
    Cin_p, Cmid_p, Cout_p = (_round_up(c, _LANE) for c in (Cin, Cmid, Cout))
    Hp, Wp = H + 2, W + 2
    R = _round_up(Hp * Wp, _SUBLANE)         # flat padded rows, sublane-aligned
    B_blk = _pick_batch_block(N, R, Cin_p, Cmid_p, Cout_p)
    M = B_blk * R

    # Spatial zero-pad (for the 3x3 conv) + channel pad to a lane multiple,
    # flatten spatial dims -> lane-dense (N, R, Cin_p) bf16 activations.
    xp = jnp.pad(x, ((0, 0), (1, 1), (1, 1), (0, Cin_p - Cin)))
    xp = xp.reshape(N, Hp * Wp, Cin_p)
    xp = jnp.pad(xp, ((0, 0), (0, R - Hp * Wp), (0, 0))).astype(compute_dtype)

    # Interior-row mask (precomputed on host; avoids vector div/mod in-kernel),
    # tiled across the B_blk images of one grid step.
    idx = np.arange(R)
    rr, cc = idx // Wp, idx % Wp
    interior = (idx < Hp * Wp) & (rr >= 1) & (rr <= H) & (cc >= 1) & (cc <= W)
    mask = jnp.asarray(np.tile(interior.astype(np.float32), B_blk)[:, None])  # (M, 1)

    # Fold BN scales into the conv weights (one-time parameter prep), pad
    # channel dims to lane multiples, fuse conv1_1 / conv_res weights.
    def pad2(a, r, c):
        return jnp.pad(a, ((0, r - a.shape[0]), (0, c - a.shape[1])))

    wcat = jnp.concatenate([pad2(w1 * s1, Cin_p, Cmid_p),
                            pad2(wr * sr, Cin_p, Cout_p)], axis=1)
    wcat = wcat.astype(compute_dtype)                                 # (Cin_p, Cmid_p+Cout_p)
    bcat = jnp.concatenate([pad2(b1, 1, Cmid_p), pad2(br, 1, Cout_p)], axis=1)

    w2f = w2 * s2[0]                                                  # fold s2 into out-chs
    w2f = jnp.pad(w2f, ((0, 0), (0, 0),
                        (0, Cmid_p - Cmid), (0, Cmid_p - Cmid)))
    w2f = w2f.reshape(9 * Cmid_p, Cmid_p).astype(compute_dtype)
    b2p = pad2(b2, 1, Cmid_p)

    w3f = pad2(w3 * s3, Cmid_p, Cout_p).astype(compute_dtype)
    b3p = pad2(b3, 1, Cout_p)

    kernel = functools.partial(_bottleneck_kernel, Cmid_p=Cmid_p, Wp=Wp)
    vmem_limit = _pick_vmem_limit(M, Cin_p, Cmid_p, Cout_p)

    def build(single_buffer_consts):
        def const_spec(a):
            # Constant across the grid: single-buffer to halve resident VMEM.
            def idx(n, _nd=None):
                return (0,) * a.ndim
            if single_buffer_consts:
                return pl.BlockSpec(a.shape, lambda n: (0,) * a.ndim,
                                    pipeline_mode=pl.Buffered(1))
            return pl.BlockSpec(a.shape, lambda n: (0,) * a.ndim)

        return pl.pallas_call(
            kernel,
            out_shape=jax.ShapeDtypeStruct((N, R, Cout_p), compute_dtype),
            grid_spec=pltpu.PrefetchScalarGridSpec(
                num_scalar_prefetch=0,
                grid=(N // B_blk,),
                in_specs=[
                    pl.BlockSpec((B_blk, R, Cin_p), lambda n: (n, 0, 0)),
                    const_spec(mask), const_spec(wcat), const_spec(bcat),
                    const_spec(w2f), const_spec(b2p),
                    const_spec(w3f), const_spec(b3p),
                ],
                out_specs=pl.BlockSpec((B_blk, R, Cout_p), lambda n: (n, 0, 0)),
            ),
            compiler_params=pltpu.CompilerParams(
                dimension_semantics=("parallel",),
                vmem_limit_bytes=vmem_limit,
            ),
        )

    args = (xp, mask, wcat, bcat, w2f, b2p, w3f, b3p)
    try:
        out_flat = build(True)(*args)
    except Exception:
        # pl.Buffered(1) not supported on this jax/Mosaic version: fall back
        # to default double-buffering of the constant operands.
        out_flat = build(False)(*args)

    # Drop pad rows / pad channels, restore NCHW, cast back to f32.
    out = out_flat[:, :Hp * Wp, :Cout].astype(jnp.float32)
    out = out.reshape(N, Hp, Wp, Cout)[:, 1:H + 1, 1:W + 1, :]
    return jnp.transpose(out, (0, 3, 1, 2))


def make_params(key, in_ch, out_ch, eps=1e-5):
    """Deterministic synthetic parameters (conv weights + folded BN)."""
    mid = out_ch // 4
    ks = jax.random.split(key, 8)

    def bn(k, c):
        gamma = jax.random.uniform(jax.random.fold_in(k, 0), (c,), jnp.float32, 0.5, 1.5)
        beta = 0.1 * jax.random.normal(jax.random.fold_in(k, 1), (c,), jnp.float32)
        mean = 0.1 * jax.random.normal(jax.random.fold_in(k, 2), (c,), jnp.float32)
        var = jax.random.uniform(jax.random.fold_in(k, 3), (c,), jnp.float32, 0.5, 1.5)
        scale = gamma / jnp.sqrt(var + eps)
        bias = beta - mean * scale
        return scale.reshape(1, c), bias.reshape(1, c)

    w1 = 0.1 * jax.random.normal(ks[0], (in_ch, mid), jnp.float32)          # 1x1
    w2 = 0.1 * jax.random.normal(ks[1], (3, 3, mid, mid), jnp.float32)      # 3x3 (kh,kw,in,out)
    w3 = 0.1 * jax.random.normal(ks[2], (mid, out_ch), jnp.float32)         # 1x1
    wr = 0.1 * jax.random.normal(ks[3], (in_ch, out_ch), jnp.float32)       # 1x1 residual
    s1, b1 = bn(ks[4], mid)
    s2, b2 = bn(ks[5], mid)
    s3, b3 = bn(ks[6], out_ch)
    sr, br = bn(ks[7], out_ch)
    return (w1, s1, b1, w2, s2, b2, w3, s3, b3, wr, sr, br)


def reference_forward(x_nchw, params, *, downsample=True):
    """Pure-JAX f32 reference for correctness checking."""
    (w1, s1, b1, w2, s2, b2, w3, s3, b3, wr, sr, br) = params
    x = jnp.transpose(x_nchw, (0, 2, 3, 1))
    if downsample:
        N, Hin, Win, C = x.shape
        x = x.reshape(N, Hin // 2, 2, Win // 2, 2, C).max(axis=(2, 4))
    N, H, W, _ = x.shape
    y1 = jnp.maximum(jnp.einsum('nhwc,cd->nhwd', x, w1) * s1[0] + b1[0], 0.0)
    y1p = jnp.pad(y1, ((0, 0), (1, 1), (1, 1), (0, 0)))
    acc = jnp.zeros((N, H, W, w2.shape[-1]), jnp.float32)
    for dy in range(3):
        for dx in range(3):
            acc = acc + jnp.einsum('nhwc,cd->nhwd',
                                   y1p[:, dy:dy + H, dx:dx + W, :], w2[dy, dx])
    y2 = jnp.maximum(acc * s2[0] + b2[0], 0.0)
    y3 = jnp.einsum('nhwc,cd->nhwd', y2, w3) * s3[0] + b3[0]
    res = jnp.einsum('nhwc,cd->nhwd', x, wr) * sr[0] + br[0]
    out = jnp.maximum(y3 + res, 0.0)
    return jnp.transpose(out, (0, 3, 1, 2))


if __name__ == "__main__":
    key = jax.random.PRNGKey(0)
    kx, kp = jax.random.split(key)

    in_ch, out_ch = 8, 32
    x = jax.random.normal(kx, (2, in_ch, 16, 16), jnp.float32)   # NCHW, like PyTorch
    params = make_params(kp, in_ch, out_ch)

    out = bottleneck_forward(x, params, downsample=True)
    out = jax.block_until_ready(out)
    assert out.shape == (2, out_ch, 8, 8), out.shape

    ref = reference_forward(x, params, downsample=True)
    # bf16 activations/weights/output with f32 accumulation -> looser tol.
    np.testing.assert_allclose(np.asarray(out), np.asarray(ref),
                               rtol=2e-2, atol=2e-2)
    print("KERNEL_OK")
</pallas_src>

<mosaic_0001>
module attributes {stable_mosaic.version = 11 : i64} {
  func.func @_bottleneck_kernel(%arg0: i32, %arg1: memref<1x104x128xbf16, #tpu.memory_space<vmem>>, %arg2: memref<104x1xf32, #tpu.memory_space<vmem>>, %arg3: memref<128x256xbf16, #tpu.memory_space<vmem>>, %arg4: memref<1x256xf32, #tpu.memory_space<vmem>>, %arg5: memref<1152x128xbf16, #tpu.memory_space<vmem>>, %arg6: memref<1x128xf32, #tpu.memory_space<vmem>>, %arg7: memref<128x128xbf16, #tpu.memory_space<vmem>>, %arg8: memref<1x128xf32, #tpu.memory_space<vmem>>, %arg9: memref<1x104x128xbf16, #tpu.memory_space<vmem>>) attributes {dimension_semantics = [#tpu.dimension_semantics<parallel>], iteration_bounds = array<i64: 2>, scalar_prefetch = 0 : i64, scratch_operands = 0 : i64, tpu.core_type = #tpu.core_type<tc>, window_params = [{transform_indices = @transform_0, window_bounds = array<i64: 1, 104, 128>}, {pipeline_mode = #tpu.pipeline_mode<synchronous>, transform_indices = @transform_1, window_bounds = array<i64: 104, 1>}, {pipeline_mode = #tpu.pipeline_mode<synchronous>, transform_indices = @transform_2, window_bounds = array<i64: 128, 256>}, {pipeline_mode = #tpu.pipeline_mode<synchronous>, transform_indices = @transform_3, window_bounds = array<i64: 1, 256>}, {pipeline_mode = #tpu.pipeline_mode<synchronous>, transform_indices = @transform_4, window_bounds = array<i64: 1152, 128>}, {pipeline_mode = #tpu.pipeline_mode<synchronous>, transform_indices = @transform_5, window_bounds = array<i64: 1, 128>}, {pipeline_mode = #tpu.pipeline_mode<synchronous>, transform_indices = @transform_6, window_bounds = array<i64: 128, 128>}, {pipeline_mode = #tpu.pipeline_mode<synchronous>, transform_indices = @transform_7, window_bounds = array<i64: 1, 128>}, {transform_indices = @transform_8, window_bounds = array<i64: 1, 104, 128>}]} {
    %c0 = arith.constant 0 : index
    %c0_0 = arith.constant 0 : index
    %c0_1 = arith.constant 0 : index
    %0 = vector.load %arg1[%c0, %c0_0, %c0_1] : memref<1x104x128xbf16, #tpu.memory_space<vmem>>, vector<1x104x128xbf16>
    %1 = vector.shape_cast %0 : vector<1x104x128xbf16> to vector<104x128xbf16>
    %c0_2 = arith.constant 0 : index
    %c0_3 = arith.constant 0 : index
    %2 = vector.load %arg3[%c0_2, %c0_3] : memref<128x256xbf16, #tpu.memory_space<vmem>>, vector<128x256xbf16>
    %cst = arith.constant dense<0.000000e+00> : vector<104x256xf32>
    %3 = tpu.matmul %1, %2, %cst {dimension_numbers = #tpu.dot_dimension_numbers<[1], [0], [0], [1], [0, 0, 1, 1], [], []>} : vector<104x128xbf16>, vector<128x256xbf16>, vector<104x256xf32> -> vector<104x256xf32>
    %c0_4 = arith.constant 0 : index
    %c0_5 = arith.constant 0 : index
    %4 = vector.load %arg4[%c0_4, %c0_5] : memref<1x256xf32, #tpu.memory_space<vmem>>, vector<1x256xf32>
    %5 = vector.broadcast %4 : vector<1x256xf32> to vector<104x256xf32>
    %6 = arith.addf %3, %5 : vector<104x256xf32>
    %7 = vector.extract_strided_slice %6 {offsets = [0, 0], sizes = [104, 128], strides = [1, 1]} : vector<104x256xf32> to vector<104x128xf32>
    %cst_6 = arith.constant 0.000000e+00 : f32
    %8 = vector.broadcast %cst_6 : f32 to vector<104x128xf32>
    %9 = arith.maximumf %7, %8 : vector<104x128xf32>
    %c0_7 = arith.constant 0 : index
    %c0_8 = arith.constant 0 : index
    %10 = vector.load %arg2[%c0_7, %c0_8] : memref<104x1xf32, #tpu.memory_space<vmem>>, vector<104x1xf32>
    %11 = vector.broadcast %10 : vector<104x1xf32> to vector<104x128xf32>
    %12 = arith.mulf %9, %11 : vector<104x128xf32>
    %13 = vector.extract_strided_slice %6 {offsets = [0, 128], sizes = [104, 128], strides = [1, 1]} : vector<104x256xf32> to vector<104x128xf32>
    %14 = arith.truncf %13 : vector<104x128xf32> to vector<104x128xbf16>
    %cst_9 = arith.constant 0.000000e+00 : f32
    %15 = vector.broadcast %cst_9 : f32 to vector<104x128xf32>
    %c11_i32 = arith.constant 11 : i32
    %16 = tpu.dynamic_rotate %12 by %c11_i32 dim 0 : vector<104x128xf32>, i32 -> vector<104x128xf32>
    %17 = arith.truncf %16 : vector<104x128xf32> to vector<104x128xbf16>
    %c0_10 = arith.constant 0 : index
    %c0_11 = arith.constant 0 : index
    %18 = vector.load %arg5[%c0_10, %c0_11] : memref<1152x128xbf16, #tpu.memory_space<vmem>>, vector<128x128xbf16>
    %cst_12 = arith.constant dense<0.000000e+00> : vector<104x128xf32>
    %19 = tpu.matmul %17, %18, %cst_12 {dimension_numbers = #tpu.dot_dimension_numbers<[1], [0], [0], [1], [0, 0, 1, 1], [], []>} : vector<104x128xbf16>, vector<128x128xbf16>, vector<104x128xf32> -> vector<104x128xf32>
    %20 = arith.addf %15, %19 : vector<104x128xf32>
    %c10_i32 = arith.constant 10 : i32
    %21 = tpu.dynamic_rotate %12 by %c10_i32 dim 0 : vector<104x128xf32>, i32 -> vector<104x128xf32>
    %22 = arith.truncf %21 : vector<104x128xf32> to vector<104x128xbf16>
    %c128 = arith.constant 128 : index
    %c0_13 = arith.constant 0 : index
    %23 = vector.load %arg5[%c128, %c0_13] : memref<1152x128xbf16, #tpu.memory_space<vmem>>, vector<128x128xbf16>
    %cst_14 = arith.constant dense<0.000000e+00> : vector<104x128xf32>
    %24 = tpu.matmul %22, %23, %cst_14 {dimension_numbers = #tpu.dot_dimension_numbers<[1], [0], [0], [1], [0, 0, 1, 1], [], []>} : vector<104x128xbf16>, vector<128x128xbf16>, vector<104x128xf32> -> vector<104x128xf32>
    %25 = arith.addf %20, %24 : vector<104x128xf32>
    %c9_i32 = arith.constant 9 : i32
    %26 = tpu.dynamic_rotate %12 by %c9_i32 dim 0 : vector<104x128xf32>, i32 -> vector<104x128xf32>
    %27 = arith.truncf %26 : vector<104x128xf32> to vector<104x128xbf16>
    %c256 = arith.constant 256 : index
    %c0_15 = arith.constant 0 : index
    %28 = vector.load %arg5[%c256, %c0_15] : memref<1152x128xbf16, #tpu.memory_space<vmem>>, vector<128x128xbf16>
    %cst_16 = arith.constant dense<0.000000e+00> : vector<104x128xf32>
    %29 = tpu.matmul %27, %28, %cst_16 {dimension_numbers = #tpu.dot_dimension_numbers<[1], [0], [0], [1], [0, 0, 1, 1], [], []>} : vector<104x128xbf16>, vector<128x128xbf16>, vector<104x128xf32> -> vector<104x128xf32>
    %30 = arith.addf %25, %29 : vector<104x128xf32>
    %c1_i32 = arith.constant 1 : i32
    %31 = tpu.dynamic_rotate %12 by %c1_i32 dim 0 : vector<104x128xf32>, i32 -> vector<104x128xf32>
    %32 = arith.truncf %31 : vector<104x128xf32> to vector<104x128xbf16>
    %c384 = arith.constant 384 : index
    %c0_17 = arith.constant 0 : index
    %33 = vector.load %arg5[%c384, %c0_17] : memref<1152x128xbf16, #tpu.memory_space<vmem>>, vector<128x128xbf16>
    %cst_18 = arith.constant dense<0.000000e+00> : vector<104x128xf32>
    %34 = tpu.matmul %32, %33, %cst_18 {dimension_numbers = #tpu.dot_dimension_numbers<[1], [0], [0], [1], [0, 0, 1, 1], [], []>} : vector<104x128xbf16>, vector<128x128xbf16>, vector<104x128xf32> -> vector<104x128xf32>
    %35 = arith.addf %30, %34 : vector<104x128xf32>
    %36 = arith.truncf %12 : vector<104x128xf32> to vector<104x128xbf16>
    %c512 = arith.constant 512 : index
    %c0_19 = arith.constant 0 : index
    %37 = vector.load %arg5[%c512, %c0_19] : memref<1152x128xbf16, #tpu.memory_space<vmem>>, vector<128x128xbf16>
    %cst_20 = arith.constant dense<0.000000e+00> : vector<104x128xf32>
    %38 = tpu.matmul %36, %37, %cst_20 {dimension_numbers = #tpu.dot_dimension_numbers<[1], [0], [0], [1], [0, 0, 1, 1], [], []>} : vector<104x128xbf16>, vector<128x128xbf16>, vector<104x128xf32> -> vector<104x128xf32>
    %39 = arith.addf %35, %38 : vector<104x128xf32>
    %c103_i32 = arith.constant 103 : i32
    %40 = tpu.dynamic_rotate %12 by %c103_i32 dim 0 : vector<104x128xf32>, i32 -> vector<104x128xf32>
    %41 = arith.truncf %40 : vector<104x128xf32> to vector<104x128xbf16>
    %c640 = arith.constant 640 : index
    %c0_21 = arith.constant 0 : index
    %42 = vector.load %arg5[%c640, %c0_21] : memref<1152x128xbf16, #tpu.memory_space<vmem>>, vector<128x128xbf16>
    %cst_22 = arith.constant dense<0.000000e+00> : vector<104x128xf32>
    %43 = tpu.matmul %41, %42, %cst_22 {dimension_numbers = #tpu.dot_dimension_numbers<[1], [0], [0], [1], [0, 0, 1, 1], [], []>} : vector<104x128xbf16>, vector<128x128xbf16>, vector<104x128xf32> -> vector<104x128xf32>
    %44 = arith.addf %39, %43 : vector<104x128xf32>
    %c95_i32 = arith.constant 95 : i32
    %45 = tpu.dynamic_rotate %12 by %c95_i32 dim 0 : vector<104x128xf32>, i32 -> vector<104x128xf32>
    %46 = arith.truncf %45 : vector<104x128xf32> to vector<104x128xbf16>
    %c768 = arith.constant 768 : index
    %c0_23 = arith.constant 0 : index
    %47 = vector.load %arg5[%c768, %c0_23] : memref<1152x128xbf16, #tpu.memory_space<vmem>>, vector<128x128xbf16>
    %cst_24 = arith.constant dense<0.000000e+00> : vector<104x128xf32>
    %48 = tpu.matmul %46, %47, %cst_24 {dimension_numbers = #tpu.dot_dimension_numbers<[1], [0], [0], [1], [0, 0, 1, 1], [], []>} : vector<104x128xbf16>, vector<128x128xbf16>, vector<104x128xf32> -> vector<104x128xf32>
    %49 = arith.addf %44, %48 : vector<104x128xf32>
    %c94_i32 = arith.constant 94 : i32
    %50 = tpu.dynamic_rotate %12 by %c94_i32 dim 0 : vector<104x128xf32>, i32 -> vector<104x128xf32>
    %51 = arith.truncf %50 : vector<104x128xf32> to vector<104x128xbf16>
    %c896 = arith.constant 896 : index
    %c0_25 = arith.constant 0 : index
    %52 = vector.load %arg5[%c896, %c0_25] : memref<1152x128xbf16, #tpu.memory_space<vmem>>, vector<128x128xbf16>
    %cst_26 = arith.constant dense<0.000000e+00> : vector<104x128xf32>
    %53 = tpu.matmul %51, %52, %cst_26 {dimension_numbers = #tpu.dot_dimension_numbers<[1], [0], [0], [1], [0, 0, 1, 1], [], []>} : vector<104x128xbf16>, vector<128x128xbf16>, vector<104x128xf32> -> vector<104x128xf32>
    %54 = arith.addf %49, %53 : vector<104x128xf32>
    %c93_i32 = arith.constant 93 : i32
    %55 = tpu.dynamic_rotate %12 by %c93_i32 dim 0 : vector<104x128xf32>, i32 -> vector<104x128xf32>
    %56 = arith.truncf %55 : vector<104x128xf32> to vector<104x128xbf16>
    %c1024 = arith.constant 1024 : index
    %c0_27 = arith.constant 0 : index
    %57 = vector.load %arg5[%c1024, %c0_27] : memref<1152x128xbf16, #tpu.memory_space<vmem>>, vector<128x128xbf16>
    %cst_28 = arith.constant dense<0.000000e+00> : vector<104x128xf32>
    %58 = tpu.matmul %56, %57, %cst_28 {dimension_numbers = #tpu.dot_dimension_numbers<[1], [0], [0], [1], [0, 0, 1, 1], [], []>} : vector<104x128xbf16>, vector<128x128xbf16>, vector<104x128xf32> -> vector<104x128xf32>
    %59 = arith.addf %54, %58 : vector<104x128xf32>
    %c0_29 = arith.constant 0 : index
    %c0_30 = arith.constant 0 : index
    %60 = vector.load %arg6[%c0_29, %c0_30] : memref<1x128xf32, #tpu.memory_space<vmem>>, vector<1x128xf32>
    %61 = vector.broadcast %60 : vector<1x128xf32> to vector<104x128xf32>
    %62 = arith.addf %59, %61 : vector<104x128xf32>
    %cst_31 = arith.constant 0.000000e+00 : f32
    %63 = vector.broadcast %cst_31 : f32 to vector<104x128xf32>
    %64 = arith.maximumf %62, %63 : vector<104x128xf32>
    %65 = arith.truncf %64 : vector<104x128xf32> to vector<104x128xbf16>
    %c0_32 = arith.constant 0 : index
    %c0_33 = arith.constant 0 : index
    %66 = vector.load %arg7[%c0_32, %c0_33] : memref<128x128xbf16, #tpu.memory_space<vmem>>, vector<128x128xbf16>
    %cst_34 = arith.constant dense<0.000000e+00> : vector<104x128xf32>
    %67 = tpu.matmul %65, %66, %cst_34 {dimension_numbers = #tpu.dot_dimension_numbers<[1], [0], [0], [1], [0, 0, 1, 1], [], []>} : vector<104x128xbf16>, vector<128x128xbf16>, vector<104x128xf32> -> vector<104x128xf32>
    %c0_35 = arith.constant 0 : index
    %c0_36 = arith.constant 0 : index
    %68 = vector.load %arg8[%c0_35, %c0_36] : memref<1x128xf32, #tpu.memory_space<vmem>>, vector<1x128xf32>
    %69 = vector.broadcast %68 : vector<1x128xf32> to vector<104x128xf32>
    %70 = arith.addf %67, %69 : vector<104x128xf32>
    %71 = arith.extf %14 : vector<104x128xbf16> to vector<104x128xf32>
    %72 = arith.addf %70, %71 : vector<104x128xf32>
    %cst_37 = arith.constant 0.000000e+00 : f32
    %73 = vector.broadcast %cst_37 : f32 to vector<104x128xf32>
    %74 = arith.maximumf %72, %73 : vector<104x128xf32>
    %75 = vector.shape_cast %74 : vector<104x128xf32> to vector<1x104x128xf32>
    %76 = arith.truncf %75 : vector<1x104x128xf32> to vector<1x104x128xbf16>
    %c0_38 = arith.constant 0 : index
    %c0_39 = arith.constant 0 : index
    %c0_40 = arith.constant 0 : index
    %77 = vector.load %arg9[%c0_38, %c0_39, %c0_40] : memref<1x104x128xbf16, #tpu.memory_space<vmem>>, vector<1x104x128xbf16>
    tpu.vector_store %arg9[%c0_38, %c0_39, %c0_40], %76 {strides = array<i32>} : memref<1x104x128xbf16, #tpu.memory_space<vmem>>, vector<1x104x128xbf16>,
    return
  }
  func.func @transform_0(%arg0: i32) -> (i32, i32, i32) {
    %c0_i32 = arith.constant 0 : i32
    %c0_i32_0 = arith.constant 0 : i32
    %c0_i32_1 = arith.constant 0 : i32
    return %arg0, %c0_i32, %c0_i32_0 : i32, i32, i32
  }
  func.func @transform_1(%arg0: i32) -> (i32, i32) {
    %c0_i32 = arith.constant 0 : i32
    %c0_i32_0 = arith.constant 0 : i32
    %c0_i32_1 = arith.constant 0 : i32
    return %c0_i32, %c0_i32_0 : i32, i32
  }
  func.func @transform_2(%arg0: i32) -> (i32, i32) {
    %c0_i32 = arith.constant 0 : i32
    %c0_i32_0 = arith.constant 0 : i32
    %c0_i32_1 = arith.constant 0 : i32
    return %c0_i32, %c0_i32_0 : i32, i32
  }
  func.func @transform_3(%arg0: i32) -> (i32, i32) {
    %c0_i32 = arith.constant 0 : i32
    %c0_i32_0 = arith.constant 0 : i32
    %c0_i32_1 = arith.constant 0 : i32
    return %c0_i32, %c0_i32_0 : i32, i32
  }
  func.func @transform_4(%arg0: i32) -> (i32, i32) {
    %c0_i32 = arith.constant 0 : i32
    %c0_i32_0 = arith.constant 0 : i32
    %c0_i32_1 = arith.constant 0 : i32
    return %c0_i32, %c0_i32_0 : i32, i32
  }
  func.func @transform_5(%arg0: i32) -> (i32, i32) {
    %c0_i32 = arith.constant 0 : i32
    %c0_i32_0 = arith.constant 0 : i32
    %c0_i32_1 = arith.constant 0 : i32
    return %c0_i32, %c0_i32_0 : i32, i32
  }
  func.func @transform_6(%arg0: i32) -> (i32, i32) {
    %c0_i32 = arith.constant 0 : i32
    %c0_i32_0 = arith.constant 0 : i32
    %c0_i32_1 = arith.constant 0 : i32
    return %c0_i32, %c0_i32_0 : i32, i32
  }
  func.func @transform_7(%arg0: i32) -> (i32, i32) {
    %c0_i32 = arith.constant 0 : i32
    %c0_i32_0 = arith.constant 0 : i32
    %c0_i32_1 = arith.constant 0 : i32
    return %c0_i32, %c0_i32_0 : i32, i32
  }
  func.func @transform_8(%arg0: i32) -> (i32, i32, i32) {
    %c0_i32 = arith.constant 0 : i32
    %c0_i32_0 = arith.constant 0 : i32
    %c0_i32_1 = arith.constant 0 : i32
    return %arg0, %c0_i32, %c0_i32_0 : i32, i32, i32
  }
}

module attributes {stable_mosaic.version = 11 : i64} {
  func.func @_bottleneck_kernel(%arg0: i32, %arg1: memref<1x104x128xbf16, #tpu.memory_space<vmem>>, %arg2: memref<104x1xf32, #tpu.memory_space<vmem>>, %arg3: memref<128x256xbf16, #tpu.memory_space<vmem>>, %arg4: memref<1x256xf32, #tpu.memory_space<vmem>>, %arg5: memref<1152x128xbf16, #tpu.memory_space<vmem>>, %arg6: memref<1x128xf32, #tpu.memory_space<vmem>>, %arg7: memref<128x128xbf16, #tpu.memory_space<vmem>>, %arg8: memref<1x128xf32, #tpu.memory_space<vmem>>, %arg9: memref<1x104x128xbf16, #tpu.memory_space<vmem>>) attributes {dimension_semantics = [#tpu.dimension_semantics<parallel>], iteration_bounds = array<i64: 2>, scalar_prefetch = 0 : i64, scratch_operands = 0 : i64, tpu.core_type = #tpu.core_type<tc>, window_params = [{transform_indices = @transform_0, window_bounds = array<i64: 1, 104, 128>}, {pipeline_mode = #tpu.pipeline_mode<synchronous>, transform_indices = @transform_1, window_bounds = array<i64: 104, 1>}, {pipeline_mode = #tpu.pipeline_mode<synchronous>, transform_indices = @transform_2, window_bounds = array<i64: 128, 256>}, {pipeline_mode = #tpu.pipeline_mode<synchronous>, transform_indices = @transform_3, window_bounds = array<i64: 1, 256>}, {pipeline_mode = #tpu.pipeline_mode<synchronous>, transform_indices = @transform_4, window_bounds = array<i64: 1152, 128>}, {pipeline_mode = #tpu.pipeline_mode<synchronous>, transform_indices = @transform_5, window_bounds = array<i64: 1, 128>}, {pipeline_mode = #tpu.pipeline_mode<synchronous>, transform_indices = @transform_6, window_bounds = array<i64: 128, 128>}, {pipeline_mode = #tpu.pipeline_mode<synchronous>, transform_indices = @transform_7, window_bounds = array<i64: 1, 128>}, {transform_indices = @transform_8, window_bounds = array<i64: 1, 104, 128>}]} {
    %c0 = arith.constant 0 : index
    %c0_0 = arith.constant 0 : index
    %c0_1 = arith.constant 0 : index
    %0 = vector.load %arg1[%c0, %c0_0, %c0_1] : memref<1x104x128xbf16, #tpu.memory_space<vmem>>, vector<1x104x128xbf16>
    %1 = vector.shape_cast %0 : vector<1x104x128xbf16> to vector<104x128xbf16>
    %c0_2 = arith.constant 0 : index
    %c0_3 = arith.constant 0 : index
    %2 = vector.load %arg3[%c0_2, %c0_3] : memref<128x256xbf16, #tpu.memory_space<vmem>>, vector<128x256xbf16>
    %cst = arith.constant dense<0.000000e+00> : vector<104x256xf32>
    %3 = tpu.matmul %1, %2, %cst {dimension_numbers = #tpu.dot_dimension_numbers<[1], [0], [0], [1], [0, 0, 1, 1], [], []>} : vector<104x128xbf16>, vector<128x256xbf16>, vector<104x256xf32> -> vector<104x256xf32>
    %c0_4 = arith.constant 0 : index
    %c0_5 = arith.constant 0 : index
    %4 = vector.load %arg4[%c0_4, %c0_5] : memref<1x256xf32, #tpu.memory_space<vmem>>, vector<1x256xf32>
    %5 = vector.broadcast %4 : vector<1x256xf32> to vector<104x256xf32>
    %6 = arith.addf %3, %5 : vector<104x256xf32>
    %7 = vector.extract_strided_slice %6 {offsets = [0, 0], sizes = [104, 128], strides = [1, 1]} : vector<104x256xf32> to vector<104x128xf32>
    %cst_6 = arith.constant 0.000000e+00 : f32
    %8 = vector.broadcast %cst_6 : f32 to vector<104x128xf32>
    %9 = arith.maximumf %7, %8 : vector<104x128xf32>
    %c0_7 = arith.constant 0 : index
    %c0_8 = arith.constant 0 : index
    %10 = vector.load %arg2[%c0_7, %c0_8] : memref<104x1xf32, #tpu.memory_space<vmem>>, vector<104x1xf32>
    %11 = vector.broadcast %10 : vector<104x1xf32> to vector<104x128xf32>
    %12 = arith.mulf %9, %11 : vector<104x128xf32>
    %13 = vector.extract_strided_slice %6 {offsets = [0, 128], sizes = [104, 128], strides = [1, 1]} : vector<104x256xf32> to vector<104x128xf32>
    %14 = arith.truncf %13 : vector<104x128xf32> to vector<104x128xbf16>
    %cst_9 = arith.constant 0.000000e+00 : f32
    %15 = vector.broadcast %cst_9 : f32 to vector<104x128xf32>
    %c11_i32 = arith.constant 11 : i32
    %16 = tpu.dynamic_rotate %12 by %c11_i32 dim 0 : vector<104x128xf32>, i32 -> vector<104x128xf32>
    %17 = arith.truncf %16 : vector<104x128xf32> to vector<104x128xbf16>
    %c0_10 = arith.constant 0 : index
    %c0_11 = arith.constant 0 : index
    %18 = vector.load %arg5[%c0_10, %c0_11] : memref<1152x128xbf16, #tpu.memory_space<vmem>>, vector<128x128xbf16>
    %cst_12 = arith.constant dense<0.000000e+00> : vector<104x128xf32>
    %19 = tpu.matmul %17, %18, %cst_12 {dimension_numbers = #tpu.dot_dimension_numbers<[1], [0], [0], [1], [0, 0, 1, 1], [], []>} : vector<104x128xbf16>, vector<128x128xbf16>, vector<104x128xf32> -> vector<104x128xf32>
    %20 = arith.addf %15, %19 : vector<104x128xf32>
    %c10_i32 = arith.constant 10 : i32
    %21 = tpu.dynamic_rotate %12 by %c10_i32 dim 0 : vector<104x128xf32>, i32 -> vector<104x128xf32>
    %22 = arith.truncf %21 : vector<104x128xf32> to vector<104x128xbf16>
    %c128 = arith.constant 128 : index
    %c0_13 = arith.constant 0 : index
    %23 = vector.load %arg5[%c128, %c0_13] : memref<1152x128xbf16, #tpu.memory_space<vmem>>, vector<128x128xbf16>
    %cst_14 = arith.constant dense<0.000000e+00> : vector<104x128xf32>
    %24 = tpu.matmul %22, %23, %cst_14 {dimension_numbers = #tpu.dot_dimension_numbers<[1], [0], [0], [1], [0, 0, 1, 1], [], []>} : vector<104x128xbf16>, vector<128x128xbf16>, vector<104x128xf32> -> vector<104x128xf32>
    %25 = arith.addf %20, %24 : vector<104x128xf32>
    %c9_i32 = arith.constant 9 : i32
    %26 = tpu.dynamic_rotate %12 by %c9_i32 dim 0 : vector<104x128xf32>, i32 -> vector<104x128xf32>
    %27 = arith.truncf %26 : vector<104x128xf32> to vector<104x128xbf16>
    %c256 = arith.constant 256 : index
    %c0_15 = arith.constant 0 : index
    %28 = vector.load %arg5[%c256, %c0_15] : memref<1152x128xbf16, #tpu.memory_space<vmem>>, vector<128x128xbf16>
    %cst_16 = arith.constant dense<0.000000e+00> : vector<104x128xf32>
    %29 = tpu.matmul %27, %28, %cst_16 {dimension_numbers = #tpu.dot_dimension_numbers<[1], [0], [0], [1], [0, 0, 1, 1], [], []>} : vector<104x128xbf16>, vector<128x128xbf16>, vector<104x128xf32> -> vector<104x128xf32>
    %30 = arith.addf %25, %29 : vector<104x128xf32>
    %c1_i32 = arith.constant 1 : i32
    %31 = tpu.dynamic_rotate %12 by %c1_i32 dim 0 : vector<104x128xf32>, i32 -> vector<104x128xf32>
    %32 = arith.truncf %31 : vector<104x128xf32> to vector<104x128xbf16>
    %c384 = arith.constant 384 : index
    %c0_17 = arith.constant 0 : index
    %33 = vector.load %arg5[%c384, %c0_17] : memref<1152x128xbf16, #tpu.memory_space<vmem>>, vector<128x128xbf16>
    %cst_18 = arith.constant dense<0.000000e+00> : vector<104x128xf32>
    %34 = tpu.matmul %32, %33, %cst_18 {dimension_numbers = #tpu.dot_dimension_numbers<[1], [0], [0], [1], [0, 0, 1, 1], [], []>} : vector<104x128xbf16>, vector<128x128xbf16>, vector<104x128xf32> -> vector<104x128xf32>
    %35 = arith.addf %30, %34 : vector<104x128xf32>
    %36 = arith.truncf %12 : vector<104x128xf32> to vector<104x128xbf16>
    %c512 = arith.constant 512 : index
    %c0_19 = arith.constant 0 : index
    %37 = vector.load %arg5[%c512, %c0_19] : memref<1152x128xbf16, #tpu.memory_space<vmem>>, vector<128x128xbf16>
    %cst_20 = arith.constant dense<0.000000e+00> : vector<104x128xf32>
    %38 = tpu.matmul %36, %37, %cst_20 {dimension_numbers = #tpu.dot_dimension_numbers<[1], [0], [0], [1], [0, 0, 1, 1], [], []>} : vector<104x128xbf16>, vector<128x128xbf16>, vector<104x128xf32> -> vector<104x128xf32>
    %39 = arith.addf %35, %38 : vector<104x128xf32>
    %c103_i32 = arith.constant 103 : i32
    %40 = tpu.dynamic_rotate %12 by %c103_i32 dim 0 : vector<104x128xf32>, i32 -> vector<104x128xf32>
    %41 = arith.truncf %40 : vector<104x128xf32> to vector<104x128xbf16>
    %c640 = arith.constant 640 : index
    %c0_21 = arith.constant 0 : index
    %42 = vector.load %arg5[%c640, %c0_21] : memref<1152x128xbf16, #tpu.memory_space<vmem>>, vector<128x128xbf16>
    %cst_22 = arith.constant dense<0.000000e+00> : vector<104x128xf32>
    %43 = tpu.matmul %41, %42, %cst_22 {dimension_numbers = #tpu.dot_dimension_numbers<[1], [0], [0], [1], [0, 0, 1, 1], [], []>} : vector<104x128xbf16>, vector<128x128xbf16>, vector<104x128xf32> -> vector<104x128xf32>
    %44 = arith.addf %39, %43 : vector<104x128xf32>
    %c95_i32 = arith.constant 95 : i32
    %45 = tpu.dynamic_rotate %12 by %c95_i32 dim 0 : vector<104x128xf32>, i32 -> vector<104x128xf32>
    %46 = arith.truncf %45 : vector<104x128xf32> to vector<104x128xbf16>
    %c768 = arith.constant 768 : index
    %c0_23 = arith.constant 0 : index
    %47 = vector.load %arg5[%c768, %c0_23] : memref<1152x128xbf16, #tpu.memory_space<vmem>>, vector<128x128xbf16>
    %cst_24 = arith.constant dense<0.000000e+00> : vector<104x128xf32>
    %48 = tpu.matmul %46, %47, %cst_24 {dimension_numbers = #tpu.dot_dimension_numbers<[1], [0], [0], [1], [0, 0, 1, 1], [], []>} : vector<104x128xbf16>, vector<128x128xbf16>, vector<104x128xf32> -> vector<104x128xf32>
    %49 = arith.addf %44, %48 : vector<104x128xf32>
    %c94_i32 = arith.constant 94 : i32
    %50 = tpu.dynamic_rotate %12 by %c94_i32 dim 0 : vector<104x128xf32>, i32 -> vector<104x128xf32>
    %51 = arith.truncf %50 : vector<104x128xf32> to vector<104x128xbf16>
    %c896 = arith.constant 896 : index
    %c0_25 = arith.constant 0 : index
    %52 = vector.load %arg5[%c896, %c0_25] : memref<1152x128xbf16, #tpu.memory_space<vmem>>, vector<128x128xbf16>
    %cst_26 = arith.constant dense<0.000000e+00> : vector<104x128xf32>
    %53 = tpu.matmul %51, %52, %cst_26 {dimension_numbers = #tpu.dot_dimension_numbers<[1], [0], [0], [1], [0, 0, 1, 1], [], []>} : vector<104x128xbf16>, vector<128x128xbf16>, vector<104x128xf32> -> vector<104x128xf32>
    %54 = arith.addf %49, %53 : vector<104x128xf32>
    %c93_i32 = arith.constant 93 : i32
    %55 = tpu.dynamic_rotate %12 by %c93_i32 dim 0 : vector<104x128xf32>, i32 -> vector<104x128xf32>
    %56 = arith.truncf %55 : vector<104x128xf32> to vector<104x128xbf16>
    %c1024 = arith.constant 1024 : index
    %c0_27 = arith.constant 0 : index
    %57 = vector.load %arg5[%c1024, %c0_27] : memref<1152x128xbf16, #tpu.memory_space<vmem>>, vector<128x128xbf16>
    %cst_28 = arith.constant dense<0.000000e+00> : vector<104x128xf32>
    %58 = tpu.matmul %56, %57, %cst_28 {dimension_numbers = #tpu.dot_dimension_numbers<[1], [0], [0], [1], [0, 0, 1, 1], [], []>} : vector<104x128xbf16>, vector<128x128xbf16>, vector<104x128xf32> -> vector<104x128xf32>
    %59 = arith.addf %54, %58 : vector<104x128xf32>
    %c0_29 = arith.constant 0 : index
    %c0_30 = arith.constant 0 : index
    %60 = vector.load %arg6[%c0_29, %c0_30] : memref<1x128xf32, #tpu.memory_space<vmem>>, vector<1x128xf32>
    %61 = vector.broadcast %60 : vector<1x128xf32> to vector<104x128xf32>
    %62 = arith.addf %59, %61 : vector<104x128xf32>
    %cst_31 = arith.constant 0.000000e+00 : f32
    %63 = vector.broadcast %cst_31 : f32 to vector<104x128xf32>
    %64 = arith.maximumf %62, %63 : vector<104x128xf32>
    %65 = arith.truncf %64 : vector<104x128xf32> to vector<104x128xbf16>
    %c0_32 = arith.constant 0 : index
    %c0_33 = arith.constant 0 : index
    %66 = vector.load %arg7[%c0_32, %c0_33] : memref<128x128xbf16, #tpu.memory_space<vmem>>, vector<128x128xbf16>
    %cst_34 = arith.constant dense<0.000000e+00> : vector<104x128xf32>
    %67 = tpu.matmul %65, %66, %cst_34 {dimension_numbers = #tpu.dot_dimension_numbers<[1], [0], [0], [1], [0, 0, 1, 1], [], []>} : vector<104x128xbf16>, vector<128x128xbf16>, vector<104x128xf32> -> vector<104x128xf32>
    %c0_35 = arith.constant 0 : index
    %c0_36 = arith.constant 0 : index
    %68 = vector.load %arg8[%c0_35, %c0_36] : memref<1x128xf32, #tpu.memory_space<vmem>>, vector<1x128xf32>
    %69 = vector.broadcast %68 : vector<1x128xf32> to vector<104x128xf32>
    %70 = arith.addf %67, %69 : vector<104x128xf32>
    %71 = arith.extf %14 : vector<104x128xbf16> to vector<104x128xf32>
    %72 = arith.addf %70, %71 : vector<104x128xf32>
    %cst_37 = arith.constant 0.000000e+00 : f32
    %73 = vector.broadcast %cst_37 : f32 to vector<104x128xf32>
    %74 = arith.maximumf %72, %73 : vector<104x128xf32>
    %75 = vector.shape_cast %74 : vector<104x128xf32> to vector<1x104x128xf32>
    %76 = arith.truncf %75 : vector<1x104x128xf32> to vector<1x104x128xbf16>
    %c0_38 = arith.constant 0 : index
    %c0_39 = arith.constant 0 : index
    %c0_40 = arith.constant 0 : index
    %77 = vector.load %arg9[%c0_38, %c0_39, %c0_40] : memref<1x104x128xbf16, #tpu.memory_space<vmem>>, vector<1x104x128xbf16>
    tpu.vector_store %arg9[%c0_38, %c0_39, %c0_40], %76 {strides = array<i32>} : memref<1x104x128xbf16, #tpu.memory_space<vmem>>, vector<1x104x128xbf16>,
    return
  }
  func.func @transform_0(%arg0: i32) -> (i32, i32, i32) {
    %c0_i32 = arith.constant 0 : i32
    %c0_i32_0 = arith.constant 0 : i32
    %c0_i32_1 = arith.constant 0 : i32
    return %arg0, %c0_i32, %c0_i32_0 : i32, i32, i32
  }
  func.func @transform_1(%arg0: i32) -> (i32, i32) {
    %c0_i32 = arith.constant 0 : i32
    %c0_i32_0 = arith.constant 0 : i32
    %c0_i32_1 = arith.constant 0 : i32
    return %c0_i32, %c0_i32_0 : i32, i32
  }
  func.func @transform_2(%arg0: i32) -> (i32, i32) {
    %c0_i32 = arith.constant 0 : i32
    %c0_i32_0 = arith.constant 0 : i32
    %c0_i32_1 = arith.constant 0 : i32
    return %c0_i32, %c0_i32_0 : i32, i32
  }
  func.func @transform_3(%arg0: i32) -> (i32, i32) {
    %c0_i32 = arith.constant 0 : i32
    %c0_i32_0 = arith.constant 0 : i32
    %c0_i32_1 = arith.constant 0 : i32
    return %c0_i32, %c0_i32_0 : i32, i32
  }
  func.func @transform_4(%arg0: i32) -> (i32, i32) {
    %c0_i32 = arith.constant 0 : i32
    %c0_i32_0 = arith.constant 0 : i32
    %c0_i32_1 = arith.constant 0 : i32
    return %c0_i32, %c0_i32_0 : i32, i32
  }
  func.func @transform_5(%arg0: i32) -> (i32, i32) {
    %c0_i32 = arith.constant 0 : i32
    %c0_i32_0 = arith.constant 0 : i32
    %c0_i32_1 = arith.constant 0 : i32
    return %c0_i32, %c0_i32_0 : i32, i32
  }
  func.func @transform_6(%arg0: i32) -> (i32, i32) {
    %c0_i32 = arith.constant 0 : i32
    %c0_i32_0 = arith.constant 0 : i32
    %c0_i32_1 = arith.constant 0 : i32
    return %c0_i32, %c0_i32_0 : i32, i32
  }
  func.func @transform_7(%arg0: i32) -> (i32, i32) {
    %c0_i32 = arith.constant 0 : i32
    %c0_i32_0 = arith.constant 0 : i32
    %c0_i32_1 = arith.constant 0 : i32
    return %c0_i32, %c0_i32_0 : i32, i32
  }
  func.func @transform_8(%arg0: i32) -> (i32, i32, i32) {
    %c0_i32 = arith.constant 0 : i32
    %c0_i32_0 = arith.constant 0 : i32
    %c0_i32_1 = arith.constant 0 : i32
    return %arg0, %c0_i32, %c0_i32_0 : i32, i32, i32
  }
}

</mosaic_0001>

<llo_original>
// kernel: tpu_custom_call.1
$region0: #{tpu_custom_call.1}
  #allocation0 [shape = 'u32[]', space=smem, size = 0x4, offset = 0x4, fixed_abs, tag = 'smem constant byte address 0x4 - core index']
  #allocation1 [shape = 'u32[144,128]{1,0:T(1,128)}', space=vmem, size = 0x12000, scoped, tag = 'internal scratch']
  %s0 = inlined_call_operand.vmem [shape: bf16[2,104,128], index: 0, kind: input, shape index: {}]
  %s1 = inlined_call_operand.vmem [shape: f32[104,1], index: 1, kind: input, shape index: {}]
  %s2 = inlined_call_operand.hbm [shape: bf16[128,256], index: 2, kind: input, shape index: {}]
  %s3 = inlined_call_operand.vmem [shape: f32[1,256], index: 3, kind: input, shape index: {}]
  %s4 = inlined_call_operand.hbm [shape: bf16[1152,128], index: 4, kind: input, shape index: {}]
  %s5 = inlined_call_operand.vmem [shape: f32[1,128], index: 5, kind: input, shape index: {}]
  %s6 = inlined_call_operand.hbm [shape: bf16[128,128], index: 6, kind: input, shape index: {}]
  %s7 = inlined_call_operand.vmem [shape: f32[1,128], index: 7, kind: input, shape index: {}]
  %s8 = inlined_call_operand.hbm [shape: bf16[2,104,128], index: 8, kind: output, shape index: {}]
  %s9 = sld [smem:[#allocation0]]
  $region77: #{tpu_custom_call.1} parent=0
    _
  %s11 = ssub.s32 1, %s9
  %s12 = scalar_select 0, %s11, %s9
  $region1: #{tpu_custom_call.1} parent=0
    #allocation2 [shape = 'u8[65536]{0}', space=vmem, size = 0x10000, scoped, tag = 'input window, operand 2, single buffered']
    #allocation3 [shape = 's32[2]{0}', space=sflag, size = 0x8, scoped, tag = 'scoped memory for tpu_custom_call.1']
    #allocation4 [shape = 's32[2]{0}', space=sflag, size = 0x8, scoped, tag = 'scoped memory for tpu_custom_call.1']
    #allocation5 [shape = 'u8[294912]{0}', space=vmem, size = 0x48000, scoped, tag = 'input window, operand 4, single buffered']
    #allocation6 [shape = 's32[1]{0}', space=sflag, size = 0x4, scoped, tag = 'scoped memory for tpu_custom_call.1']
    #allocation7 [shape = 'u8[32768]{0}', space=vmem, size = 0x8000, scoped, tag = 'input window, operand 6, single buffered']
    #allocation8 [shape = 'u8[53248]{0}', space=vmem, size = 0xd000, scoped, tag = 'output window, operand 0']
    %13 = vsyncpa [#allocation3], 0
    %14 = vsyncpa [#allocation6], 0
    %15 = vsyncpa [#allocation4], 0
    %s16 = scalar_lea.sflag [#allocation4], 1
    %17 = vsyncpa %s16, 0
    loop: start=0, step=1, limit=4
    $region2: #{tpu_custom_call.1} parent=1 // loop_pre_header
      _
    $region3: #{tpu_custom_call.1} parent=1 // loop_header
      %s19 = sphi 0, %s23
      %p20 = scmp.ge.s32.totalorder %s19, 4
      %s29 = sphi 0, %s31
      %s32 = sphi 0, %s29
      %s33 = sphi 0, %s32
      %s49 = sphi 0, %s33
      %s53 = sphi 0, %s53
      %s55 = sphi 0, %s53
      %s56 = sphi 0, %s55
      %s70 = sphi 0, %s56
      %s74 = sphi 0, %s74
      %s76 = sphi 0, %s74
      %s77 = sphi 0, %s76
      %s91 = sphi 0, %s77
      %s95 = sphi 0, %s95
      %s97 = sphi 0, %s95
      %s98 = sphi 0, %s97
      %s112 = sphi 0, %s98
      %s116 = sphi 0, %s116
      %s118 = sphi 0, %s116
      %s119 = sphi 0, %s118
      %s133 = sphi 0, %s119
      %s137 = sphi 0, %s137
      %s139 = sphi 0, %s137
      %s140 = sphi 0, %s139
      %s154 = sphi 0, %s140
      %s158 = sphi 0, %s158
      %s160 = sphi 0, %s158
      %s161 = sphi 0, %s160
      %s175 = sphi 0, %s161
      %s179 = sphi 0, %s179
      %s181 = sphi 0, %s179
      %s182 = sphi 0, %s181
      %s196 = sphi 0, %s182
      %s202 = sphi 0, %s204
      %s205 = sphi 0, %s202
      %s206 = sphi 0, %s205
      %s222 = sphi 0, %s206
    $region4: #{tpu_custom_call.1} parent=1 // loop_header_branch
      %22 = sbr.rel (%p20) target = $region8
    $region5: #{tpu_custom_call.1} parent=1 // loop_body
      %s24 = ssub.s32 %s19, 1
      %s25 = ssub.s32 %s19, 2
      %s26 = sadd.s32 %s19, 1
      %s27 = ssub.s32 %s19, %s26
      %p28 = scmp.eq.s32.totalorder %s27, 0
      %s30 = sadd.s32 %s29, 1
      %s31 = scalar_select %p28, %s29, %s30
      %p34 = pneg %p28
      %p35 = scmp.eq.s32.totalorder %s19, 1
      %p36 = por %p34, %p35
      %p37 = scmp.ne.s32.totalorder %s29, %s32
      %p38 = scmp.eq.s32.totalorder %s19, 0
      %p39 = por %p37, %p38
      %p40 = scmp.ne.s32.totalorder %s29, %s32
      %p41 = scmp.eq.s32.totalorder %s24, 1
      %p42 = por %p40, %p41
      %p43 = scmp.ne.s32.totalorder %s32, %s33
      %p44 = scmp.eq.s32.totalorder %s24, 0
      %p45 = por %p43, %p44
      %p46 = scmp.ne.s32.totalorder %s32, %s33
      %p47 = scmp.eq.s32.totalorder %s25, 1
      %p48 = por %p46, %p47
      %p50 = scmp.ne.s32.totalorder %s33, %s49
      %p51 = scmp.eq.s32.totalorder %s25, 0
      %p52 = por %p50, %p51
      %s54 = sadd.s32 %s53, 1
      %p57 = scmp.eq.s32.totalorder %s19, 1
      %p58 = scmp.ne.s32.totalorder %s53, %s55
      %p59 = scmp.eq.s32.totalorder %s19, 0
      %p60 = por %p58, %p59
      %p61 = scmp.ne.s32.totalorder %s53, %s55
      %p62 = scmp.eq.s32.totalorder %s24, 1
      %p63 = por %p61, %p62
      %p64 = scmp.ne.s32.totalorder %s55, %s56
      %p65 = scmp.eq.s32.totalorder %s24, 0
      %p66 = por %p64, %p65
      %p67 = scmp.ne.s32.totalorder %s55, %s56
      %p68 = scmp.eq.s32.totalorder %s25, 1
      %p69 = por %p67, %p68
      %p71 = scmp.ne.s32.totalorder %s56, %s70
      %p72 = scmp.eq.s32.totalorder %s25, 0
      %p73 = por %p71, %p72
      %s75 = sadd.s32 %s74, 1
      %p78 = scmp.eq.s32.totalorder %s19, 1
      %p79 = scmp.ne.s32.totalorder %s74, %s76
      %p80 = scmp.eq.s32.totalorder %s19, 0
      %p81 = por %p79, %p80
      %p82 = scmp.ne.s32.totalorder %s74, %s76
      %p83 = scmp.eq.s32.totalorder %s24, 1
      %p84 = por %p82, %p83
      %p85 = scmp.ne.s32.totalorder %s76, %s77
      %p86 = scmp.eq.s32.totalorder %s24, 0
      %p87 = por %p85, %p86
      %p88 = scmp.ne.s32.totalorder %s76, %s77
      %p89 = scmp.eq.s32.totalorder %s25, 1
      %p90 = por %p88, %p89
      %p92 = scmp.ne.s32.totalorder %s77, %s91
      %p93 = scmp.eq.s32.totalorder %s25, 0
      %p94 = por %p92, %p93
      %s96 = sadd.s32 %s95, 1
      %p99 = scmp.eq.s32.totalorder %s19, 1
      %p100 = scmp.ne.s32.totalorder %s95, %s97
      %p101 = scmp.eq.s32.totalorder %s19, 0
      %p102 = por %p100, %p101
      %p103 = scmp.ne.s32.totalorder %s95, %s97
      %p104 = scmp.eq.s32.totalorder %s24, 1
      %p105 = por %p103, %p104
      %p106 = scmp.ne.s32.totalorder %s97, %s98
      %p107 = scmp.eq.s32.totalorder %s24, 0
      %p108 = por %p106, %p107
      %p109 = scmp.ne.s32.totalorder %s97, %s98
      %p110 = scmp.eq.s32.totalorder %s25, 1
      %p111 = por %p109, %p110
      %p113 = scmp.ne.s32.totalorder %s98, %s112
      %p114 = scmp.eq.s32.totalorder %s25, 0
      %p115 = por %p113, %p114
      %s117 = sadd.s32 %s116, 1
      %p120 = scmp.eq.s32.totalorder %s19, 1
      %p121 = scmp.ne.s32.totalorder %s116, %s118
      %p122 = scmp.eq.s32.totalorder %s19, 0
      %p123 = por %p121, %p122
      %p124 = scmp.ne.s32.totalorder %s116, %s118
      %p125 = scmp.eq.s32.totalorder %s24, 1
      %p126 = por %p124, %p125
      %p127 = scmp.ne.s32.totalorder %s118, %s119
      %p128 = scmp.eq.s32.totalorder %s24, 0
      %p129 = por %p127, %p128
      %p130 = scmp.ne.s32.totalorder %s118, %s119
      %p131 = scmp.eq.s32.totalorder %s25, 1
      %p132 = por %p130, %p131
      %p134 = scmp.ne.s32.totalorder %s119, %s133
      %p135 = scmp.eq.s32.totalorder %s25, 0
      %p136 = por %p134, %p135
      %s138 = sadd.s32 %s137, 1
      %p141 = scmp.eq.s32.totalorder %s19, 1
      %p142 = scmp.ne.s32.totalorder %s137, %s139
      %p143 = scmp.eq.s32.totalorder %s19, 0
      %p144 = por %p142, %p143
      %p145 = scmp.ne.s32.totalorder %s137, %s139
      %p146 = scmp.eq.s32.totalorder %s24, 1
      %p147 = por %p145, %p146
      %p148 = scmp.ne.s32.totalorder %s139, %s140
      %p149 = scmp.eq.s32.totalorder %s24, 0
      %p150 = por %p148, %p149
      %p151 = scmp.ne.s32.totalorder %s139, %s140
      %p152 = scmp.eq.s32.totalorder %s25, 1
      %p153 = por %p151, %p152
      %p155 = scmp.ne.s32.totalorder %s140, %s154
      %p156 = scmp.eq.s32.totalorder %s25, 0
      %p157 = por %p155, %p156
      %s159 = sadd.s32 %s158, 1
      %p162 = scmp.eq.s32.totalorder %s19, 1
      %p163 = scmp.ne.s32.totalorder %s158, %s160
      %p164 = scmp.eq.s32.totalorder %s19, 0
      %p165 = por %p163, %p164
      %p166 = scmp.ne.s32.totalorder %s158, %s160
      %p167 = scmp.eq.s32.totalorder %s24, 1
      %p168 = por %p166, %p167
      %p169 = scmp.ne.s32.totalorder %s160, %s161
      %p170 = scmp.eq.s32.totalorder %s24, 0
      %p171 = por %p169, %p170
      %p172 = scmp.ne.s32.totalorder %s160, %s161
      %p173 = scmp.eq.s32.totalorder %s25, 1
      %p174 = por %p172, %p173
      %p176 = scmp.ne.s32.totalorder %s161, %s175
      %p177 = scmp.eq.s32.totalorder %s25, 0
      %p178 = por %p176, %p177
      %s180 = sadd.s32 %s179, 1
      %p183 = scmp.eq.s32.totalorder %s19, 1
      %p184 = scmp.ne.s32.totalorder %s179, %s181
      %p185 = scmp.eq.s32.totalorder %s19, 0
      %p186 = por %p184, %p185
      %p187 = scmp.ne.s32.totalorder %s179, %s181
      %p188 = scmp.eq.s32.totalorder %s24, 1
      %p189 = por %p187, %p188
      %p190 = scmp.ne.s32.totalorder %s181, %s182
      %p191 = scmp.eq.s32.totalorder %s24, 0
      %p192 = por %p190, %p191
      %p193 = scmp.ne.s32.totalorder %s181, %s182
      %p194 = scmp.eq.s32.totalorder %s25, 1
      %p195 = por %p193, %p194
      %p197 = scmp.ne.s32.totalorder %s182, %s196
      %p198 = scmp.eq.s32.totalorder %s25, 0
      %p199 = por %p197, %p198
      %s200 = ssub.s32 %s19, %s26
      %p201 = scmp.eq.s32.totalorder %s200, 0
      %s203 = sadd.s32 %s202, 1
      %s204 = scalar_select %p201, %s202, %s203
      %p207 = pneg %p201
      %p208 = scmp.eq.s32.totalorder %s19, 1
      %p209 = por %p207, %p208
      %p210 = scmp.ne.s32.totalorder %s202, %s205
      %p211 = scmp.eq.s32.totalorder %s19, 0
      %p212 = por %p210, %p211
      %p213 = scmp.ne.s32.totalorder %s202, %s205
      %p214 = scmp.eq.s32.totalorder %s24, 1
      %p215 = por %p213, %p214
      %p216 = scmp.ne.s32.totalorder %s205, %s206
      %p217 = scmp.eq.s32.totalorder %s24, 0
      %p218 = por %p216, %p217
      %p219 = scmp.ne.s32.totalorder %s205, %s206
      %p220 = scmp.eq.s32.totalorder %s25, 1
      %p221 = por %p219, %p220
      %p223 = scmp.ne.s32.totalorder %s206, %s222
      %p224 = scmp.eq.s32.totalorder %s25, 0
      %p225 = por %p223, %p224
      %p226 = scmp.le.s32.totalorder 1, %s19
      %p227 = scmp.lt.s32.totalorder %s19, 3
      %p228 = pnand %p226, %p227
      %p229 = pneg %p228
      // Predicated region
      $region9: #{tpu_custom_call.1} parent=5 // pred_check
        _
      $region10: #{tpu_custom_call.1} parent=5 // pred_check_branch
        %231 = sbr.rel (%p228) target = $region12
      $region11: #{tpu_custom_call.1} parent=5 // pred_region
        %s232 = ssub.s32 %s19, 1
        // Predicated region
        $region13: #{tpu_custom_call.1} parent=11 // pred_check
          %p233 = pneg %p66
        $region14: #{tpu_custom_call.1} parent=11 // pred_check_branch
          %235 = sbr.rel (%p233) target = $region16
        $region15: #{tpu_custom_call.1} parent=11 // pred_region
          _
        $region16: #{tpu_custom_call.1} parent=11 // pred_fallthru
          _
        // Predicated region
        $region17: #{tpu_custom_call.1} parent=11 // pred_check
          %p236 = pneg %p87
        $region18: #{tpu_custom_call.1} parent=11 // pred_check_branch
          %238 = sbr.rel (%p236) target = $region20
        $region19: #{tpu_custom_call.1} parent=11 // pred_region
          %s240 = ssub.s32 2048, 2048
          %241 = vsyncadd [#allocation3], %s240
          %s242 = sshll.u32 [#allocation2], 4
          %s243 = int_to_ptr.vmem [resolvable:$true] %s242
          %248 = dma.hbm_to_vmem [thread:$0]  %s2, 2048, %s243, [#allocation3], 128, 128, 8
        $region20: #{tpu_custom_call.1} parent=11 // pred_fallthru
          _
        // Predicated region
        $region21: #{tpu_custom_call.1} parent=11 // pred_check
          %p249 = pneg %p108
        $region22: #{tpu_custom_call.1} parent=11 // pred_check_branch
          %251 = sbr.rel (%p249) target = $region24
        $region23: #{tpu_custom_call.1} parent=11 // pred_region
          _
        $region24: #{tpu_custom_call.1} parent=11 // pred_fallthru
          _
        // Predicated region
        $region25: #{tpu_custom_call.1} parent=11 // pred_check
          %p252 = pneg %p129
        $region26: #{tpu_custom_call.1} parent=11 // pred_check_branch
          %254 = sbr.rel (%p252) target = $region28
        $region27: #{tpu_custom_call.1} parent=11 // pred_region
          %s256 = ssub.s32 9216, 9216
          %257 = vsyncadd [#allocation6], %s256
          %s258 = sshll.u32 [#allocation5], 4
          %s259 = int_to_ptr.vmem [resolvable:$true] %s258
          %264 = dma.hbm_to_vmem [thread:$0]  %s4, 9216, %s259, [#allocation6], 64, 64, 4
        $region28: #{tpu_custom_call.1} parent=11 // pred_fallthru
          _
        // Predicated region
        $region29: #{tpu_custom_call.1} parent=11 // pred_check
          %p265 = pneg %p150
        $region30: #{tpu_custom_call.1} parent=11 // pred_check_branch
          %267 = sbr.rel (%p265) target = $region32
        $region31: #{tpu_custom_call.1} parent=11 // pred_region
          _
        $region32: #{tpu_custom_call.1} parent=11 // pred_fallthru
          _
        // Predicated region
        $region33: #{tpu_custom_call.1} parent=11 // pred_check
          %p268 = pneg %p171
        $region34: #{tpu_custom_call.1} parent=11 // pred_check_branch
          %270 = sbr.rel (%p268) target = $region36
        $region35: #{tpu_custom_call.1} parent=11 // pred_region
          %s272 = ssub.s32 1024, 1024
          %273 = vsyncadd [#allocation6], %s272
          %s274 = sshll.u32 [#allocation7], 4
          %s275 = int_to_ptr.vmem [resolvable:$true] %s274
          %280 = dma.hbm_to_vmem [thread:$0]  %s6, 1024, %s275, [#allocation6], 64, 64, 4
        $region36: #{tpu_custom_call.1} parent=11 // pred_fallthru
          _
        // Predicated region
        $region37: #{tpu_custom_call.1} parent=11 // pred_check
          %p281 = pneg %p192
        $region38: #{tpu_custom_call.1} parent=11 // pred_check_branch
          %283 = sbr.rel (%p281) target = $region40
        $region39: #{tpu_custom_call.1} parent=11 // pred_region
          _
        $region40: #{tpu_custom_call.1} parent=11 // pred_fallthru
          _
      $region12: #{tpu_custom_call.1} parent=5 // pred_fallthru
        _
      %p284 = scmp.lt.s32.totalorder %s19, 2
      // Predicated region
      $region41: #{tpu_custom_call.1} parent=5 // pred_check
        %p285 = pneg %p284
      $region42: #{tpu_custom_call.1} parent=5 // pred_check_branch
        %287 = sbr.rel (%p285) target = $region44
      $region43: #{tpu_custom_call.1} parent=5 // pred_region
        // Predicated region
        $region45: #{tpu_custom_call.1} parent=43 // pred_check
          %p288 = pneg %p39
        $region46: #{tpu_custom_call.1} parent=43 // pred_check_branch
          %290 = sbr.rel (%p288) target = $region48
        $region47: #{tpu_custom_call.1} parent=43 // pred_region
          %p291 = scmp.lt.s32.totalorder %s19, 1
          %s292 = scalar_select %p291, %s19, 1
          %s293 = smul.addr %s292, 13
          %s294 = smul.addr %s293, 4
          %s295 = scalar_lea.vmem %s0, %s294
        $region48: #{tpu_custom_call.1} parent=43 // pred_fallthru
          _
      $region44: #{tpu_custom_call.1} parent=5 // pred_fallthru
        _
      %p296 = scmp.le.s32.totalorder 1, %s19
      %p297 = scmp.lt.s32.totalorder %s19, 3
      %p298 = pnand %p296, %p297
      %p299 = pneg %p298
      // Predicated region
      $region49: #{tpu_custom_call.1} parent=5 // pred_check
        _
      $region50: #{tpu_custom_call.1} parent=5 // pred_check_branch
        %301 = sbr.rel (%p298) target = $region52
      $region51: #{tpu_custom_call.1} parent=5 // pred_region
        %s302 = ssub.s32 %s19, 1
        // Predicated region
        $region53: #{tpu_custom_call.1} parent=51 // pred_check
          %p303 = pneg %p87
        $region54: #{tpu_custom_call.1} parent=51 // pred_check_branch
          %305 = sbr.rel (%p303) target = $region56
        $region55: #{tpu_custom_call.1} parent=51 // pred_region
          %306 = dma.done [#allocation3], 2048
        $region56: #{tpu_custom_call.1} parent=51 // pred_fallthru
          _
        // Predicated region
        $region57: #{tpu_custom_call.1} parent=51 // pred_check
          %p307 = pneg %p129
        $region58: #{tpu_custom_call.1} parent=51 // pred_check_branch
          %309 = sbr.rel (%p307) target = $region60
        $region59: #{tpu_custom_call.1} parent=51 // pred_region
          %310 = dma.done [#allocation6], 9216
        $region60: #{tpu_custom_call.1} parent=51 // pred_fallthru
          _
        // Predicated region
        $region61: #{tpu_custom_call.1} parent=51 // pred_check
          %p311 = pneg %p171
        $region62: #{tpu_custom_call.1} parent=51 // pred_check_branch
          %313 = sbr.rel (%p311) target = $region64
        $region63: #{tpu_custom_call.1} parent=51 // pred_region
          %314 = dma.done [#allocation6], 1024
        $region64: #{tpu_custom_call.1} parent=51 // pred_fallthru
          _
        %p315 = scmp.lt.s32.totalorder %s24, 1
        %s316 = scalar_select %p315, %s24, 1
        %s317 = smul.addr %s316, 13
        %s318 = smul.addr %s317, 4
        %s319 = scalar_lea.vmem %s0, %s318
        %p320 = pneg %p45
        %p321 = pneg %p42
        %p322 = pneg %p66
        %p323 = pneg %p63
        %p324 = pneg %p87
        %p325 = pneg %p84
        %p326 = pneg %p108
        %p327 = pneg %p105
        %p328 = pneg %p129
        %p329 = pneg %p126
        %p330 = pneg %p150
        %p331 = pneg %p147
        %p332 = pneg %p171
        %p333 = pneg %p168
        %p334 = pneg %p192
        %p335 = pneg %p189
        %p336 = pneg %p218
        %p337 = pneg %p215
        %s338 = sand.u32 %s205, 1
        %s339 = scalar_lea.sflag [#allocation4], %s338
        %s340 = sand.u32 %s205, 1
        %s341 = smul.addr %s340, 52
        %s342 = scalar_lea.vmem [#allocation8], %s341
        %p343 = scmp.lt.s32.totalorder %s24, 1
        %s344 = scalar_select %p343, %s24, 1
        %s345 = smul.addr %s344, 13
        %s346 = smul.addr %s345, 4
        %s347 = scalar_lea.vmem %s0, %s346
        %v349 = vld [vmem:[%s347] sm:$0xf]
        %v350 = vld [vmem:[%s347 + $0x4] sm:$0xf]
        %v351 = vld [vmem:[%s347 + $0x8] sm:$0xf]
        %v352 = vld [vmem:[%s347 + $0xc] sm:$0xf]
        %v353 = vld [vmem:[%s347 + $0x10] sm:$0xf]
        %v354 = vld [vmem:[%s347 + $0x14] sm:$0xf]
        %v355 = vld [vmem:[%s347 + $0x18] sm:$0xf]
        %v356 = vld [vmem:[%s347 + $0x1c] sm:$0xf]
        %v357 = vld [vmem:[%s347 + $0x20] sm:$0xf]
        %v358 = vld [vmem:[%s347 + $0x24] sm:$0xf]
        %v359 = vld [vmem:[%s347 + $0x28] sm:$0xf]
        %v360 = vld [vmem:[%s347 + $0x2c] sm:$0xf]
        %v361 = vld [vmem:[%s347 + $0x30] sm:$0xf]
        %v362 = vld [vmem:[#allocation2] sm:$0xff]
        %v363 = vld [vmem:[#allocation2 + $0x8] sm:$0xff]
        %v364 = vld [vmem:[#allocation2 + $0x10] sm:$0xff]
        %v365 = vld [vmem:[#allocation2 + $0x18] sm:$0xff]
        %v366 = vld [vmem:[#allocation2 + $0x20] sm:$0xff]
        %v367 = vld [vmem:[#allocation2 + $0x28] sm:$0xff]
        %v368 = vld [vmem:[#allocation2 + $0x30] sm:$0xff]
        %v369 = vld [vmem:[#allocation2 + $0x38] sm:$0xff]
        %v370 = vld [vmem:[#allocation2 + $0x40] sm:$0xff]
        %v371 = vld [vmem:[#allocation2 + $0x48] sm:$0xff]
        %v372 = vld [vmem:[#allocation2 + $0x50] sm:$0xff]
        %v373 = vld [vmem:[#allocation2 + $0x58] sm:$0xff]
        %v374 = vld [vmem:[#allocation2 + $0x60] sm:$0xff]
        %v375 = vld [vmem:[#allocation2 + $0x68] sm:$0xff]
        %v376 = vld [vmem:[#allocation2 + $0x70] sm:$0xff]
        %v377 = vld [vmem:[#allocation2 + $0x78] sm:$0xff]
        %v378 = vld [vmem:[%s3] sm:$0x3]
        %v380 = vlaneseq
        %v381 = vshrl.u32 %v380, 7
        %v382 = vsub.s32 0, %v381
        %v383 = vrot.slane %v378, %v382
        %v384 = vlaneseq
        %v385 = vshrl.u32 %v384, 7
        %v386 = vsub.s32 1, %v385
        %v387 = vrot.slane %v378, %v386
        %v403 = vunpack.c.l.b16 %v349
        %v404 = vunpack.c.l.b16 %v350
        %v405 = vunpack.c.l.b16 %v351
        %v406 = vunpack.c.l.b16 %v352
        %v407 = vunpack.c.l.b16 %v353
        %v408 = vunpack.c.l.b16 %v354
        %v409 = vunpack.c.l.b16 %v355
        %v410 = vunpack.c.l.b16 %v356
        %v411 = vunpack.c.l.b16 %v357
        %v412 = vunpack.c.l.b16 %v358
        %v413 = vunpack.c.l.b16 %v359
        %v414 = vunpack.c.l.b16 %v360
        %v415 = vunpack.c.l.b16 %v361
        %v416 = vpack.c.b16 %v404, %v403
        %v417 = vpack.c.b16 %v406, %v405
        %v418 = vpack.c.b16 %v408, %v407
        %v419 = vpack.c.b16 %v410, %v409
        %v420 = vpack.c.b16 %v412, %v411
        %v421 = vpack.c.b16 %v414, %v413
        %v422 = vpack.c.b16 %v415, %v415
        %v446 = vunpack.c.l.b16 %v362
        %v447 = vunpack.c.h.b16 %v362
        %v448 = vunpack.c.l.b16 %v363
        %v449 = vunpack.c.h.b16 %v363
        %v450 = vunpack.c.l.b16 %v364
        %v451 = vunpack.c.h.b16 %v364
        %v452 = vunpack.c.l.b16 %v365
        %v453 = vunpack.c.h.b16 %v365
        %v454 = vunpack.c.l.b16 %v366
        %v455 = vunpack.c.h.b16 %v366
        %v456 = vunpack.c.l.b16 %v367
        %v457 = vunpack.c.h.b16 %v367
        %v458 = vunpack.c.l.b16 %v368
        %v459 = vunpack.c.h.b16 %v368
        %v460 = vunpack.c.l.b16 %v369
        %v461 = vunpack.c.h.b16 %v369
        %v462 = vunpack.c.l.b16 %v370
        %v463 = vunpack.c.h.b16 %v370
        %v464 = vunpack.c.l.b16 %v371
        %v465 = vunpack.c.h.b16 %v371
        %v466 = vunpack.c.l.b16 %v372
        %v467 = vunpack.c.h.b16 %v372
        %v468 = vunpack.c.l.b16 %v373
        %v469 = vunpack.c.h.b16 %v373
        %v470 = vunpack.c.l.b16 %v374
        %v471 = vunpack.c.h.b16 %v374
        %v472 = vunpack.c.l.b16 %v375
        %v473 = vunpack.c.h.b16 %v375
        %v474 = vunpack.c.l.b16 %v376
        %v475 = vunpack.c.h.b16 %v376
        %v476 = vunpack.c.l.b16 %v377
        %v477 = vunpack.c.h.b16 %v377
        %v478 = vpack.c.b16 %v448, %v446
        %v479 = vpack.c.b16 %v449, %v447
        %v480 = vpack.c.b16 %v452, %v450
        %v481 = vpack.c.b16 %v453, %v451
        %v482 = vpack.c.b16 %v456, %v454
        %v483 = vpack.c.b16 %v457, %v455
        %v484 = vpack.c.b16 %v460, %v458
        %v485 = vpack.c.b16 %v461, %v459
        %v486 = vpack.c.b16 %v464, %v462
        %v487 = vpack.c.b16 %v465, %v463
        %v488 = vpack.c.b16 %v468, %v466
        %v489 = vpack.c.b16 %v469, %v467
        %v490 = vpack.c.b16 %v472, %v470
        %v491 = vpack.c.b16 %v473, %v471
        %v492 = vpack.c.b16 %v476, %v474
        %v493 = vpack.c.b16 %v477, %v475
        %510 = vmatprep.subr.bf16.mxu0 %v479
        %511 = vmatpush1.bf16.msra.mxu0 %v478
        %512 = vmatprep.subr.bf16.mxu0 %v481
        %513 = vmatpush1.bf16.msra.mxu0 %v480
        %514 = vmatprep.subr.bf16.mxu0 %v483
        %515 = vmatpush1.bf16.msra.mxu0 %v482
        %516 = vmatprep.subr.bf16.mxu0 %v485
        %517 = vmatpush1.bf16.msra.mxu0 %v484
        %518 = vmatprep.subr.bf16.mxu0 %v487
        %519 = vmatpush1.bf16.msra.mxu0 %v486
        %520 = vmatprep.subr.bf16.mxu0 %v489
        %521 = vmatpush1.bf16.msra.mxu0 %v488
        %522 = vmatprep.subr.bf16.mxu0 %v491
        %523 = vmatpush1.bf16.msra.mxu0 %v490
        %524 = vmatprep.subr.bf16.mxu0 %v493
        %525 = vmatpush1.bf16.msra.mxu0 %v492
        %526 = vmatprep.subr.bf16.mxu0 0
        %527 = vmatpush1.bf16.msra.mxu0 0
        %528 = vmatprep.subr.bf16.mxu0 0
        %529 = vmatpush1.bf16.msra.mxu0 0
        %530 = vmatprep.subr.bf16.mxu0 0
        %531 = vmatpush1.bf16.msra.mxu0 0
        %532 = vmatprep.subr.bf16.mxu0 0
        %533 = vmatpush1.bf16.msra.mxu0 0
        %534 = vmatprep.subr.bf16.mxu0 0
        %535 = vmatpush1.bf16.msra.mxu0 0
        %536 = vmatprep.subr.bf16.mxu0 0
        %537 = vmatpush1.bf16.msra.mxu0 0
        %538 = vmatprep.subr.bf16.mxu0 0
        %539 = vmatpush1.bf16.msra.mxu0 0
        %540 = vmatprep.subr.bf16.mxu0 0
        %541 = vmatpush1.bf16.msra.mxu0 0
        %542 = vmatprep.mubr.bf16.mxu0 0
        %543 = vmatmul.mubr.bf16.gmra.mrb[0].mxu0 %v416
        %v544 = vpop.f32.mrb[0].mxu0
        %v545 = vadd.f32 %v383, %v544
        %v546 = vpop.f32.mrb[0].mxu0
        %v547 = vadd.f32 %v387, %v546
        %v548 = vpop.f32.mrb[0].mxu0
        %v549 = vadd.f32 %v383, %v548
        %v550 = vpop.f32.mrb[0].mxu0
        %v551 = vadd.f32 %v387, %v550
        %552 = vmatprep.mubr.bf16.mxu0 0
        %553 = vmatmul.mubr.bf16.gmra.mrb[0].mxu0 %v417
        %v554 = vpop.f32.mrb[0].mxu0
        %v555 = vadd.f32 %v383, %v554
        %v556 = vpop.f32.mrb[0].mxu0
        %v557 = vadd.f32 %v387, %v556
        %v558 = vpop.f32.mrb[0].mxu0
        %v559 = vadd.f32 %v383, %v558
        %v560 = vpop.f32.mrb[0].mxu0
        %v561 = vadd.f32 %v387, %v560
        %562 = vmatprep.mubr.bf16.mxu0 0
        %563 = vmatmul.mubr.bf16.gmra.mrb[0].mxu0 %v418
        %v564 = vpop.f32.mrb[0].mxu0
        %v565 = vadd.f32 %v383, %v564
        %v566 = vpop.f32.mrb[0].mxu0
        %v567 = vadd.f32 %v387, %v566
        %v568 = vpop.f32.mrb[0].mxu0
        %v569 = vadd.f32 %v383, %v568
        %v570 = vpop.f32.mrb[0].mxu0
        %v571 = vadd.f32 %v387, %v570
        %572 = vmatprep.mubr.bf16.mxu0 0
        %573 = vmatmul.mubr.bf16.gmra.mrb[0].mxu0 %v419
        %v574 = vpop.f32.mrb[0].mxu0
        %v575 = vadd.f32 %v383, %v574
        %v576 = vpop.f32.mrb[0].mxu0
        %v577 = vadd.f32 %v387, %v576
        %v578 = vpop.f32.mrb[0].mxu0
        %v579 = vadd.f32 %v383, %v578
        %v580 = vpop.f32.mrb[0].mxu0
        %v581 = vadd.f32 %v387, %v580
        %582 = vmatprep.mubr.bf16.mxu0 0
        %583 = vmatmul.mubr.bf16.gmra.mrb[0].mxu0 %v420
        %v584 = vpop.f32.mrb[0].mxu0
        %v585 = vadd.f32 %v383, %v584
        %v586 = vpop.f32.mrb[0].mxu0
        %v587 = vadd.f32 %v387, %v586
        %v588 = vpop.f32.mrb[0].mxu0
        %v589 = vadd.f32 %v383, %v588
        %v590 = vpop.f32.mrb[0].mxu0
        %v591 = vadd.f32 %v387, %v590
        %592 = vmatprep.mubr.bf16.mxu0 0
        %593 = vmatmul.mubr.bf16.gmra.mrb[0].mxu0 %v421
        %v594 = vpop.f32.mrb[0].mxu0
        %v595 = vadd.f32 %v383, %v594
        %v596 = vpop.f32.mrb[0].mxu0
        %v597 = vadd.f32 %v387, %v596
        %v598 = vpop.f32.mrb[0].mxu0
        %v599 = vadd.f32 %v383, %v598
        %v600 = vpop.f32.mrb[0].mxu0
        %v601 = vadd.f32 %v387, %v600
        %602 = vmatprep.mubr.bf16.mxu0 0
        %603 = vmatmul.mubr.bf16.gmra.mrb[0].mxu0 %v422
        %v604 = vpop.f32.mrb[0].mxu0
        %v605 = vadd.f32 %v383, %v604
        %v606 = vpop.f32.mrb[0].mxu0
        %v607 = vadd.f32 %v387, %v606
        %v608 = vpop.f32.mrb[0].mxu0
        %v609 = vpop.f32.mrb[0].mxu0
        %610 = vdwg.mxu0
        %v611 = vmax.f32 %v545, 0.0
        %v612 = vmax.f32 %v549, 0.0
        %v613 = vmax.f32 %v555, 0.0
        %v614 = vmax.f32 %v559, 0.0
        %v615 = vmax.f32 %v565, 0.0
        %v616 = vmax.f32 %v569, 0.0
        %v617 = vmax.f32 %v575, 0.0
        %v618 = vmax.f32 %v579, 0.0
        %v619 = vmax.f32 %v585, 0.0
        %v620 = vmax.f32 %v589, 0.0
        %v621 = vmax.f32 %v595, 0.0
        %v622 = vmax.f32 %v599, 0.0
        %v623 = vmax.f32 %v605, 0.0
        %v624 = vld [vmem:[%s1] sm:$0xff]
        %v625 = vld [vmem:[%s1 + $0x8] sm:$0xff]
        %v626 = vld [vmem:[%s1 + $0x10] sm:$0xff]
        %v627 = vld [vmem:[%s1 + $0x18] sm:$0xff]
        %v628 = vld [vmem:[%s1 + $0x20] sm:$0xff]
        %v629 = vld [vmem:[%s1 + $0x28] sm:$0xff]
        %v630 = vld [vmem:[%s1 + $0x30] sm:$0xff]
        %v631 = vld [vmem:[%s1 + $0x38] sm:$0xff]
        %v632 = vld [vmem:[%s1 + $0x40] sm:$0xff]
        %v633 = vld [vmem:[%s1 + $0x48] sm:$0xff]
        %v634 = vld [vmem:[%s1 + $0x50] sm:$0xff]
        %v635 = vld [vmem:[%s1 + $0x58] sm:$0xff]
        %v636 = vld [vmem:[%s1 + $0x60] sm:$0xff]
        %638 = vset.pattern.permute.xlu0 0
        %639 = vperm.xlu0 %638, %v624
        %v640 = vpop.permute.xlu0 %639
        %643 = vset.pattern.permute.xlu0 0
        %644 = vperm.xlu0 %643, %v625
        %v645 = vpop.permute.xlu0 %644
        %648 = vset.pattern.permute.xlu0 0
        %649 = vperm.xlu0 %648, %v626
        %v650 = vpop.permute.xlu0 %649
        %653 = vset.pattern.permute.xlu0 0
        %654 = vperm.xlu0 %653, %v627
        %v655 = vpop.permute.xlu0 %654
        %658 = vset.pattern.permute.xlu0 0
        %659 = vperm.xlu0 %658, %v628
        %v660 = vpop.permute.xlu0 %659
        %663 = vset.pattern.permute.xlu0 0
        %664 = vperm.xlu0 %663, %v629
        %v665 = vpop.permute.xlu0 %664
        %668 = vset.pattern.permute.xlu0 0
        %669 = vperm.xlu0 %668, %v630
        %v670 = vpop.permute.xlu0 %669
        %673 = vset.pattern.permute.xlu0 0
        %674 = vperm.xlu0 %673, %v631
        %v675 = vpop.permute.xlu0 %674
        %678 = vset.pattern.permute.xlu0 0
        %679 = vperm.xlu0 %678, %v632
        %v680 = vpop.permute.xlu0 %679
        %683 = vset.pattern.permute.xlu0 0
        %684 = vperm.xlu0 %683, %v633
        %v685 = vpop.permute.xlu0 %684
        %688 = vset.pattern.permute.xlu0 0
        %689 = vperm.xlu0 %688, %v634
        %v690 = vpop.permute.xlu0 %689
        %693 = vset.pattern.permute.xlu0 0
        %694 = vperm.xlu0 %693, %v635
        %v695 = vpop.permute.xlu0 %694
        %698 = vset.pattern.permute.xlu0 0
        %699 = vperm.xlu0 %698, %v636
        %v700 = vpop.permute.xlu0 %699
        %v702 = vmul.f32 %v611, %v640
        %v703 = vmul.f32 %v612, %v645
        %v704 = vmul.f32 %v613, %v650
        %v705 = vmul.f32 %v614, %v655
        %v706 = vmul.f32 %v615, %v660
        %v707 = vmul.f32 %v616, %v665
        %v708 = vmul.f32 %v617, %v670
        %v709 = vmul.f32 %v618, %v675
        %v710 = vmul.f32 %v619, %v680
        %v711 = vmul.f32 %v620, %v685
        %v712 = vmul.f32 %v621, %v690
        %v713 = vmul.f32 %v622, %v695
        %v714 = vmul.f32 %v623, %v700
        %v715 = vpack.c.bf16 %v551, %v547
        %v716 = vpack.c.bf16 %v561, %v557
        %v717 = vpack.c.bf16 %v571, %v567
        %v718 = vpack.c.bf16 %v581, %v577
        %v719 = vpack.c.bf16 %v591, %v587
        %v720 = vpack.c.bf16 %v601, %v597
        %v721 = vpack.c.bf16 %v607, %v607
        %v722 = vrot.slane %v702, 5
        %v723 = vrot.slane %v703, 5
        %v724 = vrot.slane %v704, 5
        %v725 = vrot.slane %v705, 5
        %v726 = vrot.slane %v706, 5
        %v727 = vrot.slane %v707, 5
        %v728 = vrot.slane %v708, 5
        %v729 = vrot.slane %v709, 5
        %v730 = vrot.slane %v710, 5
        %v731 = vrot.slane %v711, 5
        %v732 = vrot.slane %v712, 5
        %v733 = vrot.slane %v713, 5
        %v734 = vrot.slane %v714, 5
        %v735 = vlaneseq
        %v736 = vshrl.u32 %v735, 7
        %vm737 = vcmp.lt.s32.totalorder %v736, 3
        %v738 = vsel %vm737, %v733, %v734
        %v739 = vsel %vm737, %v732, %v733
        %v740 = vsel %vm737, %v731, %v732
        %v741 = vsel %vm737, %v730, %v731
        %v742 = vsel %vm737, %v729, %v730
        %v743 = vsel %vm737, %v728, %v729
        %v744 = vsel %vm737, %v727, %v728
        %v745 = vsel %vm737, %v726, %v727
        %v746 = vsel %vm737, %v725, %v726
        %v747 = vsel %vm737, %v724, %v725
        %v748 = vsel %vm737, %v723, %v724
        %v749 = vsel %vm737, %v722, %v723
        %v750 = vsel %vm737, %v734, %v722
        %v751 = vpack.c.bf16 %v750, %v738
        %v752 = vpack.c.bf16 %v748, %v749
        %v753 = vpack.c.bf16 %v746, %v747
        %v754 = vpack.c.bf16 %v744, %v745
        %v755 = vpack.c.bf16 %v742, %v743
        %v756 = vpack.c.bf16 %v740, %v741
        %v757 = vpack.c.bf16 %v739, %v739
        %v758 = vld [vmem:[#allocation5] sm:$0xf]
        %v759 = vld [vmem:[#allocation5 + $0x4] sm:$0xf]
        %v760 = vld [vmem:[#allocation5 + $0x8] sm:$0xf]
        %v761 = vld [vmem:[#allocation5 + $0xc] sm:$0xf]
        %v762 = vld [vmem:[#allocation5 + $0x10] sm:$0xf]
        %v763 = vld [vmem:[#allocation5 + $0x14] sm:$0xf]
        %v764 = vld [vmem:[#allocation5 + $0x18] sm:$0xf]
        %v765 = vld [vmem:[#allocation5 + $0x1c] sm:$0xf]
        %v766 = vld [vmem:[#allocation5 + $0x20] sm:$0xf]
        %v767 = vld [vmem:[#allocation5 + $0x24] sm:$0xf]
        %v768 = vld [vmem:[#allocation5 + $0x28] sm:$0xf]
        %v769 = vld [vmem:[#allocation5 + $0x2c] sm:$0xf]
        %v770 = vld [vmem:[#allocation5 + $0x30] sm:$0xf]
        %v771 = vld [vmem:[#allocation5 + $0x34] sm:$0xf]
        %v772 = vld [vmem:[#allocation5 + $0x38] sm:$0xf]
        %v773 = vld [vmem:[#allocation5 + $0x3c] sm:$0xf]
        %v774 = vrot.slane %v702, 6
        %v775 = vrot.slane %v703, 6
        %v776 = vrot.slane %v704, 6
        %v777 = vrot.slane %v705, 6
        %v778 = vrot.slane %v706, 6
        %v779 = vrot.slane %v707, 6
        %v780 = vrot.slane %v708, 6
        %v781 = vrot.slane %v709, 6
        %v782 = vrot.slane %v710, 6
        %v783 = vrot.slane %v711, 6
        %v784 = vrot.slane %v712, 6
        %v785 = vrot.slane %v713, 6
        %v786 = vrot.slane %v714, 6
        %vm787 = vcmp.lt.s32.totalorder %v736, 2
        %v788 = vsel %vm787, %v785, %v786
        %v789 = vsel %vm787, %v784, %v785
        %v790 = vsel %vm787, %v783, %v784
        %v791 = vsel %vm787, %v782, %v783
        %v792 = vsel %vm787, %v781, %v782
        %v793 = vsel %vm787, %v780, %v781
        %v794 = vsel %vm787, %v779, %v780
        %v795 = vsel %vm787, %v778, %v779
        %v796 = vsel %vm787, %v777, %v778
        %v797 = vsel %vm787, %v776, %v777
        %v798 = vsel %vm787, %v775, %v776
        %v799 = vsel %vm787, %v774, %v775
        %v800 = vsel %vm787, %v786, %v774
        %v801 = vpack.c.bf16 %v800, %v788
        %v802 = vpack.c.bf16 %v798, %v799
        %v803 = vpack.c.bf16 %v796, %v797
        %v804 = vpack.c.bf16 %v794, %v795
        %v805 = vpack.c.bf16 %v792, %v793
        %v806 = vpack.c.bf16 %v790, %v791
        %v807 = vpack.c.bf16 %v789, %v789
        %v808 = vld [vmem:[#allocation5 + $0x40] sm:$0xf]
        %v809 = vld [vmem:[#allocation5 + $0x44] sm:$0xf]
        %v810 = vld [vmem:[#allocation5 + $0x48] sm:$0xf]
        %v811 = vld [vmem:[#allocation5 + $0x4c] sm:$0xf]
        %v812 = vld [vmem:[#allocation5 + $0x50] sm:$0xf]
        %v813 = vld [vmem:[#allocation5 + $0x54] sm:$0xf]
        %v814 = vld [vmem:[#allocation5 + $0x58] sm:$0xf]
        %v815 = vld [vmem:[#allocation5 + $0x5c] sm:$0xf]
        %v816 = vld [vmem:[#allocation5 + $0x60] sm:$0xf]
        %v817 = vld [vmem:[#allocation5 + $0x64] sm:$0xf]
        %v818 = vld [vmem:[#allocation5 + $0x68] sm:$0xf]
        %v819 = vld [vmem:[#allocation5 + $0x6c] sm:$0xf]
        %v820 = vld [vmem:[#allocation5 + $0x70] sm:$0xf]
        %v821 = vld [vmem:[#allocation5 + $0x74] sm:$0xf]
        %v822 = vld [vmem:[#allocation5 + $0x78] sm:$0xf]
        %v823 = vld [vmem:[#allocation5 + $0x7c] sm:$0xf]
        %v840 = vunpack.c.l.b16 %v808
        %v841 = vunpack.c.l.b16 %v809
        %v842 = vunpack.c.l.b16 %v810
        %v843 = vunpack.c.l.b16 %v811
        %v844 = vunpack.c.l.b16 %v812
        %v845 = vunpack.c.l.b16 %v813
        %v846 = vunpack.c.l.b16 %v814
        %v847 = vunpack.c.l.b16 %v815
        %v848 = vunpack.c.l.b16 %v816
        %v849 = vunpack.c.l.b16 %v817
        %v850 = vunpack.c.l.b16 %v818
        %v851 = vunpack.c.l.b16 %v819
        %v852 = vunpack.c.l.b16 %v820
        %v853 = vunpack.c.l.b16 %v821
        %v854 = vunpack.c.l.b16 %v822
        %v855 = vunpack.c.l.b16 %v823
        %v856 = vpack.c.b16 %v841, %v840
        %v857 = vpack.c.b16 %v843, %v842
        %v858 = vpack.c.b16 %v845, %v844
        %v859 = vpack.c.b16 %v847, %v846
        %v860 = vpack.c.b16 %v849, %v848
        %v861 = vpack.c.b16 %v851, %v850
        %v862 = vpack.c.b16 %v853, %v852
        %v863 = vpack.c.b16 %v855, %v854
        %872 = vmatprep.subr.bf16.mxu0 0
        %873 = vmatpush1.bf16.msra.mxu0 %v856
        %874 = vmatprep.subr.bf16.mxu0 0
        %875 = vmatpush1.bf16.msra.mxu0 %v857
        %876 = vmatprep.subr.bf16.mxu0 0
        %877 = vmatpush1.bf16.msra.mxu0 %v858
        %878 = vmatprep.subr.bf16.mxu0 0
        %879 = vmatpush1.bf16.msra.mxu0 %v859
        %880 = vmatprep.subr.bf16.mxu0 0
        %881 = vmatpush1.bf16.msra.mxu0 %v860
        %882 = vmatprep.subr.bf16.mxu0 0
        %883 = vmatpush1.bf16.msra.mxu0 %v861
        %884 = vmatprep.subr.bf16.mxu0 0
        %885 = vmatpush1.bf16.msra.mxu0 %v862
        %886 = vmatprep.subr.bf16.mxu0 0
        %887 = vmatpush1.bf16.msra.mxu0 %v863
        %888 = vmatprep.subr.bf16.mxu0 0
        %889 = vmatpush1.bf16.msra.mxu0 0
        %890 = vmatprep.subr.bf16.mxu0 0
        %891 = vmatpush1.bf16.msra.mxu0 0
        %892 = vmatprep.subr.bf16.mxu0 0
        %893 = vmatpush1.bf16.msra.mxu0 0
        %894 = vmatprep.subr.bf16.mxu0 0
        %895 = vmatpush1.bf16.msra.mxu0 0
        %896 = vmatprep.subr.bf16.mxu0 0
        %897 = vmatpush1.bf16.msra.mxu0 0
        %898 = vmatprep.subr.bf16.mxu0 0
        %899 = vmatpush1.bf16.msra.mxu0 0
        %900 = vmatprep.subr.bf16.mxu0 0
        %901 = vmatpush1.bf16.msra.mxu0 0
        %902 = vmatprep.subr.bf16.mxu0 0
        %903 = vmatpush1.bf16.msra.mxu0 0
        %904 = vmatprep.mubr.bf16.mxu0 0
        %905 = vmatmul.mubr.bf16.gmra.mrb[0].mxu0 %v801
        %v906 = vpop.f32.mrb[0].mxu0
        %v907 = vadd.f32 0.0, %v906
        %v908 = vpop.f32.mrb[0].mxu0
        %v909 = vpop.f32.mrb[0].mxu0
        %v910 = vadd.f32 0.0, %v909
        %v911 = vpop.f32.mrb[0].mxu0
        %912 = vmatprep.mubr.bf16.mxu0 0
        %913 = vmatmul.mubr.bf16.gmra.mrb[0].mxu0 %v802
        %v914 = vpop.f32.mrb[0].mxu0
        %v915 = vadd.f32 0.0, %v914
        %v916 = vpop.f32.mrb[0].mxu0
        %v917 = vpop.f32.mrb[0].mxu0
        %v918 = vadd.f32 0.0, %v917
        %v919 = vpop.f32.mrb[0].mxu0
        %920 = vmatprep.mubr.bf16.mxu0 0
        %921 = vmatmul.mubr.bf16.gmra.mrb[0].mxu0 %v803
        %v922 = vpop.f32.mrb[0].mxu0
        %v923 = vadd.f32 0.0, %v922
        %v924 = vpop.f32.mrb[0].mxu0
        %v925 = vpop.f32.mrb[0].mxu0
        %v926 = vadd.f32 0.0, %v925
        %v927 = vpop.f32.mrb[0].mxu0
        %928 = vmatprep.mubr.bf16.mxu0 0
        %929 = vmatmul.mubr.bf16.gmra.mrb[0].mxu0 %v804
        %v930 = vpop.f32.mrb[0].mxu0
        %v931 = vadd.f32 0.0, %v930
        %v932 = vpop.f32.mrb[0].mxu0
        %v933 = vpop.f32.mrb[0].mxu0
        %v934 = vadd.f32 0.0, %v933
        %v935 = vpop.f32.mrb[0].mxu0
        %936 = vmatprep.mubr.bf16.mxu0 0
        %937 = vmatmul.mubr.bf16.gmra.mrb[0].mxu0 %v805
        %v938 = vpop.f32.mrb[0].mxu0
        %v939 = vadd.f32 0.0, %v938
        %v940 = vpop.f32.mrb[0].mxu0
        %v941 = vpop.f32.mrb[0].mxu0
        %v942 = vadd.f32 0.0, %v941
        %v943 = vpop.f32.mrb[0].mxu0
        %944 = vmatprep.mubr.bf16.mxu0 0
        %945 = vmatmul.mubr.bf16.gmra.mrb[0].mxu0 %v806
        %v946 = vpop.f32.mrb[0].mxu0
        %v947 = vadd.f32 0.0, %v946
        %v948 = vpop.f32.mrb[0].mxu0
        %v949 = vpop.f32.mrb[0].mxu0
        %v950 = vadd.f32 0.0, %v949
        %v951 = vpop.f32.mrb[0].mxu0
        %952 = vmatprep.mubr.bf16.mxu0 0
        %953 = vmatmul.mubr.bf16.gmra.mrb[0].mxu0 %v807
        %v954 = vpop.f32.mrb[0].mxu0
        %v955 = vadd.f32 0.0, %v954
        %v956 = vpop.f32.mrb[0].mxu0
        %v957 = vpop.f32.mrb[0].mxu0
        %v958 = vpop.f32.mrb[0].mxu0
        %959 = vdwg.mxu0
        %v976 = vunpack.c.l.b16 %v758
        %v977 = vunpack.c.l.b16 %v759
        %v978 = vunpack.c.l.b16 %v760
        %v979 = vunpack.c.l.b16 %v761
        %v980 = vunpack.c.l.b16 %v762
        %v981 = vunpack.c.l.b16 %v763
        %v982 = vunpack.c.l.b16 %v764
        %v983 = vunpack.c.l.b16 %v765
        %v984 = vunpack.c.l.b16 %v766
        %v985 = vunpack.c.l.b16 %v767
        %v986 = vunpack.c.l.b16 %v768
        %v987 = vunpack.c.l.b16 %v769
        %v988 = vunpack.c.l.b16 %v770
        %v989 = vunpack.c.l.b16 %v771
        %v990 = vunpack.c.l.b16 %v772
        %v991 = vunpack.c.l.b16 %v773
        %v992 = vpack.c.b16 %v977, %v976
        %v993 = vpack.c.b16 %v979, %v978
        %v994 = vpack.c.b16 %v981, %v980
        %v995 = vpack.c.b16 %v983, %v982
        %v996 = vpack.c.b16 %v985, %v984
        %v997 = vpack.c.b16 %v987, %v986
        %v998 = vpack.c.b16 %v989, %v988
        %v999 = vpack.c.b16 %v991, %v990
        %1008 = vmatprep.subr.bf16.mxu0 0
        %1009 = vmatpush1.bf16.msra.mxu0 %v992
        %1010 = vmatprep.subr.bf16.mxu0 0
        %1011 = vmatpush1.bf16.msra.mxu0 %v993
        %1012 = vmatprep.subr.bf16.mxu0 0
        %1013 = vmatpush1.bf16.msra.mxu0 %v994
        %1014 = vmatprep.subr.bf16.mxu0 0
        %1015 = vmatpush1.bf16.msra.mxu0 %v995
        %1016 = vmatprep.subr.bf16.mxu0 0
        %1017 = vmatpush1.bf16.msra.mxu0 %v996
        %1018 = vmatprep.subr.bf16.mxu0 0
        %1019 = vmatpush1.bf16.msra.mxu0 %v997
        %1020 = vmatprep.subr.bf16.mxu0 0
        %1021 = vmatpush1.bf16.msra.mxu0 %v998
        %1022 = vmatprep.subr.bf16.mxu0 0
        %1023 = vmatpush1.bf16.msra.mxu0 %v999
        %1024 = vmatprep.subr.bf16.mxu0 0
        %1025 = vmatpush1.bf16.msra.mxu0 0
        %1026 = vmatprep.subr.bf16.mxu0 0
        %1027 = vmatpush1.bf16.msra.mxu0 0
        %1028 = vmatprep.subr.bf16.mxu0 0
        %1029 = vmatpush1.bf16.msra.mxu0 0
        %1030 = vmatprep.subr.bf16.mxu0 0
        %1031 = vmatpush1.bf16.msra.mxu0 0
        %1032 = vmatprep.subr.bf16.mxu0 0
        %1033 = vmatpush1.bf16.msra.mxu0 0
        %1034 = vmatprep.subr.bf16.mxu0 0
        %1035 = vmatpush1.bf16.msra.mxu0 0
        %1036 = vmatprep.subr.bf16.mxu0 0
        %1037 = vmatpush1.bf16.msra.mxu0 0
        %1038 = vmatprep.subr.bf16.mxu0 0
        %1039 = vmatpush1.bf16.msra.mxu0 0
        %1040 = vmatprep.mubr.bf16.mxu0 0
        %1041 = vmatmul.mubr.bf16.gmra.mrb[0].mxu0 %v751
        %v1042 = vpop.f32.mrb[0].mxu0
        %v1043 = vadd.f32 %v907, %v1042
        %v1044 = vpop.f32.mrb[0].mxu0
        %v1045 = vpop.f32.mrb[0].mxu0
        %v1046 = vadd.f32 %v910, %v1045
        %v1047 = vpop.f32.mrb[0].mxu0
        %1048 = vmatprep.mubr.bf16.mxu0 0
        %1049 = vmatmul.mubr.bf16.gmra.mrb[0].mxu0 %v752
        %v1050 = vpop.f32.mrb[0].mxu0
        %v1051 = vadd.f32 %v915, %v1050
        %v1052 = vpop.f32.mrb[0].mxu0
        %v1053 = vpop.f32.mrb[0].mxu0
        %v1054 = vadd.f32 %v918, %v1053
        %v1055 = vpop.f32.mrb[0].mxu0
        %1056 = vmatprep.mubr.bf16.mxu0 0
        %1057 = vmatmul.mubr.bf16.gmra.mrb[0].mxu0 %v753
        %v1058 = vpop.f32.mrb[0].mxu0
        %v1059 = vadd.f32 %v923, %v1058
        %v1060 = vpop.f32.mrb[0].mxu0
        %v1061 = vpop.f32.mrb[0].mxu0
        %v1062 = vadd.f32 %v926, %v1061
        %v1063 = vpop.f32.mrb[0].mxu0
        %1064 = vmatprep.mubr.bf16.mxu0 0
        %1065 = vmatmul.mubr.bf16.gmra.mrb[0].mxu0 %v754
        %v1066 = vpop.f32.mrb[0].mxu0
        %v1067 = vadd.f32 %v931, %v1066
        %v1068 = vpop.f32.mrb[0].mxu0
        %v1069 = vpop.f32.mrb[0].mxu0
        %v1070 = vadd.f32 %v934, %v1069
        %v1071 = vpop.f32.mrb[0].mxu0
        %1072 = vmatprep.mubr.bf16.mxu0 0
        %1073 = vmatmul.mubr.bf16.gmra.mrb[0].mxu0 %v755
        %v1074 = vpop.f32.mrb[0].mxu0
        %v1075 = vadd.f32 %v939, %v1074
        %v1076 = vpop.f32.mrb[0].mxu0
        %v1077 = vpop.f32.mrb[0].mxu0
        %v1078 = vadd.f32 %v942, %v1077
        %v1079 = vpop.f32.mrb[0].mxu0
        %1080 = vmatprep.mubr.bf16.mxu0 0
        %1081 = vmatmul.mubr.bf16.gmra.mrb[0].mxu0 %v756
        %v1082 = vpop.f32.mrb[0].mxu0
        %v1083 = vadd.f32 %v947, %v1082
        %v1084 = vpop.f32.mrb[0].mxu0
        %v1085 = vpop.f32.mrb[0].mxu0
        %v1086 = vadd.f32 %v950, %v1085
        %v1087 = vpop.f32.mrb[0].mxu0
        %1088 = vmatprep.mubr.bf16.mxu0 0
        %1089 = vmatmul.mubr.bf16.gmra.mrb[0].mxu0 %v757
        %v1090 = vpop.f32.mrb[0].mxu0
        %v1091 = vadd.f32 %v955, %v1090
        %v1092 = vpop.f32.mrb[0].mxu0
        %v1093 = vpop.f32.mrb[0].mxu0
        %v1094 = vpop.f32.mrb[0].mxu0
        %1095 = vdwg.mxu0
        %v1096 = vrot.slane %v702, 7
        %v1097 = vrot.slane %v703, 7
        %v1098 = vrot.slane %v704, 7
        %v1099 = vrot.slane %v705, 7
        %v1100 = vrot.slane %v706, 7
        %v1101 = vrot.slane %v707, 7
        %v1102 = vrot.slane %v708, 7
        %v1103 = vrot.slane %v709, 7
        %v1104 = vrot.slane %v710, 7
        %v1105 = vrot.slane %v711, 7
        %v1106 = vrot.slane %v712, 7
        %v1107 = vrot.slane %v713, 7
        %v1108 = vrot.slane %v714, 7
        %vm1109 = vcmp.lt.s32.totalorder %v736, 1
        %v1110 = vsel %vm1109, %v1107, %v1108
        %v1111 = vsel %vm1109, %v1106, %v1107
        %v1112 = vsel %vm1109, %v1105, %v1106
        %v1113 = vsel %vm1109, %v1104, %v1105
        %v1114 = vsel %vm1109, %v1103, %v1104
        %v1115 = vsel %vm1109, %v1102, %v1103
        %v1116 = vsel %vm1109, %v1101, %v1102
        %v1117 = vsel %vm1109, %v1100, %v1101
        %v1118 = vsel %vm1109, %v1099, %v1100
        %v1119 = vsel %vm1109, %v1098, %v1099
        %v1120 = vsel %vm1109, %v1097, %v1098
        %v1121 = vsel %vm1109, %v1096, %v1097
        %v1122 = vsel %vm1109, %v1108, %v1096
        %v1123 = vpack.c.bf16 %v1122, %v1110
        %v1124 = vpack.c.bf16 %v1120, %v1121
        %v1125 = vpack.c.bf16 %v1118, %v1119
        %v1126 = vpack.c.bf16 %v1116, %v1117
        %v1127 = vpack.c.bf16 %v1114, %v1115
        %v1128 = vpack.c.bf16 %v1112, %v1113
        %v1129 = vpack.c.bf16 %v1111, %v1111
        %v1130 = vld [vmem:[#allocation5 + $0x80] sm:$0xf]
        %v1131 = vld [vmem:[#allocation5 + $0x84] sm:$0xf]
        %v1132 = vld [vmem:[#allocation5 + $0x88] sm:$0xf]
        %v1133 = vld [vmem:[#allocation5 + $0x8c] sm:$0xf]
        %v1134 = vld [vmem:[#allocation5 + $0x90] sm:$0xf]
        %v1135 = vld [vmem:[#allocation5 + $0x94] sm:$0xf]
        %v1136 = vld [vmem:[#allocation5 + $0x98] sm:$0xf]
        %v1137 = vld [vmem:[#allocation5 + $0x9c] sm:$0xf]
        %v1138 = vld [vmem:[#allocation5 + $0xa0] sm:$0xf]
        %v1139 = vld [vmem:[#allocation5 + $0xa4] sm:$0xf]
        %v1140 = vld [vmem:[#allocation5 + $0xa8] sm:$0xf]
        %v1141 = vld [vmem:[#allocation5 + $0xac] sm:$0xf]
        %v1142 = vld [vmem:[#allocation5 + $0xb0] sm:$0xf]
        %v1143 = vld [vmem:[#allocation5 + $0xb4] sm:$0xf]
        %v1144 = vld [vmem:[#allocation5 + $0xb8] sm:$0xf]
        %v1145 = vld [vmem:[#allocation5 + $0xbc] sm:$0xf]
        %v1162 = vunpack.c.l.b16 %v1130
        %v1163 = vunpack.c.l.b16 %v1131
        %v1164 = vunpack.c.l.b16 %v1132
        %v1165 = vunpack.c.l.b16 %v1133
        %v1166 = vunpack.c.l.b16 %v1134
        %v1167 = vunpack.c.l.b16 %v1135
        %v1168 = vunpack.c.l.b16 %v1136
        %v1169 = vunpack.c.l.b16 %v1137
        %v1170 = vunpack.c.l.b16 %v1138
        %v1171 = vunpack.c.l.b16 %v1139
        %v1172 = vunpack.c.l.b16 %v1140
        %v1173 = vunpack.c.l.b16 %v1141
        %v1174 = vunpack.c.l.b16 %v1142
        %v1175 = vunpack.c.l.b16 %v1143
        %v1176 = vunpack.c.l.b16 %v1144
        %v1177 = vunpack.c.l.b16 %v1145
        %v1178 = vpack.c.b16 %v1163, %v1162
        %v1179 = vpack.c.b16 %v1165, %v1164
        %v1180 = vpack.c.b16 %v1167, %v1166
        %v1181 = vpack.c.b16 %v1169, %v1168
        %v1182 = vpack.c.b16 %v1171, %v1170
        %v1183 = vpack.c.b16 %v1173, %v1172
        %v1184 = vpack.c.b16 %v1175, %v1174
        %v1185 = vpack.c.b16 %v1177, %v1176
        %1194 = vmatprep.subr.bf16.mxu0 0
        %1195 = vmatpush1.bf16.msra.mxu0 %v1178
        %1196 = vmatprep.subr.bf16.mxu0 0
        %1197 = vmatpush1.bf16.msra.mxu0 %v1179
        %1198 = vmatprep.subr.bf16.mxu0 0
        %1199 = vmatpush1.bf16.msra.mxu0 %v1180
        %1200 = vmatprep.subr.bf16.mxu0 0
        %1201 = vmatpush1.bf16.msra.mxu0 %v1181
        %1202 = vmatprep.subr.bf16.mxu0 0
        %1203 = vmatpush1.bf16.msra.mxu0 %v1182
        %1204 = vmatprep.subr.bf16.mxu0 0
        %1205 = vmatpush1.bf16.msra.mxu0 %v1183
        %1206 = vmatprep.subr.bf16.mxu0 0
        %1207 = vmatpush1.bf16.msra.mxu0 %v1184
        %1208 = vmatprep.subr.bf16.mxu0 0
        %1209 = vmatpush1.bf16.msra.mxu0 %v1185
        %1210 = vmatprep.subr.bf16.mxu0 0
        %1211 = vmatpush1.bf16.msra.mxu0 0
        %1212 = vmatprep.subr.bf16.mxu0 0
        %1213 = vmatpush1.bf16.msra.mxu0 0
        %1214 = vmatprep.subr.bf16.mxu0 0
        %1215 = vmatpush1.bf16.msra.mxu0 0
        %1216 = vmatprep.subr.bf16.mxu0 0
        %1217 = vmatpush1.bf16.msra.mxu0 0
        %1218 = vmatprep.subr.bf16.mxu0 0
        %1219 = vmatpush1.bf16.msra.mxu0 0
        %1220 = vmatprep.subr.bf16.mxu0 0
        %1221 = vmatpush1.bf16.msra.mxu0 0
        %1222 = vmatprep.subr.bf16.mxu0 0
        %1223 = vmatpush1.bf16.msra.mxu0 0
        %1224 = vmatprep.subr.bf16.mxu0 0
        %1225 = vmatpush1.bf16.msra.mxu0 0
        %1226 = vmatprep.mubr.bf16.mxu0 0
        %1227 = vmatmul.mubr.bf16.gmra.mrb[0].mxu0 %v1123
        %v1228 = vpop.f32.mrb[0].mxu0
        %v1229 = vadd.f32 0.0, %v1228
        %v1230 = vpop.f32.mrb[0].mxu0
        %v1231 = vpop.f32.mrb[0].mxu0
        %v1232 = vadd.f32 0.0, %v1231
        %v1233 = vpop.f32.mrb[0].mxu0
        %1234 = vmatprep.mubr.bf16.mxu0 0
        %1235 = vmatmul.mubr.bf16.gmra.mrb[0].mxu0 %v1124
        %v1236 = vpop.f32.mrb[0].mxu0
        %v1237 = vadd.f32 0.0, %v1236
        %v1238 = vpop.f32.mrb[0].mxu0
        %v1239 = vpop.f32.mrb[0].mxu0
        %v1240 = vadd.f32 0.0, %v1239
        %v1241 = vpop.f32.mrb[0].mxu0
        %1242 = vmatprep.mubr.bf16.mxu0 0
        %1243 = vmatmul.mubr.bf16.gmra.mrb[0].mxu0 %v1125
        %v1244 = vpop.f32.mrb[0].mxu0
        %v1245 = vadd.f32 0.0, %v1244
        %v1246 = vpop.f32.mrb[0].mxu0
        %v1247 = vpop.f32.mrb[0].mxu0
        %v1248 = vadd.f32 0.0, %v1247
        %v1249 = vpop.f32.mrb[0].mxu0
        %1250 = vmatprep.mubr.bf16.mxu0 0
        %1251 = vmatmul.mubr.bf16.gmra.mrb[0].mxu0 %v1126
        %v1252 = vpop.f32.mrb[0].mxu0
        %v1253 = vadd.f32 0.0, %v1252
        %v1254 = vpop.f32.mrb[0].mxu0
        %v1255 = vpop.f32.mrb[0].mxu0
        %v1256 = vadd.f32 0.0, %v1255
        %v1257 = vpop.f32.mrb[0].mxu0
        %1258 = vmatprep.mubr.bf16.mxu0 0
        %1259 = vmatmul.mubr.bf16.gmra.mrb[0].mxu0 %v1127
        %v1260 = vpop.f32.mrb[0].mxu0
        %v1261 = vadd.f32 0.0, %v1260
        %v1262 = vpop.f32.mrb[0].mxu0
        %v1263 = vpop.f32.mrb[0].mxu0
        %v1264 = vadd.f32 0.0, %v1263
        %v1265 = vpop.f32.mrb[0].mxu0
        %1266 = vmatprep.mubr.bf16.mxu0 0
        %1267 = vmatmul.mubr.bf16.gmra.mrb[0].mxu0 %v1128
        %v1268 = vpop.f32.mrb[0].mxu0
        %v1269 = vadd.f32 0.0, %v1268
        %v1270 = vpop.f32.mrb[0].mxu0
        %v1271 = vpop.f32.mrb[0].mxu0
        %v1272 = vadd.f32 0.0, %v1271
        %v1273 = vpop.f32.mrb[0].mxu0
        %1274 = vmatprep.mubr.bf16.mxu0 0
        %1275 = vmatmul.mubr.bf16.gmra.mrb[0].mxu0 %v1129
        %v1276 = vpop.f32.mrb[0].mxu0
        %v1277 = vadd.f32 0.0, %v1276
        %v1278 = vpop.f32.mrb[0].mxu0
        %v1279 = vpop.f32.mrb[0].mxu0
        %v1280 = vpop.f32.mrb[0].mxu0
        %1281 = vdwg.mxu0
        %v1282 = vadd.f32 %v1043, %v1229
        %v1283 = vadd.f32 %v1046, %v1232
        %v1284 = vadd.f32 %v1051, %v1237
        %v1285 = vadd.f32 %v1054, %v1240
        %v1286 = vadd.f32 %v1059, %v1245
        %v1287 = vadd.f32 %v1062, %v1248
        %v1288 = vadd.f32 %v1067, %v1253
        %v1289 = vadd.f32 %v1070, %v1256
        %v1290 = vadd.f32 %v1075, %v1261
        %v1291 = vadd.f32 %v1078, %v1264
        %v1292 = vadd.f32 %v1083, %v1269
        %v1293 = vadd.f32 %v1086, %v1272
        %v1294 = vadd.f32 %v1091, %v1277
        %v1295 = vpack.c.bf16 %v1121, %v1122
        %v1296 = vpack.c.bf16 %v1119, %v1120
        %v1297 = vpack.c.bf16 %v1117, %v1118
        %v1298 = vpack.c.bf16 %v1115, %v1116
        %v1299 = vpack.c.bf16 %v1113, %v1114
        %v1300 = vpack.c.bf16 %v1111, %v1112
        %v1301 = vpack.c.bf16 %v1110, %v1110
        %v1302 = vld [vmem:[#allocation5 + $0xc0] sm:$0xf]
        %v1303 = vld [vmem:[#allocation5 + $0xc4] sm:$0xf]
        %v1304 = vld [vmem:[#allocation5 + $0xc8] sm:$0xf]
        %v1305 = vld [vmem:[#allocation5 + $0xcc] sm:$0xf]
        %v1306 = vld [vmem:[#allocation5 + $0xd0] sm:$0xf]
        %v1307 = vld [vmem:[#allocation5 + $0xd4] sm:$0xf]
        %v1308 = vld [vmem:[#allocation5 + $0xd8] sm:$0xf]
        %v1309 = vld [vmem:[#allocation5 + $0xdc] sm:$0xf]
        %v1310 = vld [vmem:[#allocation5 + $0xe0] sm:$0xf]
        %v1311 = vld [vmem:[#allocation5 + $0xe4] sm:$0xf]
        %v1312 = vld [vmem:[#allocation5 + $0xe8] sm:$0xf]
        %v1313 = vld [vmem:[#allocation5 + $0xec] sm:$0xf]
        %v1314 = vld [vmem:[#allocation5 + $0xf0] sm:$0xf]
        %v1315 = vld [vmem:[#allocation5 + $0xf4] sm:$0xf]
        %v1316 = vld [vmem:[#allocation5 + $0xf8] sm:$0xf]
        %v1317 = vld [vmem:[#allocation5 + $0xfc] sm:$0xf]
        %v1334 = vunpack.c.l.b16 %v1302
        %v1335 = vunpack.c.l.b16 %v1303
        %v1336 = vunpack.c.l.b16 %v1304
        %v1337 = vunpack.c.l.b16 %v1305
        %v1338 = vunpack.c.l.b16 %v1306
        %v1339 = vunpack.c.l.b16 %v1307
        %v1340 = vunpack.c.l.b16 %v1308
        %v1341 = vunpack.c.l.b16 %v1309
        %v1342 = vunpack.c.l.b16 %v1310
        %v1343 = vunpack.c.l.b16 %v1311
        %v1344 = vunpack.c.l.b16 %v1312
        %v1345 = vunpack.c.l.b16 %v1313
        %v1346 = vunpack.c.l.b16 %v1314
        %v1347 = vunpack.c.l.b16 %v1315
        %v1348 = vunpack.c.l.b16 %v1316
        %v1349 = vunpack.c.l.b16 %v1317
        %v1350 = vpack.c.b16 %v1335, %v1334
        %v1351 = vpack.c.b16 %v1337, %v1336
        %v1352 = vpack.c.b16 %v1339, %v1338
        %v1353 = vpack.c.b16 %v1341, %v1340
        %v1354 = vpack.c.b16 %v1343, %v1342
        %v1355 = vpack.c.b16 %v1345, %v1344
        %v1356 = vpack.c.b16 %v1347, %v1346
        %v1357 = vpack.c.b16 %v1349, %v1348
        %1366 = vmatprep.subr.bf16.mxu0 0
        %1367 = vmatpush1.bf16.msra.mxu0 %v1350
        %1368 = vmatprep.subr.bf16.mxu0 0
        %1369 = vmatpush1.bf16.msra.mxu0 %v1351
        %1370 = vmatprep.subr.bf16.mxu0 0
        %1371 = vmatpush1.bf16.msra.mxu0 %v1352
        %1372 = vmatprep.subr.bf16.mxu0 0
        %1373 = vmatpush1.bf16.msra.mxu0 %v1353
        %1374 = vmatprep.subr.bf16.mxu0 0
        %1375 = vmatpush1.bf16.msra.mxu0 %v1354
        %1376 = vmatprep.subr.bf16.mxu0 0
        %1377 = vmatpush1.bf16.msra.mxu0 %v1355
        %1378 = vmatprep.subr.bf16.mxu0 0
        %1379 = vmatpush1.bf16.msra.mxu0 %v1356
        %1380 = vmatprep.subr.bf16.mxu0 0
        %1381 = vmatpush1.bf16.msra.mxu0 %v1357
        %1382 = vmatprep.subr.bf16.mxu0 0
        %1383 = vmatpush1.bf16.msra.mxu0 0
        %1384 = vmatprep.subr.bf16.mxu0 0
        %1385 = vmatpush1.bf16.msra.mxu0 0
        %1386 = vmatprep.subr.bf16.mxu0 0
        %1387 = vmatpush1.bf16.msra.mxu0 0
        %1388 = vmatprep.subr.bf16.mxu0 0
        %1389 = vmatpush1.bf16.msra.mxu0 0
        %1390 = vmatprep.subr.bf16.mxu0 0
        %1391 = vmatpush1.bf16.msra.mxu0 0
        %1392 = vmatprep.subr.bf16.mxu0 0
        %1393 = vmatpush1.bf16.msra.mxu0 0
        %1394 = vmatprep.subr.bf16.mxu0 0
        %1395 = vmatpush1.bf16.msra.mxu0 0
        %1396 = vmatprep.subr.bf16.mxu0 0
        %1397 = vmatpush1.bf16.msra.mxu0 0
        %1398 = vmatprep.mubr.bf16.mxu0 0
        %1399 = vmatmul.mubr.bf16.gmra.mrb[0].mxu0 %v1295
        %v1400 = vpop.f32.mrb[0].mxu0
        %v1401 = vadd.f32 0.0, %v1400
        %v1402 = vpop.f32.mrb[0].mxu0
        %v1403 = vpop.f32.mrb[0].mxu0
        %v1404 = vadd.f32 0.0, %v1403
        %v1405 = vpop.f32.mrb[0].mxu0
        %1406 = vmatprep.mubr.bf16.mxu0 0
        %1407 = vmatmul.mubr.bf16.gmra.mrb[0].mxu0 %v1296
        %v1408 = vpop.f32.mrb[0].mxu0
        %v1409 = vadd.f32 0.0, %v1408
        %v1410 = vpop.f32.mrb[0].mxu0
        %v1411 = vpop.f32.mrb[0].mxu0
        %v1412 = vadd.f32 0.0, %v1411
        %v1413 = vpop.f32.mrb[0].mxu0
        %1414 = vmatprep.mubr.bf16.mxu0 0
        %1415 = vmatmul.mubr.bf16.gmra.mrb[0].mxu0 %v1297
        %v1416 = vpop.f32.mrb[0].mxu0
        %v1417 = vadd.f32 0.0, %v1416
        %v1418 = vpop.f32.mrb[0].mxu0
        %v1419 = vpop.f32.mrb[0].mxu0
        %v1420 = vadd.f32 0.0, %v1419
        %v1421 = vpop.f32.mrb[0].mxu0
        %1422 = vmatprep.mubr.bf16.mxu0 0
        %1423 = vmatmul.mubr.bf16.gmra.mrb[0].mxu0 %v1298
        %v1424 = vpop.f32.mrb[0].mxu0
        %v1425 = vadd.f32 0.0, %v1424
        %v1426 = vpop.f32.mrb[0].mxu0
        %v1427 = vpop.f32.mrb[0].mxu0
        %v1428 = vadd.f32 0.0, %v1427
        %v1429 = vpop.f32.mrb[0].mxu0
        %1430 = vmatprep.mubr.bf16.mxu0 0
        %1431 = vmatmul.mubr.bf16.gmra.mrb[0].mxu0 %v1299
        %v1432 = vpop.f32.mrb[0].mxu0
        %v1433 = vadd.f32 0.0, %v1432
        %v1434 = vpop.f32.mrb[0].mxu0
        %v1435 = vpop.f32.mrb[0].mxu0
        %v1436 = vadd.f32 0.0, %v1435
        %v1437 = vpop.f32.mrb[0].mxu0
        %1438 = vmatprep.mubr.bf16.mxu0 0
        %1439 = vmatmul.mubr.bf16.gmra.mrb[0].mxu0 %v1300
        %v1440 = vpop.f32.mrb[0].mxu0
        %v1441 = vadd.f32 0.0, %v1440
        %v1442 = vpop.f32.mrb[0].mxu0
        %v1443 = vpop.f32.mrb[0].mxu0
        %v1444 = vadd.f32 0.0, %v1443
        %v1445 = vpop.f32.mrb[0].mxu0
        %1446 = vmatprep.mubr.bf16.mxu0 0
        %1447 = vmatmul.mubr.bf16.gmra.mrb[0].mxu0 %v1301
        %v1448 = vpop.f32.mrb[0].mxu0
        %v1449 = vadd.f32 0.0, %v1448
        %v1450 = vpop.f32.mrb[0].mxu0
        %v1451 = vpop.f32.mrb[0].mxu0
        %v1452 = vpop.f32.mrb[0].mxu0
        %1453 = vdwg.mxu0
        %v1454 = vadd.f32 %v1282, %v1401
        %v1455 = vadd.f32 %v1283, %v1404
        %v1456 = vadd.f32 %v1284, %v1409
        %v1457 = vadd.f32 %v1285, %v1412
        %v1458 = vadd.f32 %v1286, %v1417
        %v1459 = vadd.f32 %v1287, %v1420
        %v1460 = vadd.f32 %v1288, %v1425
        %v1461 = vadd.f32 %v1289, %v1428
        %v1462 = vadd.f32 %v1290, %v1433
        %v1463 = vadd.f32 %v1291, %v1436
        %v1464 = vadd.f32 %v1292, %v1441
        %v1465 = vadd.f32 %v1293, %v1444
        %v1466 = vadd.f32 %v1294, %v1449
        %v1467 = vpack.c.bf16 %v703, %v702
        %v1468 = vpack.c.bf16 %v705, %v704
        %v1469 = vpack.c.bf16 %v707, %v706
        %v1470 = vpack.c.bf16 %v709, %v708
        %v1471 = vpack.c.bf16 %v711, %v710
        %v1472 = vpack.c.bf16 %v713, %v712
        %v1473 = vpack.c.bf16 %v714, %v714
        %v1474 = vld [vmem:[#allocation5 + $0x100] sm:$0xf]
        %v1475 = vld [vmem:[#allocation5 + $0x104] sm:$0xf]
        %v1476 = vld [vmem:[#allocation5 + $0x108] sm:$0xf]
        %v1477 = vld [vmem:[#allocation5 + $0x10c] sm:$0xf]
        %v1478 = vld [vmem:[#allocation5 + $0x110] sm:$0xf]
        %v1479 = vld [vmem:[#allocation5 + $0x114] sm:$0xf]
        %v1480 = vld [vmem:[#allocation5 + $0x118] sm:$0xf]
        %v1481 = vld [vmem:[#allocation5 + $0x11c] sm:$0xf]
        %v1482 = vld [vmem:[#allocation5 + $0x120] sm:$0xf]
        %v1483 = vld [vmem:[#allocation5 + $0x124] sm:$0xf]
        %v1484 = vld [vmem:[#allocation5 + $0x128] sm:$0xf]
        %v1485 = vld [vmem:[#allocation5 + $0x12c] sm:$0xf]
        %v1486 = vld [vmem:[#allocation5 + $0x130] sm:$0xf]
        %v1487 = vld [vmem:[#allocation5 + $0x134] sm:$0xf]
        %v1488 = vld [vmem:[#allocation5 + $0x138] sm:$0xf]
        %v1489 = vld [vmem:[#allocation5 + $0x13c] sm:$0xf]
        %v1506 = vunpack.c.l.b16 %v1474
        %v1507 = vunpack.c.l.b16 %v1475
        %v1508 = vunpack.c.l.b16 %v1476
        %v1509 = vunpack.c.l.b16 %v1477
        %v1510 = vunpack.c.l.b16 %v1478
        %v1511 = vunpack.c.l.b16 %v1479
        %v1512 = vunpack.c.l.b16 %v1480
        %v1513 = vunpack.c.l.b16 %v1481
        %v1514 = vunpack.c.l.b16 %v1482
        %v1515 = vunpack.c.l.b16 %v1483
        %v1516 = vunpack.c.l.b16 %v1484
        %v1517 = vunpack.c.l.b16 %v1485
        %v1518 = vunpack.c.l.b16 %v1486
        %v1519 = vunpack.c.l.b16 %v1487
        %v1520 = vunpack.c.l.b16 %v1488
        %v1521 = vunpack.c.l.b16 %v1489
        %v1522 = vpack.c.b16 %v1507, %v1506
        %v1523 = vpack.c.b16 %v1509, %v1508
        %v1524 = vpack.c.b16 %v1511, %v1510
        %v1525 = vpack.c.b16 %v1513, %v1512
        %v1526 = vpack.c.b16 %v1515, %v1514
        %v1527 = vpack.c.b16 %v1517, %v1516
        %v1528 = vpack.c.b16 %v1519, %v1518
        %v1529 = vpack.c.b16 %v1521, %v1520
        %1538 = vmatprep.subr.bf16.mxu0 0
        %1539 = vmatpush1.bf16.msra.mxu0 %v1522
        %1540 = vmatprep.subr.bf16.mxu0 0
        %1541 = vmatpush1.bf16.msra.mxu0 %v1523
        %1542 = vmatprep.subr.bf16.mxu0 0
        %1543 = vmatpush1.bf16.msra.mxu0 %v1524
        %1544 = vmatprep.subr.bf16.mxu0 0
        %1545 = vmatpush1.bf16.msra.mxu0 %v1525
        %1546 = vmatprep.subr.bf16.mxu0 0
        %1547 = vmatpush1.bf16.msra.mxu0 %v1526
        %1548 = vmatprep.subr.bf16.mxu0 0
        %1549 = vmatpush1.bf16.msra.mxu0 %v1527
        %1550 = vmatprep.subr.bf16.mxu0 0
        %1551 = vmatpush1.bf16.msra.mxu0 %v1528
        %1552 = vmatprep.subr.bf16.mxu0 0
        %1553 = vmatpush1.bf16.msra.mxu0 %v1529
        %1554 = vmatprep.subr.bf16.mxu0 0
        %1555 = vmatpush1.bf16.msra.mxu0 0
        %1556 = vmatprep.subr.bf16.mxu0 0
        %1557 = vmatpush1.bf16.msra.mxu0 0
        %1558 = vmatprep.subr.bf16.mxu0 0
        %1559 = vmatpush1.bf16.msra.mxu0 0
        %1560 = vmatprep.subr.bf16.mxu0 0
        %1561 = vmatpush1.bf16.msra.mxu0 0
        %1562 = vmatprep.subr.bf16.mxu0 0
        %1563 = vmatpush1.bf16.msra.mxu0 0
        %1564 = vmatprep.subr.bf16.mxu0 0
        %1565 = vmatpush1.bf16.msra.mxu0 0
        %1566 = vmatprep.subr.bf16.mxu0 0
        %1567 = vmatpush1.bf16.msra.mxu0 0
        %1568 = vmatprep.subr.bf16.mxu0 0
        %1569 = vmatpush1.bf16.msra.mxu0 0
        %1570 = vmatprep.mubr.bf16.mxu0 0
        %1571 = vmatmul.mubr.bf16.gmra.mrb[0].mxu0 %v1467
        %v1572 = vpop.f32.mrb[0].mxu0
        %v1573 = vadd.f32 0.0, %v1572
        %v1574 = vpop.f32.mrb[0].mxu0
        %v1575 = vpop.f32.mrb[0].mxu0
        %v1576 = vadd.f32 0.0, %v1575
        %v1577 = vpop.f32.mrb[0].mxu0
        %1578 = vmatprep.mubr.bf16.mxu0 0
        %1579 = vmatmul.mubr.bf16.gmra.mrb[0].mxu0 %v1468
        %v1580 = vpop.f32.mrb[0].mxu0
        %v1581 = vadd.f32 0.0, %v1580
        %v1582 = vpop.f32.mrb[0].mxu0
        %v1583 = vpop.f32.mrb[0].mxu0
        %v1584 = vadd.f32 0.0, %v1583
        %v1585 = vpop.f32.mrb[0].mxu0
        %1586 = vmatprep.mubr.bf16.mxu0 0
        %1587 = vmatmul.mubr.bf16.gmra.mrb[0].mxu0 %v1469
        %v1588 = vpop.f32.mrb[0].mxu0
        %v1589 = vadd.f32 0.0, %v1588
        %v1590 = vpop.f32.mrb[0].mxu0
        %v1591 = vpop.f32.mrb[0].mxu0
        %v1592 = vadd.f32 0.0, %v1591
        %v1593 = vpop.f32.mrb[0].mxu0
        %1594 = vmatprep.mubr.bf16.mxu0 0
        %1595 = vmatmul.mubr.bf16.gmra.mrb[0].mxu0 %v1470
        %v1596 = vpop.f32.mrb[0].mxu0
        %v1597 = vadd.f32 0.0, %v1596
        %v1598 = vpop.f32.mrb[0].mxu0
        %v1599 = vpop.f32.mrb[0].mxu0
        %v1600 = vadd.f32 0.0, %v1599
        %v1601 = vpop.f32.mrb[0].mxu0
        %1602 = vmatprep.mubr.bf16.mxu0 0
        %1603 = vmatmul.mubr.bf16.gmra.mrb[0].mxu0 %v1471
        %v1604 = vpop.f32.mrb[0].mxu0
        %v1605 = vadd.f32 0.0, %v1604
        %v1606 = vpop.f32.mrb[0].mxu0
        %v1607 = vpop.f32.mrb[0].mxu0
        %v1608 = vadd.f32 0.0, %v1607
        %v1609 = vpop.f32.mrb[0].mxu0
        %1610 = vmatprep.mubr.bf16.mxu0 0
        %1611 = vmatmul.mubr.bf16.gmra.mrb[0].mxu0 %v1472
        %v1612 = vpop.f32.mrb[0].mxu0
        %v1613 = vadd.f32 0.0, %v1612
        %v1614 = vpop.f32.mrb[0].mxu0
        %v1615 = vpop.f32.mrb[0].mxu0
        %v1616 = vadd.f32 0.0, %v1615
        %v1617 = vpop.f32.mrb[0].mxu0
        %1618 = vmatprep.mubr.bf16.mxu0 0
        %1619 = vmatmul.mubr.bf16.gmra.mrb[0].mxu0 %v1473
        %v1620 = vpop.f32.mrb[0].mxu0
        %v1621 = vadd.f32 0.0, %v1620
        %v1622 = vpop.f32.mrb[0].mxu0
        %v1623 = vpop.f32.mrb[0].mxu0
        %v1624 = vpop.f32.mrb[0].mxu0
        %1625 = vdwg.mxu0
        %v1626 = vadd.f32 %v1454, %v1573
        %v1627 = vadd.f32 %v1455, %v1576
        %v1628 = vadd.f32 %v1456, %v1581
        %v1629 = vadd.f32 %v1457, %v1584
        %v1630 = vadd.f32 %v1458, %v1589
        %v1631 = vadd.f32 %v1459, %v1592
        %v1632 = vadd.f32 %v1460, %v1597
        %v1633 = vadd.f32 %v1461, %v1600
        %v1634 = vadd.f32 %v1462, %v1605
        %v1635 = vadd.f32 %v1463, %v1608
        %v1636 = vadd.f32 %v1464, %v1613
        %v1637 = vadd.f32 %v1465, %v1616
        %v1638 = vadd.f32 %v1466, %v1621
        %v1639 = vrot.slane %v702, 1
        %v1640 = vrot.slane %v703, 1
        %v1641 = vrot.slane %v704, 1
        %v1642 = vrot.slane %v705, 1
        %v1643 = vrot.slane %v706, 1
        %v1644 = vrot.slane %v707, 1
        %v1645 = vrot.slane %v708, 1
        %v1646 = vrot.slane %v709, 1
        %v1647 = vrot.slane %v710, 1
        %v1648 = vrot.slane %v711, 1
        %v1649 = vrot.slane %v712, 1
        %v1650 = vrot.slane %v713, 1
        %v1651 = vrot.slane %v714, 1
        %vm1652 = vcmp.lt.s32.totalorder %v736, 7
        %v1653 = vsel %vm1652, %v1650, %v1651
        %v1654 = vsel %vm1652, %v1649, %v1650
        %v1655 = vsel %vm1652, %v1648, %v1649
        %v1656 = vsel %vm1652, %v1647, %v1648
        %v1657 = vsel %vm1652, %v1646, %v1647
        %v1658 = vsel %vm1652, %v1645, %v1646
        %v1659 = vsel %vm1652, %v1644, %v1645
        %v1660 = vsel %vm1652, %v1643, %v1644
        %v1661 = vsel %vm1652, %v1642, %v1643
        %v1662 = vsel %vm1652, %v1641, %v1642
        %v1663 = vsel %vm1652, %v1640, %v1641
        %v1664 = vsel %vm1652, %v1639, %v1640
        %v1665 = vsel %vm1652, %v1651, %v1639
        %v1666 = vpack.c.bf16 %v1663, %v1664
        %v1667 = vpack.c.bf16 %v1661, %v1662
        %v1668 = vpack.c.bf16 %v1659, %v1660
        %v1669 = vpack.c.bf16 %v1657, %v1658
        %v1670 = vpack.c.bf16 %v1655, %v1656
        %v1671 = vpack.c.bf16 %v1653, %v1654
        %v1672 = vpack.c.bf16 %v1665, %v1665
        %v1673 = vld [vmem:[#allocation5 + $0x140] sm:$0xf]
        %v1674 = vld [vmem:[#allocation5 + $0x144] sm:$0xf]
        %v1675 = vld [vmem:[#allocation5 + $0x148] sm:$0xf]
        %v1676 = vld [vmem:[#allocation5 + $0x14c] sm:$0xf]
        %v1677 = vld [vmem:[#allocation5 + $0x150] sm:$0xf]
        %v1678 = vld [vmem:[#allocation5 + $0x154] sm:$0xf]
        %v1679 = vld [vmem:[#allocation5 + $0x158] sm:$0xf]
        %v1680 = vld [vmem:[#allocation5 + $0x15c] sm:$0xf]
        %v1681 = vld [vmem:[#allocation5 + $0x160] sm:$0xf]
        %v1682 = vld [vmem:[#allocation5 + $0x164] sm:$0xf]
        %v1683 = vld [vmem:[#allocation5 + $0x168] sm:$0xf]
        %v1684 = vld [vmem:[#allocation5 + $0x16c] sm:$0xf]
        %v1685 = vld [vmem:[#allocation5 + $0x170] sm:$0xf]
        %v1686 = vld [vmem:[#allocation5 + $0x174] sm:$0xf]
        %v1687 = vld [vmem:[#allocation5 + $0x178] sm:$0xf]
        %v1688 = vld [vmem:[#allocation5 + $0x17c] sm:$0xf]
        %v1705 = vunpack.c.l.b16 %v1673
        %v1706 = vunpack.c.l.b16 %v1674
        %v1707 = vunpack.c.l.b16 %v1675
        %v1708 = vunpack.c.l.b16 %v1676
        %v1709 = vunpack.c.l.b16 %v1677
        %v1710 = vunpack.c.l.b16 %v1678
        %v1711 = vunpack.c.l.b16 %v1679
        %v1712 = vunpack.c.l.b16 %v1680
        %v1713 = vunpack.c.l.b16 %v1681
        %v1714 = vunpack.c.l.b16 %v1682
        %v1715 = vunpack.c.l.b16 %v1683
        %v1716 = vunpack.c.l.b16 %v1684
        %v1717 = vunpack.c.l.b16 %v1685
        %v1718 = vunpack.c.l.b16 %v1686
        %v1719 = vunpack.c.l.b16 %v1687
        %v1720 = vunpack.c.l.b16 %v1688
        %v1721 = vpack.c.b16 %v1706, %v1705
        %v1722 = vpack.c.b16 %v1708, %v1707
        %v1723 = vpack.c.b16 %v1710, %v1709
        %v1724 = vpack.c.b16 %v1712, %v1711
        %v1725 = vpack.c.b16 %v1714, %v1713
        %v1726 = vpack.c.b16 %v1716, %v1715
        %v1727 = vpack.c.b16 %v1718, %v1717
        %v1728 = vpack.c.b16 %v1720, %v1719
        %1737 = vmatprep.subr.bf16.mxu0 0
        %1738 = vmatpush1.bf16.msra.mxu0 %v1721
        %1739 = vmatprep.subr.bf16.mxu0 0
        %1740 = vmatpush1.bf16.msra.mxu0 %v1722
        %1741 = vmatprep.subr.bf16.mxu0 0
        %1742 = vmatpush1.bf16.msra.mxu0 %v1723
        %1743 = vmatprep.subr.bf16.mxu0 0
        %1744 = vmatpush1.bf16.msra.mxu0 %v1724
        %1745 = vmatprep.subr.bf16.mxu0 0
        %1746 = vmatpush1.bf16.msra.mxu0 %v1725
        %1747 = vmatprep.subr.bf16.mxu0 0
        %1748 = vmatpush1.bf16.msra.mxu0 %v1726
        %1749 = vmatprep.subr.bf16.mxu0 0
        %1750 = vmatpush1.bf16.msra.mxu0 %v1727
        %1751 = vmatprep.subr.bf16.mxu0 0
        %1752 = vmatpush1.bf16.msra.mxu0 %v1728
        %1753 = vmatprep.subr.bf16.mxu0 0
        %1754 = vmatpush1.bf16.msra.mxu0 0
        %1755 = vmatprep.subr.bf16.mxu0 0
        %1756 = vmatpush1.bf16.msra.mxu0 0
        %1757 = vmatprep.subr.bf16.mxu0 0
        %1758 = vmatpush1.bf16.msra.mxu0 0
        %1759 = vmatprep.subr.bf16.mxu0 0
        %1760 = vmatpush1.bf16.msra.mxu0 0
        %1761 = vmatprep.subr.bf16.mxu0 0
        %1762 = vmatpush1.bf16.msra.mxu0 0
        %1763 = vmatprep.subr.bf16.mxu0 0
        %1764 = vmatpush1.bf16.msra.mxu0 0
        %1765 = vmatprep.subr.bf16.mxu0 0
        %1766 = vmatpush1.bf16.msra.mxu0 0
        %1767 = vmatprep.subr.bf16.mxu0 0
        %1768 = vmatpush1.bf16.msra.mxu0 0
        %1769 = vmatprep.mubr.bf16.mxu0 0
        %1770 = vmatmul.mubr.bf16.gmra.mrb[0].mxu0 %v1666
        %v1771 = vpop.f32.mrb[0].mxu0
        %v1772 = vadd.f32 0.0, %v1771
        %v1773 = vpop.f32.mrb[0].mxu0
        %v1774 = vpop.f32.mrb[0].mxu0
        %v1775 = vadd.f32 0.0, %v1774
        %v1776 = vpop.f32.mrb[0].mxu0
        %1777 = vmatprep.mubr.bf16.mxu0 0
        %1778 = vmatmul.mubr.bf16.gmra.mrb[0].mxu0 %v1667
        %v1779 = vpop.f32.mrb[0].mxu0
        %v1780 = vadd.f32 0.0, %v1779
        %v1781 = vpop.f32.mrb[0].mxu0
        %v1782 = vpop.f32.mrb[0].mxu0
        %v1783 = vadd.f32 0.0, %v1782
        %v1784 = vpop.f32.mrb[0].mxu0
        %1785 = vmatprep.mubr.bf16.mxu0 0
        %1786 = vmatmul.mubr.bf16.gmra.mrb[0].mxu0 %v1668
        %v1787 = vpop.f32.mrb[0].mxu0
        %v1788 = vadd.f32 0.0, %v1787
        %v1789 = vpop.f32.mrb[0].mxu0
        %v1790 = vpop.f32.mrb[0].mxu0
        %v1791 = vadd.f32 0.0, %v1790
        %v1792 = vpop.f32.mrb[0].mxu0
        %1793 = vmatprep.mubr.bf16.mxu0 0
        %1794 = vmatmul.mubr.bf16.gmra.mrb[0].mxu0 %v1669
        %v1795 = vpop.f32.mrb[0].mxu0
        %v1796 = vadd.f32 0.0, %v1795
        %v1797 = vpop.f32.mrb[0].mxu0
        %v1798 = vpop.f32.mrb[0].mxu0
        %v1799 = vadd.f32 0.0, %v1798
        %v1800 = vpop.f32.mrb[0].mxu0
        %1801 = vmatprep.mubr.bf16.mxu0 0
        %1802 = vmatmul.mubr.bf16.gmra.mrb[0].mxu0 %v1670
        %v1803 = vpop.f32.mrb[0].mxu0
        %v1804 = vadd.f32 0.0, %v1803
        %v1805 = vpop.f32.mrb[0].mxu0
        %v1806 = vpop.f32.mrb[0].mxu0
        %v1807 = vadd.f32 0.0, %v1806
        %v1808 = vpop.f32.mrb[0].mxu0
        %1809 = vmatprep.mubr.bf16.mxu0 0
        %1810 = vmatmul.mubr.bf16.gmra.mrb[0].mxu0 %v1671
        %v1811 = vpop.f32.mrb[0].mxu0
        %v1812 = vadd.f32 0.0, %v1811
        %v1813 = vpop.f32.mrb[0].mxu0
        %v1814 = vpop.f32.mrb[0].mxu0
        %v1815 = vadd.f32 0.0, %v1814
        %v1816 = vpop.f32.mrb[0].mxu0
        %1817 = vmatprep.mubr.bf16.mxu0 0
        %1818 = vmatmul.mubr.bf16.gmra.mrb[0].mxu0 %v1672
        %v1819 = vpop.f32.mrb[0].mxu0
        %v1820 = vadd.f32 0.0, %v1819
        %v1821 = vpop.f32.mrb[0].mxu0
        %v1822 = vpop.f32.mrb[0].mxu0
        %v1823 = vpop.f32.mrb[0].mxu0
        %1824 = vdwg.mxu0
        %v1825 = vadd.f32 %v1626, %v1772
        %v1826 = vadd.f32 %v1627, %v1775
        %v1827 = vadd.f32 %v1628, %v1780
        %v1828 = vadd.f32 %v1629, %v1783
        %v1829 = vadd.f32 %v1630, %v1788
        %v1830 = vadd.f32 %v1631, %v1791
        %v1831 = vadd.f32 %v1632, %v1796
        %v1832 = vadd.f32 %v1633, %v1799
        %v1833 = vadd.f32 %v1634, %v1804
        %v1834 = vadd.f32 %v1635, %v1807
        %v1835 = vadd.f32 %v1636, %v1812
        %v1836 = vadd.f32 %v1637, %v1815
        %v1837 = vadd.f32 %v1638, %v1820
        %v1838 = vpack.c.bf16 %v1662, %v1663
        %v1839 = vpack.c.bf16 %v1660, %v1661
        %v1840 = vpack.c.bf16 %v1658, %v1659
        %v1841 = vpack.c.bf16 %v1656, %v1657
        %v1842 = vpack.c.bf16 %v1654, %v1655
        %v1843 = vpack.c.bf16 %v1665, %v1653
        %v1844 = vpack.c.bf16 %v1664, %v1664
        %v1845 = vld [vmem:[#allocation5 + $0x180] sm:$0xf]
        %v1846 = vld [vmem:[#allocation5 + $0x184] sm:$0xf]
        %v1847 = vld [vmem:[#allocation5 + $0x188] sm:$0xf]
        %v1848 = vld [vmem:[#allocation5 + $0x18c] sm:$0xf]
        %v1849 = vld [vmem:[#allocation5 + $0x190] sm:$0xf]
        %v1850 = vld [vmem:[#allocation5 + $0x194] sm:$0xf]
        %v1851 = vld [vmem:[#allocation5 + $0x198] sm:$0xf]
        %v1852 = vld [vmem:[#allocation5 + $0x19c] sm:$0xf]
        %v1853 = vld [vmem:[#allocation5 + $0x1a0] sm:$0xf]
        %v1854 = vld [vmem:[#allocation5 + $0x1a4] sm:$0xf]
        %v1855 = vld [vmem:[#allocation5 + $0x1a8] sm:$0xf]
        %v1856 = vld [vmem:[#allocation5 + $0x1ac] sm:$0xf]
        %v1857 = vld [vmem:[#allocation5 + $0x1b0] sm:$0xf]
        %v1858 = vld [vmem:[#allocation5 + $0x1b4] sm:$0xf]
        %v1859 = vld [vmem:[#allocation5 + $0x1b8] sm:$0xf]
        %v1860 = vld [vmem:[#allocation5 + $0x1bc] sm:$0xf]
        %v1877 = vunpack.c.l.b16 %v1845
        %v1878 = vunpack.c.l.b16 %v1846
        %v1879 = vunpack.c.l.b16 %v1847
        %v1880 = vunpack.c.l.b16 %v1848
        %v1881 = vunpack.c.l.b16 %v1849
        %v1882 = vunpack.c.l.b16 %v1850
        %v1883 = vunpack.c.l.b16 %v1851
        %v1884 = vunpack.c.l.b16 %v1852
        %v1885 = vunpack.c.l.b16 %v1853
        %v1886 = vunpack.c.l.b16 %v1854
        %v1887 = vunpack.c.l.b16 %v1855
        %v1888 = vunpack.c.l.b16 %v1856
        %v1889 = vunpack.c.l.b16 %v1857
        %v1890 = vunpack.c.l.b16 %v1858
        %v1891 = vunpack.c.l.b16 %v1859
        %v1892 = vunpack.c.l.b16 %v1860
        %v1893 = vpack.c.b16 %v1878, %v1877
        %v1894 = vpack.c.b16 %v1880, %v1879
        %v1895 = vpack.c.b16 %v1882, %v1881
        %v1896 = vpack.c.b16 %v1884, %v1883
        %v1897 = vpack.c.b16 %v1886, %v1885
        %v1898 = vpack.c.b16 %v1888, %v1887
        %v1899 = vpack.c.b16 %v1890, %v1889
        %v1900 = vpack.c.b16 %v1892, %v1891
        %1909 = vmatprep.subr.bf16.mxu0 0
        %1910 = vmatpush1.bf16.msra.mxu0 %v1893
        %1911 = vmatprep.subr.bf16.mxu0 0
        %1912 = vmatpush1.bf16.msra.mxu0 %v1894
        %1913 = vmatprep.subr.bf16.mxu0 0
        %1914 = vmatpush1.bf16.msra.mxu0 %v1895
        %1915 = vmatprep.subr.bf16.mxu0 0
        %1916 = vmatpush1.bf16.msra.mxu0 %v1896
        %1917 = vmatprep.subr.bf16.mxu0 0
        %1918 = vmatpush1.bf16.msra.mxu0 %v1897
        %1919 = vmatprep.subr.bf16.mxu0 0
        %1920 = vmatpush1.bf16.msra.mxu0 %v1898
        %1921 = vmatprep.subr.bf16.mxu0 0
        %1922 = vmatpush1.bf16.msra.mxu0 %v1899
        %1923 = vmatprep.subr.bf16.mxu0 0
        %1924 = vmatpush1.bf16.msra.mxu0 %v1900
        %1925 = vmatprep.subr.bf16.mxu0 0
        %1926 = vmatpush1.bf16.msra.mxu0 0
        %1927 = vmatprep.subr.bf16.mxu0 0
        %1928 = vmatpush1.bf16.msra.mxu0 0
        %1929 = vmatprep.subr.bf16.mxu0 0
        %1930 = vmatpush1.bf16.msra.mxu0 0
        %1931 = vmatprep.subr.bf16.mxu0 0
        %1932 = vmatpush1.bf16.msra.mxu0 0
        %1933 = vmatprep.subr.bf16.mxu0 0
        %1934 = vmatpush1.bf16.msra.mxu0 0
        %1935 = vmatprep.subr.bf16.mxu0 0
        %1936 = vmatpush1.bf16.msra.mxu0 0
        %1937 = vmatprep.subr.bf16.mxu0 0
        %1938 = vmatpush1.bf16.msra.mxu0 0
        %1939 = vmatprep.subr.bf16.mxu0 0
        %1940 = vmatpush1.bf16.msra.mxu0 0
        %1941 = vmatprep.mubr.bf16.mxu0 0
        %1942 = vmatmul.mubr.bf16.gmra.mrb[0].mxu0 %v1838
        %v1943 = vpop.f32.mrb[0].mxu0
        %v1944 = vadd.f32 0.0, %v1943
        %v1945 = vpop.f32.mrb[0].mxu0
        %v1946 = vpop.f32.mrb[0].mxu0
        %v1947 = vadd.f32 0.0, %v1946
        %v1948 = vpop.f32.mrb[0].mxu0
        %1949 = vmatprep.mubr.bf16.mxu0 0
        %1950 = vmatmul.mubr.bf16.gmra.mrb[0].mxu0 %v1839
        %v1951 = vpop.f32.mrb[0].mxu0
        %v1952 = vadd.f32 0.0, %v1951
        %v1953 = vpop.f32.mrb[0].mxu0
        %v1954 = vpop.f32.mrb[0].mxu0
        %v1955 = vadd.f32 0.0, %v1954
        %v1956 = vpop.f32.mrb[0].mxu0
        %1957 = vmatprep.mubr.bf16.mxu0 0
        %1958 = vmatmul.mubr.bf16.gmra.mrb[0].mxu0 %v1840
        %v1959 = vpop.f32.mrb[0].mxu0
        %v1960 = vadd.f32 0.0, %v1959
        %v1961 = vpop.f32.mrb[0].mxu0
        %v1962 = vpop.f32.mrb[0].mxu0
        %v1963 = vadd.f32 0.0, %v1962
        %v1964 = vpop.f32.mrb[0].mxu0
        %1965 = vmatprep.mubr.bf16.mxu0 0
        %1966 = vmatmul.mubr.bf16.gmra.mrb[0].mxu0 %v1841
        %v1967 = vpop.f32.mrb[0].mxu0
        %v1968 = vadd.f32 0.0, %v1967
        %v1969 = vpop.f32.mrb[0].mxu0
        %v1970 = vpop.f32.mrb[0].mxu0
        %v1971 = vadd.f32 0.0, %v1970
        %v1972 = vpop.f32.mrb[0].mxu0
        %1973 = vmatprep.mubr.bf16.mxu0 0
        %1974 = vmatmul.mubr.bf16.gmra.mrb[0].mxu0 %v1842
        %v1975 = vpop.f32.mrb[0].mxu0
        %v1976 = vadd.f32 0.0, %v1975
        %v1977 = vpop.f32.mrb[0].mxu0
        %v1978 = vpop.f32.mrb[0].mxu0
        %v1979 = vadd.f32 0.0, %v1978
        %v1980 = vpop.f32.mrb[0].mxu0
        %1981 = vmatprep.mubr.bf16.mxu0 0
        %1982 = vmatmul.mubr.bf16.gmra.mrb[0].mxu0 %v1843
        %v1983 = vpop.f32.mrb[0].mxu0
        %v1984 = vadd.f32 0.0, %v1983
        %v1985 = vpop.f32.mrb[0].mxu0
        %v1986 = vpop.f32.mrb[0].mxu0
        %v1987 = vadd.f32 0.0, %v1986
        %v1988 = vpop.f32.mrb[0].mxu0
        %1989 = vmatprep.mubr.bf16.mxu0 0
        %1990 = vmatmul.mubr.bf16.gmra.mrb[0].mxu0 %v1844
        %v1991 = vpop.f32.mrb[0].mxu0
        %v1992 = vadd.f32 0.0, %v1991
        %v1993 = vpop.f32.mrb[0].mxu0
        %v1994 = vpop.f32.mrb[0].mxu0
        %v1995 = vpop.f32.mrb[0].mxu0
        %1996 = vdwg.mxu0
        %v1997 = vadd.f32 %v1825, %v1944
        %v1998 = vadd.f32 %v1826, %v1947
        %v1999 = vadd.f32 %v1827, %v1952
        %v2000 = vadd.f32 %v1828, %v1955
        %v2001 = vadd.f32 %v1829, %v1960
        %v2002 = vadd.f32 %v1830, %v1963
        %v2003 = vadd.f32 %v1831, %v1968
        %v2004 = vadd.f32 %v1832, %v1971
        %v2005 = vadd.f32 %v1833, %v1976
        %v2006 = vadd.f32 %v1834, %v1979
        %v2007 = vadd.f32 %v1835, %v1984
        %v2008 = vadd.f32 %v1836, %v1987
        %v2009 = vadd.f32 %v1837, %v1992
        %v2010 = vrot.slane %v702, 2
        %v2011 = vrot.slane %v703, 2
        %v2012 = vrot.slane %v704, 2
        %v2013 = vrot.slane %v705, 2
        %v2014 = vrot.slane %v706, 2
        %v2015 = vrot.slane %v707, 2
        %v2016 = vrot.slane %v708, 2
        %v2017 = vrot.slane %v709, 2
        %v2018 = vrot.slane %v710, 2
        %v2019 = vrot.slane %v711, 2
        %v2020 = vrot.slane %v712, 2
        %v2021 = vrot.slane %v713, 2
        %v2022 = vrot.slane %v714, 2
        %vm2023 = vcmp.lt.s32.totalorder %v736, 6
        %v2024 = vsel %vm2023, %v2021, %v2022
        %v2025 = vsel %vm2023, %v2020, %v2021
        %v2026 = vsel %vm2023, %v2019, %v2020
        %v2027 = vsel %vm2023, %v2018, %v2019
        %v2028 = vsel %vm2023, %v2017, %v2018
        %v2029 = vsel %vm2023, %v2016, %v2017
        %v2030 = vsel %vm2023, %v2015, %v2016
        %v2031 = vsel %vm2023, %v2014, %v2015
        %v2032 = vsel %vm2023, %v2013, %v2014
        %v2033 = vsel %vm2023, %v2012, %v2013
        %v2034 = vsel %vm2023, %v2011, %v2012
        %v2035 = vsel %vm2023, %v2010, %v2011
        %v2036 = vsel %vm2023, %v2022, %v2010
        %v2037 = vpack.c.bf16 %v2033, %v2034
        %v2038 = vpack.c.bf16 %v2031, %v2032
        %v2039 = vpack.c.bf16 %v2029, %v2030
        %v2040 = vpack.c.bf16 %v2027, %v2028
        %v2041 = vpack.c.bf16 %v2025, %v2026
        %v2042 = vpack.c.bf16 %v2036, %v2024
        %v2043 = vpack.c.bf16 %v2035, %v2035
        %v2044 = vld [vmem:[#allocation5 + $0x1c0] sm:$0xf]
        %v2045 = vld [vmem:[#allocation5 + $0x1c4] sm:$0xf]
        %v2046 = vld [vmem:[#allocation5 + $0x1c8] sm:$0xf]
        %v2047 = vld [vmem:[#allocation5 + $0x1cc] sm:$0xf]
        %v2048 = vld [vmem:[#allocation5 + $0x1d0] sm:$0xf]
        %v2049 = vld [vmem:[#allocation5 + $0x1d4] sm:$0xf]
        %v2050 = vld [vmem:[#allocation5 + $0x1d8] sm:$0xf]
        %v2051 = vld [vmem:[#allocation5 + $0x1dc] sm:$0xf]
        %v2052 = vld [vmem:[#allocation5 + $0x1e0] sm:$0xf]
        %v2053 = vld [vmem:[#allocation5 + $0x1e4] sm:$0xf]
        %v2054 = vld [vmem:[#allocation5 + $0x1e8] sm:$0xf]
        %v2055 = vld [vmem:[#allocation5 + $0x1ec] sm:$0xf]
        %v2056 = vld [vmem:[#allocation5 + $0x1f0] sm:$0xf]
        %v2057 = vld [vmem:[#allocation5 + $0x1f4] sm:$0xf]
        %v2058 = vld [vmem:[#allocation5 + $0x1f8] sm:$0xf]
        %v2059 = vld [vmem:[#allocation5 + $0x1fc] sm:$0xf]
        %v2076 = vunpack.c.l.b16 %v2044
        %v2077 = vunpack.c.l.b16 %v2045
        %v2078 = vunpack.c.l.b16 %v2046
        %v2079 = vunpack.c.l.b16 %v2047
        %v2080 = vunpack.c.l.b16 %v2048
        %v2081 = vunpack.c.l.b16 %v2049
        %v2082 = vunpack.c.l.b16 %v2050
        %v2083 = vunpack.c.l.b16 %v2051
        %v2084 = vunpack.c.l.b16 %v2052
        %v2085 = vunpack.c.l.b16 %v2053
        %v2086 = vunpack.c.l.b16 %v2054
        %v2087 = vunpack.c.l.b16 %v2055
        %v2088 = vunpack.c.l.b16 %v2056
        %v2089 = vunpack.c.l.b16 %v2057
        %v2090 = vunpack.c.l.b16 %v2058
        %v2091 = vunpack.c.l.b16 %v2059
        %v2092 = vpack.c.b16 %v2077, %v2076
        %v2093 = vpack.c.b16 %v2079, %v2078
        %v2094 = vpack.c.b16 %v2081, %v2080
        %v2095 = vpack.c.b16 %v2083, %v2082
        %v2096 = vpack.c.b16 %v2085, %v2084
        %v2097 = vpack.c.b16 %v2087, %v2086
        %v2098 = vpack.c.b16 %v2089, %v2088
        %v2099 = vpack.c.b16 %v2091, %v2090
        %2108 = vmatprep.subr.bf16.mxu0 0
        %2109 = vmatpush1.bf16.msra.mxu0 %v2092
        %2110 = vmatprep.subr.bf16.mxu0 0
        %2111 = vmatpush1.bf16.msra.mxu0 %v2093
        %2112 = vmatprep.subr.bf16.mxu0 0
        %2113 = vmatpush1.bf16.msra.mxu0 %v2094
        %2114 = vmatprep.subr.bf16.mxu0 0
        %2115 = vmatpush1.bf16.msra.mxu0 %v2095
        %2116 = vmatprep.subr.bf16.mxu0 0
        %2117 = vmatpush1.bf16.msra.mxu0 %v2096
        %2118 = vmatprep.subr.bf16.mxu0 0
        %2119 = vmatpush1.bf16.msra.mxu0 %v2097
        %2120 = vmatprep.subr.bf16.mxu0 0
        %2121 = vmatpush1.bf16.msra.mxu0 %v2098
        %2122 = vmatprep.subr.bf16.mxu0 0
        %2123 = vmatpush1.bf16.msra.mxu0 %v2099
        %2124 = vmatprep.subr.bf16.mxu0 0
        %2125 = vmatpush1.bf16.msra.mxu0 0
        %2126 = vmatprep.subr.bf16.mxu0 0
        %2127 = vmatpush1.bf16.msra.mxu0 0
        %2128 = vmatprep.subr.bf16.mxu0 0
        %2129 = vmatpush1.bf16.msra.mxu0 0
        %2130 = vmatprep.subr.bf16.mxu0 0
        %2131 = vmatpush1.bf16.msra.mxu0 0
        %2132 = vmatprep.subr.bf16.mxu0 0
        %2133 = vmatpush1.bf16.msra.mxu0 0
        %2134 = vmatprep.subr.bf16.mxu0 0
        %2135 = vmatpush1.bf16.msra.mxu0 0
        %2136 = vmatprep.subr.bf16.mxu0 0
        %2137 = vmatpush1.bf16.msra.mxu0 0
        %2138 = vmatprep.subr.bf16.mxu0 0
        %2139 = vmatpush1.bf16.msra.mxu0 0
        %2140 = vmatprep.mubr.bf16.mxu0 0
        %2141 = vmatmul.mubr.bf16.gmra.mrb[0].mxu0 %v2037
        %v2142 = vpop.f32.mrb[0].mxu0
        %v2143 = vadd.f32 0.0, %v2142
        %v2144 = vpop.f32.mrb[0].mxu0
        %v2145 = vpop.f32.mrb[0].mxu0
        %v2146 = vadd.f32 0.0, %v2145
        %v2147 = vpop.f32.mrb[0].mxu0
        %2148 = vmatprep.mubr.bf16.mxu0 0
        %2149 = vmatmul.mubr.bf16.gmra.mrb[0].mxu0 %v2038
        %v2150 = vpop.f32.mrb[0].mxu0
        %v2151 = vadd.f32 0.0, %v2150
        %v2152 = vpop.f32.mrb[0].mxu0
        %v2153 = vpop.f32.mrb[0].mxu0
        %v2154 = vadd.f32 0.0, %v2153
        %v2155 = vpop.f32.mrb[0].mxu0
        %2156 = vmatprep.mubr.bf16.mxu0 0
        %2157 = vmatmul.mubr.bf16.gmra.mrb[0].mxu0 %v2039
        %v2158 = vpop.f32.mrb[0].mxu0
        %v2159 = vadd.f32 0.0, %v2158
        %v2160 = vpop.f32.mrb[0].mxu0
        %v2161 = vpop.f32.mrb[0].mxu0
        %v2162 = vadd.f32 0.0, %v2161
        %v2163 = vpop.f32.mrb[0].mxu0
        %2164 = vmatprep.mubr.bf16.mxu0 0
        %2165 = vmatmul.mubr.bf16.gmra.mrb[0].mxu0 %v2040
        %v2166 = vpop.f32.mrb[0].mxu0
        %v2167 = vadd.f32 0.0, %v2166
        %v2168 = vpop.f32.mrb[0].mxu0
        %v2169 = vpop.f32.mrb[0].mxu0
        %v2170 = vadd.f32 0.0, %v2169
        %v2171 = vpop.f32.mrb[0].mxu0
        %2172 = vmatprep.mubr.bf16.mxu0 0
        %2173 = vmatmul.mubr.bf16.gmra.mrb[0].mxu0 %v2041
        %v2174 = vpop.f32.mrb[0].mxu0
        %v2175 = vadd.f32 0.0, %v2174
        %v2176 = vpop.f32.mrb[0].mxu0
        %v2177 = vpop.f32.mrb[0].mxu0
        %v2178 = vadd.f32 0.0, %v2177
        %v2179 = vpop.f32.mrb[0].mxu0
        %2180 = vmatprep.mubr.bf16.mxu0 0
        %2181 = vmatmul.mubr.bf16.gmra.mrb[0].mxu0 %v2042
        %v2182 = vpop.f32.mrb[0].mxu0
        %v2183 = vadd.f32 0.0, %v2182
        %v2184 = vpop.f32.mrb[0].mxu0
        %v2185 = vpop.f32.mrb[0].mxu0
        %v2186 = vadd.f32 0.0, %v2185
        %v2187 = vpop.f32.mrb[0].mxu0
        %2188 = vmatprep.mubr.bf16.mxu0 0
        %2189 = vmatmul.mubr.bf16.gmra.mrb[0].mxu0 %v2043
        %v2190 = vpop.f32.mrb[0].mxu0
        %v2191 = vadd.f32 0.0, %v2190
        %v2192 = vpop.f32.mrb[0].mxu0
        %v2193 = vpop.f32.mrb[0].mxu0
        %v2194 = vpop.f32.mrb[0].mxu0
        %2195 = vdwg.mxu0
        %v2196 = vadd.f32 %v1997, %v2143
        %v2197 = vadd.f32 %v1998, %v2146
        %v2198 = vadd.f32 %v1999, %v2151
        %v2199 = vadd.f32 %v2000, %v2154
        %v2200 = vadd.f32 %v2001, %v2159
        %v2201 = vadd.f32 %v2002, %v2162
        %v2202 = vadd.f32 %v2003, %v2167
        %v2203 = vadd.f32 %v2004, %v2170
        %v2204 = vadd.f32 %v2005, %v2175
        %v2205 = vadd.f32 %v2006, %v2178
        %v2206 = vadd.f32 %v2007, %v2183
        %v2207 = vadd.f32 %v2008, %v2186
        %v2208 = vadd.f32 %v2009, %v2191
        %v2209 = vrot.slane %v702, 3
        %v2210 = vrot.slane %v703, 3
        %v2211 = vrot.slane %v704, 3
        %v2212 = vrot.slane %v705, 3
        %v2213 = vrot.slane %v706, 3
        %v2214 = vrot.slane %v707, 3
        %v2215 = vrot.slane %v708, 3
        %v2216 = vrot.slane %v709, 3
        %v2217 = vrot.slane %v710, 3
        %v2218 = vrot.slane %v711, 3
        %v2219 = vrot.slane %v712, 3
        %v2220 = vrot.slane %v713, 3
        %v2221 = vrot.slane %v714, 3
        %vm2222 = vcmp.lt.s32.totalorder %v736, 5
        %v2223 = vsel %vm2222, %v2220, %v2221
        %v2224 = vsel %vm2222, %v2219, %v2220
        %v2225 = vsel %vm2222, %v2218, %v2219
        %v2226 = vsel %vm2222, %v2217, %v2218
        %v2227 = vsel %vm2222, %v2216, %v2217
        %v2228 = vsel %vm2222, %v2215, %v2216
        %v2229 = vsel %vm2222, %v2214, %v2215
        %v2230 = vsel %vm2222, %v2213, %v2214
        %v2231 = vsel %vm2222, %v2212, %v2213
        %v2232 = vsel %vm2222, %v2211, %v2212
        %v2233 = vsel %vm2222, %v2210, %v2211
        %v2234 = vsel %vm2222, %v2209, %v2210
        %v2235 = vsel %vm2222, %v2221, %v2209
        %v2236 = vpack.c.bf16 %v2232, %v2233
        %v2237 = vpack.c.bf16 %v2230, %v2231
        %v2238 = vpack.c.bf16 %v2228, %v2229
        %v2239 = vpack.c.bf16 %v2226, %v2227
        %v2240 = vpack.c.bf16 %v2224, %v2225
        %v2241 = vpack.c.bf16 %v2235, %v2223
        %v2242 = vpack.c.bf16 %v2234, %v2234
        %v2243 = vld [vmem:[#allocation5 + $0x200] sm:$0xf]
        %v2244 = vld [vmem:[#allocation5 + $0x204] sm:$0xf]
        %v2245 = vld [vmem:[#allocation5 + $0x208] sm:$0xf]
        %v2246 = vld [vmem:[#allocation5 + $0x20c] sm:$0xf]
        %v2247 = vld [vmem:[#allocation5 + $0x210] sm:$0xf]
        %v2248 = vld [vmem:[#allocation5 + $0x214] sm:$0xf]
        %v2249 = vld [vmem:[#allocation5 + $0x218] sm:$0xf]
        %v2250 = vld [vmem:[#allocation5 + $0x21c] sm:$0xf]
        %v2251 = vld [vmem:[#allocation5 + $0x220] sm:$0xf]
        %v2252 = vld [vmem:[#allocation5 + $0x224] sm:$0xf]
        %v2253 = vld [vmem:[#allocation5 + $0x228] sm:$0xf]
        %v2254 = vld [vmem:[#allocation5 + $0x22c] sm:$0xf]
        %v2255 = vld [vmem:[#allocation5 + $0x230] sm:$0xf]
        %v2256 = vld [vmem:[#allocation5 + $0x234] sm:$0xf]
        %v2257 = vld [vmem:[#allocation5 + $0x238] sm:$0xf]
        %v2258 = vld [vmem:[#allocation5 + $0x23c] sm:$0xf]
        %v2275 = vunpack.c.l.b16 %v2243
        %v2276 = vunpack.c.l.b16 %v2244
        %v2277 = vunpack.c.l.b16 %v2245
        %v2278 = vunpack.c.l.b16 %v2246
        %v2279 = vunpack.c.l.b16 %v2247
        %v2280 = vunpack.c.l.b16 %v2248
        %v2281 = vunpack.c.l.b16 %v2249
        %v2282 = vunpack.c.l.b16 %v2250
        %v2283 = vunpack.c.l.b16 %v2251
        %v2284 = vunpack.c.l.b16 %v2252
        %v2285 = vunpack.c.l.b16 %v2253
        %v2286 = vunpack.c.l.b16 %v2254
        %v2287 = vunpack.c.l.b16 %v2255
        %v2288 = vunpack.c.l.b16 %v2256
        %v2289 = vunpack.c.l.b16 %v2257
        %v2290 = vunpack.c.l.b16 %v2258
        %v2291 = vpack.c.b16 %v2276, %v2275
        %v2292 = vpack.c.b16 %v2278, %v2277
        %v2293 = vpack.c.b16 %v2280, %v2279
        %v2294 = vpack.c.b16 %v2282, %v2281
        %v2295 = vpack.c.b16 %v2284, %v2283
        %v2296 = vpack.c.b16 %v2286, %v2285
        %v2297 = vpack.c.b16 %v2288, %v2287
        %v2298 = vpack.c.b16 %v2290, %v2289
        %2307 = vmatprep.subr.bf16.mxu0 0
        %2308 = vmatpush1.bf16.msra.mxu0 %v2291
        %2309 = vmatprep.subr.bf16.mxu0 0
        %2310 = vmatpush1.bf16.msra.mxu0 %v2292
        %2311 = vmatprep.subr.bf16.mxu0 0
        %2312 = vmatpush1.bf16.msra.mxu0 %v2293
        %2313 = vmatprep.subr.bf16.mxu0 0
        %2314 = vmatpush1.bf16.msra.mxu0 %v2294
        %2315 = vmatprep.subr.bf16.mxu0 0
        %2316 = vmatpush1.bf16.msra.mxu0 %v2295
        %2317 = vmatprep.subr.bf16.mxu0 0
        %2318 = vmatpush1.bf16.msra.mxu0 %v2296
        %2319 = vmatprep.subr.bf16.mxu0 0
        %2320 = vmatpush1.bf16.msra.mxu0 %v2297
        %2321 = vmatprep.subr.bf16.mxu0 0
        %2322 = vmatpush1.bf16.msra.mxu0 %v2298
        %2323 = vmatprep.subr.bf16.mxu0 0
        %2324 = vmatpush1.bf16.msra.mxu0 0
        %2325 = vmatprep.subr.bf16.mxu0 0
        %2326 = vmatpush1.bf16.msra.mxu0 0
        %2327 = vmatprep.subr.bf16.mxu0 0
        %2328 = vmatpush1.bf16.msra.mxu0 0
        %2329 = vmatprep.subr.bf16.mxu0 0
        %2330 = vmatpush1.bf16.msra.mxu0 0
        %2331 = vmatprep.subr.bf16.mxu0 0
        %2332 = vmatpush1.bf16.msra.mxu0 0
        %2333 = vmatprep.subr.bf16.mxu0 0
        %2334 = vmatpush1.bf16.msra.mxu0 0
        %2335 = vmatprep.subr.bf16.mxu0 0
        %2336 = vmatpush1.bf16.msra.mxu0 0
        %2337 = vmatprep.subr.bf16.mxu0 0
        %2338 = vmatpush1.bf16.msra.mxu0 0
        %2339 = vmatprep.mubr.bf16.mxu0 0
        %2340 = vmatmul.mubr.bf16.gmra.mrb[0].mxu0 %v2236
        %v2341 = vpop.f32.mrb[0].mxu0
        %v2342 = vadd.f32 0.0, %v2341
        %v2343 = vpop.f32.mrb[0].mxu0
        %v2344 = vpop.f32.mrb[0].mxu0
        %v2345 = vadd.f32 0.0, %v2344
        %v2346 = vpop.f32.mrb[0].mxu0
        %2347 = vmatprep.mubr.bf16.mxu0 0
        %2348 = vmatmul.mubr.bf16.gmra.mrb[0].mxu0 %v2237
        %v2349 = vpop.f32.mrb[0].mxu0
        %v2350 = vadd.f32 0.0, %v2349
        %v2351 = vpop.f32.mrb[0].mxu0
        %v2352 = vpop.f32.mrb[0].mxu0
        %v2353 = vadd.f32 0.0, %v2352
        %v2354 = vpop.f32.mrb[0].mxu0
        %2355 = vmatprep.mubr.bf16.mxu0 0
        %2356 = vmatmul.mubr.bf16.gmra.mrb[0].mxu0 %v2238
        %v2357 = vpop.f32.mrb[0].mxu0
        %v2358 = vadd.f32 0.0, %v2357
        %v2359 = vpop.f32.mrb[0].mxu0
        %v2360 = vpop.f32.mrb[0].mxu0
        %v2361 = vadd.f32 0.0, %v2360
        %v2362 = vpop.f32.mrb[0].mxu0
        %2363 = vmatprep.mubr.bf16.mxu0 0
        %2364 = vmatmul.mubr.bf16.gmra.mrb[0].mxu0 %v2239
        %v2365 = vpop.f32.mrb[0].mxu0
        %v2366 = vadd.f32 0.0, %v2365
        %v2367 = vpop.f32.mrb[0].mxu0
        %v2368 = vpop.f32.mrb[0].mxu0
        %v2369 = vadd.f32 0.0, %v2368
        %v2370 = vpop.f32.mrb[0].mxu0
        %2371 = vmatprep.mubr.bf16.mxu0 0
        %2372 = vmatmul.mubr.bf16.gmra.mrb[0].mxu0 %v2240
        %v2373 = vpop.f32.mrb[0].mxu0
        %v2374 = vadd.f32 0.0, %v2373
        %v2375 = vpop.f32.mrb[0].mxu0
        %v2376 = vpop.f32.mrb[0].mxu0
        %v2377 = vadd.f32 0.0, %v2376
        %v2378 = vpop.f32.mrb[0].mxu0
        %2379 = vmatprep.mubr.bf16.mxu0 0
        %2380 = vmatmul.mubr.bf16.gmra.mrb[0].mxu0 %v2241
        %v2381 = vpop.f32.mrb[0].mxu0
        %v2382 = vadd.f32 0.0, %v2381
        %v2383 = vpop.f32.mrb[0].mxu0
        %v2384 = vpop.f32.mrb[0].mxu0
        %v2385 = vadd.f32 0.0, %v2384
        %v2386 = vpop.f32.mrb[0].mxu0
        %2387 = vmatprep.mubr.bf16.mxu0 0
        %2388 = vmatmul.mubr.bf16.gmra.mrb[0].mxu0 %v2242
        %v2389 = vpop.f32.mrb[0].mxu0
        %v2390 = vadd.f32 0.0, %v2389
        %v2391 = vpop.f32.mrb[0].mxu0
        %v2392 = vpop.f32.mrb[0].mxu0
        %v2393 = vpop.f32.mrb[0].mxu0
        %2394 = vdwg.mxu0
        %v2395 = vadd.f32 %v2196, %v2342
        %v2396 = vadd.f32 %v2197, %v2345
        %v2397 = vadd.f32 %v2198, %v2350
        %v2398 = vadd.f32 %v2199, %v2353
        %v2399 = vadd.f32 %v2200, %v2358
        %v2400 = vadd.f32 %v2201, %v2361
        %v2401 = vadd.f32 %v2202, %v2366
        %v2402 = vadd.f32 %v2203, %v2369
        %v2403 = vadd.f32 %v2204, %v2374
        %v2404 = vadd.f32 %v2205, %v2377
        %v2405 = vadd.f32 %v2206, %v2382
        %v2406 = vadd.f32 %v2207, %v2385
        %v2407 = vadd.f32 %v2208, %v2390
        %v2408 = vld [vmem:[%s5] sm:$0x1]
        %v2410 = vlaneseq
        %v2411 = vshrl.u32 %v2410, 7
        %v2412 = vsub.s32 0, %v2411
        %v2413 = vrot.slane %v2408, %v2412
        %v2415 = vadd.f32 %v2395, %v2413
        %v2416 = vadd.f32 %v2396, %v2413
        %v2417 = vadd.f32 %v2397, %v2413
        %v2418 = vadd.f32 %v2398, %v2413
        %v2419 = vadd.f32 %v2399, %v2413
        %v2420 = vadd.f32 %v2400, %v2413
        %v2421 = vadd.f32 %v2401, %v2413
        %v2422 = vadd.f32 %v2402, %v2413
        %v2423 = vadd.f32 %v2403, %v2413
        %v2424 = vadd.f32 %v2404, %v2413
        %v2425 = vadd.f32 %v2405, %v2413
        %v2426 = vadd.f32 %v2406, %v2413
        %v2427 = vadd.f32 %v2407, %v2413
        %v2428 = vmax.f32 %v2415, 0.0
        %v2429 = vmax.f32 %v2416, 0.0
        %v2430 = vmax.f32 %v2417, 0.0
        %v2431 = vmax.f32 %v2418, 0.0
        %v2432 = vmax.f32 %v2419, 0.0
        %v2433 = vmax.f32 %v2420, 0.0
        %v2434 = vmax.f32 %v2421, 0.0
        %v2435 = vmax.f32 %v2422, 0.0
        %v2436 = vmax.f32 %v2423, 0.0
        %v2437 = vmax.f32 %v2424, 0.0
        %v2438 = vmax.f32 %v2425, 0.0
        %v2439 = vmax.f32 %v2426, 0.0
        %v2440 = vmax.f32 %v2427, 0.0
        %v2441 = vpack.c.bf16 %v2429, %v2428
        %v2442 = vpack.c.bf16 %v2431, %v2430
        %v2443 = vpack.c.bf16 %v2433, %v2432
        %v2444 = vpack.c.bf16 %v2435, %v2434
        %v2445 = vpack.c.bf16 %v2437, %v2436
        %v2446 = vpack.c.bf16 %v2439, %v2438
        %v2447 = vpack.c.bf16 %v2440, %v2440
        %v2448 = vld [vmem:[#allocation7] sm:$0xf]
        %v2449 = vld [vmem:[#allocation7 + $0x4] sm:$0xf]
        %v2450 = vld [vmem:[#allocation7 + $0x8] sm:$0xf]
        %v2451 = vld [vmem:[#allocation7 + $0xc] sm:$0xf]
        %v2452 = vld [vmem:[#allocation7 + $0x10] sm:$0xf]
        %v2453 = vld [vmem:[#allocation7 + $0x14] sm:$0xf]
        %v2454 = vld [vmem:[#allocation7 + $0x18] sm:$0xf]
        %v2455 = vld [vmem:[#allocation7 + $0x1c] sm:$0xf]
        %v2456 = vld [vmem:[#allocation7 + $0x20] sm:$0xf]
        %v2457 = vld [vmem:[#allocation7 + $0x24] sm:$0xf]
        %v2458 = vld [vmem:[#allocation7 + $0x28] sm:$0xf]
        %v2459 = vld [vmem:[#allocation7 + $0x2c] sm:$0xf]
        %v2460 = vld [vmem:[#allocation7 + $0x30] sm:$0xf]
        %v2461 = vld [vmem:[#allocation7 + $0x34] sm:$0xf]
        %v2462 = vld [vmem:[#allocation7 + $0x38] sm:$0xf]
        %v2463 = vld [vmem:[#allocation7 + $0x3c] sm:$0xf]
        %v2464 = vld [vmem:[%s7] sm:$0x1]
        %v2466 = vlaneseq
        %v2467 = vshrl.u32 %v2466, 7
        %v2468 = vsub.s32 0, %v2467
        %v2469 = vrot.slane %v2464, %v2468
        %v2487 = vunpack.c.l.b16 %v2448
        %v2488 = vunpack.c.l.b16 %v2449
        %v2489 = vunpack.c.l.b16 %v2450
        %v2490 = vunpack.c.l.b16 %v2451
        %v2491 = vunpack.c.l.b16 %v2452
        %v2492 = vunpack.c.l.b16 %v2453
        %v2493 = vunpack.c.l.b16 %v2454
        %v2494 = vunpack.c.l.b16 %v2455
        %v2495 = vunpack.c.l.b16 %v2456
        %v2496 = vunpack.c.l.b16 %v2457
        %v2497 = vunpack.c.l.b16 %v2458
        %v2498 = vunpack.c.l.b16 %v2459
        %v2499 = vunpack.c.l.b16 %v2460
        %v2500 = vunpack.c.l.b16 %v2461
        %v2501 = vunpack.c.l.b16 %v2462
        %v2502 = vunpack.c.l.b16 %v2463
        %v2503 = vpack.c.b16 %v2488, %v2487
        %v2504 = vpack.c.b16 %v2490, %v2489
        %v2505 = vpack.c.b16 %v2492, %v2491
        %v2506 = vpack.c.b16 %v2494, %v2493
        %v2507 = vpack.c.b16 %v2496, %v2495
        %v2508 = vpack.c.b16 %v2498, %v2497
        %v2509 = vpack.c.b16 %v2500, %v2499
        %v2510 = vpack.c.b16 %v2502, %v2501
        %2519 = vmatprep.subr.bf16.mxu0 0
        %2520 = vmatpush1.bf16.msra.mxu0 %v2503
        %2521 = vmatprep.subr.bf16.mxu0 0
        %2522 = vmatpush1.bf16.msra.mxu0 %v2504
        %2523 = vmatprep.subr.bf16.mxu0 0
        %2524 = vmatpush1.bf16.msra.mxu0 %v2505
        %2525 = vmatprep.subr.bf16.mxu0 0
        %2526 = vmatpush1.bf16.msra.mxu0 %v2506
        %2527 = vmatprep.subr.bf16.mxu0 0
        %2528 = vmatpush1.bf16.msra.mxu0 %v2507
        %2529 = vmatprep.subr.bf16.mxu0 0
        %2530 = vmatpush1.bf16.msra.mxu0 %v2508
        %2531 = vmatprep.subr.bf16.mxu0 0
        %2532 = vmatpush1.bf16.msra.mxu0 %v2509
        %2533 = vmatprep.subr.bf16.mxu0 0
        %2534 = vmatpush1.bf16.msra.mxu0 %v2510
        %2535 = vmatprep.subr.bf16.mxu0 0
        %2536 = vmatpush1.bf16.msra.mxu0 0
        %2537 = vmatprep.subr.bf16.mxu0 0
        %2538 = vmatpush1.bf16.msra.mxu0 0
        %2539 = vmatprep.subr.bf16.mxu0 0
        %2540 = vmatpush1.bf16.msra.mxu0 0
        %2541 = vmatprep.subr.bf16.mxu0 0
        %2542 = vmatpush1.bf16.msra.mxu0 0
        %2543 = vmatprep.subr.bf16.mxu0 0
        %2544 = vmatpush1.bf16.msra.mxu0 0
        %2545 = vmatprep.subr.bf16.mxu0 0
        %2546 = vmatpush1.bf16.msra.mxu0 0
        %2547 = vmatprep.subr.bf16.mxu0 0
        %2548 = vmatpush1.bf16.msra.mxu0 0
        %2549 = vmatprep.subr.bf16.mxu0 0
        %2550 = vmatpush1.bf16.msra.mxu0 0
        %2551 = vmatprep.mubr.bf16.mxu0 0
        %2552 = vmatmul.mubr.bf16.gmra.mrb[0].mxu0 %v2441
        %v2553 = vpop.f32.mrb[0].mxu0
        %v2554 = vadd.f32 %v2469, %v2553
        %v2555 = vpop.f32.mrb[0].mxu0
        %v2556 = vpop.f32.mrb[0].mxu0
        %v2557 = vadd.f32 %v2469, %v2556
        %v2558 = vpop.f32.mrb[0].mxu0
        %2559 = vmatprep.mubr.bf16.mxu0 0
        %2560 = vmatmul.mubr.bf16.gmra.mrb[0].mxu0 %v2442
        %v2561 = vpop.f32.mrb[0].mxu0
        %v2562 = vadd.f32 %v2469, %v2561
        %v2563 = vpop.f32.mrb[0].mxu0
        %v2564 = vpop.f32.mrb[0].mxu0
        %v2565 = vadd.f32 %v2469, %v2564
        %v2566 = vpop.f32.mrb[0].mxu0
        %2567 = vmatprep.mubr.bf16.mxu0 0
        %2568 = vmatmul.mubr.bf16.gmra.mrb[0].mxu0 %v2443
        %v2569 = vpop.f32.mrb[0].mxu0
        %v2570 = vadd.f32 %v2469, %v2569
        %v2571 = vpop.f32.mrb[0].mxu0
        %v2572 = vpop.f32.mrb[0].mxu0
        %v2573 = vadd.f32 %v2469, %v2572
        %v2574 = vpop.f32.mrb[0].mxu0
        %2575 = vmatprep.mubr.bf16.mxu0 0
        %2576 = vmatmul.mubr.bf16.gmra.mrb[0].mxu0 %v2444
        %v2577 = vpop.f32.mrb[0].mxu0
        %v2578 = vadd.f32 %v2469, %v2577
        %v2579 = vpop.f32.mrb[0].mxu0
        %v2580 = vpop.f32.mrb[0].mxu0
        %v2581 = vadd.f32 %v2469, %v2580
        %v2582 = vpop.f32.mrb[0].mxu0
        %2583 = vmatprep.mubr.bf16.mxu0 0
        %2584 = vmatmul.mubr.bf16.gmra.mrb[0].mxu0 %v2445
        %v2585 = vpop.f32.mrb[0].mxu0
        %v2586 = vadd.f32 %v2469, %v2585
        %v2587 = vpop.f32.mrb[0].mxu0
        %v2588 = vpop.f32.mrb[0].mxu0
        %v2589 = vadd.f32 %v2469, %v2588
        %v2590 = vpop.f32.mrb[0].mxu0
        %2591 = vmatprep.mubr.bf16.mxu0 0
        %2592 = vmatmul.mubr.bf16.gmra.mrb[0].mxu0 %v2446
        %v2593 = vpop.f32.mrb[0].mxu0
        %v2594 = vadd.f32 %v2469, %v2593
        %v2595 = vpop.f32.mrb[0].mxu0
        %v2596 = vpop.f32.mrb[0].mxu0
        %v2597 = vadd.f32 %v2469, %v2596
        %v2598 = vpop.f32.mrb[0].mxu0
        %2599 = vmatprep.mubr.bf16.mxu0 0
        %2600 = vmatmul.mubr.bf16.gmra.mrb[0].mxu0 %v2447
        %v2601 = vpop.f32.mrb[0].mxu0
        %v2602 = vadd.f32 %v2469, %v2601
        %v2603 = vpop.f32.mrb[0].mxu0
        %v2604 = vpop.f32.mrb[0].mxu0
        %v2605 = vpop.f32.mrb[0].mxu0
        %2606 = vdwg.mxu0
        %v2607 = vunpack.c.l.bf16 %v715
        %v2608 = vunpack.c.h.bf16 %v715
        %v2609 = vunpack.c.l.bf16 %v716
        %v2610 = vunpack.c.h.bf16 %v716
        %v2611 = vunpack.c.l.bf16 %v717
        %v2612 = vunpack.c.h.bf16 %v717
        %v2613 = vunpack.c.l.bf16 %v718
        %v2614 = vunpack.c.h.bf16 %v718
        %v2615 = vunpack.c.l.bf16 %v719
        %v2616 = vunpack.c.h.bf16 %v719
        %v2617 = vunpack.c.l.bf16 %v720
        %v2618 = vunpack.c.h.bf16 %v720
        %v2619 = vunpack.c.l.bf16 %v721
        %v2620 = vadd.f32 %v2554, %v2607
        %v2621 = vadd.f32 %v2557, %v2608
        %v2622 = vadd.f32 %v2562, %v2609
        %v2623 = vadd.f32 %v2565, %v2610
        %v2624 = vadd.f32 %v2570, %v2611
        %v2625 = vadd.f32 %v2573, %v2612
        %v2626 = vadd.f32 %v2578, %v2613
        %v2627 = vadd.f32 %v2581, %v2614
        %v2628 = vadd.f32 %v2586, %v2615
        %v2629 = vadd.f32 %v2589, %v2616
        %v2630 = vadd.f32 %v2594, %v2617
        %v2631 = vadd.f32 %v2597, %v2618
        %v2632 = vadd.f32 %v2602, %v2619
        %v2633 = vmax.f32 %v2620, 0.0
        %v2634 = vmax.f32 %v2621, 0.0
        %v2635 = vmax.f32 %v2622, 0.0
        %v2636 = vmax.f32 %v2623, 0.0
        %v2637 = vmax.f32 %v2624, 0.0
        %v2638 = vmax.f32 %v2625, 0.0
        %v2639 = vmax.f32 %v2626, 0.0
        %v2640 = vmax.f32 %v2627, 0.0
        %v2641 = vmax.f32 %v2628, 0.0
        %v2642 = vmax.f32 %v2629, 0.0
        %v2643 = vmax.f32 %v2630, 0.0
        %v2644 = vmax.f32 %v2631, 0.0
        %v2645 = vmax.f32 %v2632, 0.0
        %v2646 = vpack.c.bf16 %v2634, %v2633
        %v2647 = vpack.c.bf16 %v2636, %v2635
        %v2648 = vpack.c.bf16 %v2638, %v2637
        %v2649 = vpack.c.bf16 %v2640, %v2639
        %v2650 = vpack.c.bf16 %v2642, %v2641
        %v2651 = vpack.c.bf16 %v2644, %v2643
        %v2652 = vpack.c.bf16 %v2645, %v2645
        %v2660 = vunpack.c.l.b16 %v2646
        %v2661 = vunpack.c.h.b16 %v2646
        %v2662 = vunpack.c.l.b16 %v2647
        %v2663 = vunpack.c.h.b16 %v2647
        %v2664 = vunpack.c.l.b16 %v2648
        %v2665 = vunpack.c.h.b16 %v2648
        %v2666 = vunpack.c.l.b16 %v2649
        %v2667 = vunpack.c.h.b16 %v2649
        %v2668 = vunpack.c.l.b16 %v2650
        %v2669 = vunpack.c.h.b16 %v2650
        %v2670 = vunpack.c.l.b16 %v2651
        %v2671 = vunpack.c.h.b16 %v2651
        %v2672 = vunpack.c.l.b16 %v2652
        %v2673 = vpack.c.b16 %v2660, %v2660
        %v2674 = vpack.c.b16 %v2661, %v2661
        %v2675 = vpack.c.b16 %v2662, %v2662
        %v2676 = vpack.c.b16 %v2663, %v2663
        %v2677 = vpack.c.b16 %v2664, %v2664
        %v2678 = vpack.c.b16 %v2665, %v2665
        %v2679 = vpack.c.b16 %v2666, %v2666
        %v2680 = vpack.c.b16 %v2667, %v2667
        %v2681 = vpack.c.b16 %v2668, %v2668
        %v2682 = vpack.c.b16 %v2669, %v2669
        %v2683 = vpack.c.b16 %v2670, %v2670
        %v2684 = vpack.c.b16 %v2671, %v2671
        %v2685 = vpack.c.b16 %v2672, %v2672
        %2699 = vst [vmem:[%s342] sm:$0xf] %v2673
        %2700 = vst [vmem:[%s342 + $0x4] sm:$0xf] %v2674
        %2701 = vst [vmem:[%s342 + $0x8] sm:$0xf] %v2675
        %2702 = vst [vmem:[%s342 + $0xc] sm:$0xf] %v2676
        %2703 = vst [vmem:[%s342 + $0x10] sm:$0xf] %v2677
        %2704 = vst [vmem:[%s342 + $0x14] sm:$0xf] %v2678
        %2705 = vst [vmem:[%s342 + $0x18] sm:$0xf] %v2679
        %2706 = vst [vmem:[%s342 + $0x1c] sm:$0xf] %v2680
        %2707 = vst [vmem:[%s342 + $0x20] sm:$0xf] %v2681
        %2708 = vst [vmem:[%s342 + $0x24] sm:$0xf] %v2682
        %2709 = vst [vmem:[%s342 + $0x28] sm:$0xf] %v2683
        %2710 = vst [vmem:[%s342 + $0x2c] sm:$0xf] %v2684
        %2711 = vst [vmem:[%s342 + $0x30] sm:$0xf] %v2685
        %s2712 = sand.u32 %s205, 1
        %s2713 = scalar_lea.sflag [#allocation4], %s2712
        %s2714 = sand.u32 %s205, 1
        %s2715 = smul.addr %s2714, 52
        %s2716 = scalar_lea.vmem [#allocation8], %s2715
        // Predicated region
        $region65: #{tpu_custom_call.1} parent=51 // pred_check
          %p2717 = pneg %p215
        $region66: #{tpu_custom_call.1} parent=51 // pred_check_branch
          %2719 = sbr.rel (%p2717) target = $region68
        $region67: #{tpu_custom_call.1} parent=51 // pred_region
          %s2721 = ssub.s32 832, 832
          %2722 = vsyncadd %s2713, %s2721
          %s2723 = smul.addr %s24, 13
          %s2724 = smul.addr %s2723, 64
          %s2725 = scalar_lea.hbm %s8, %s2724
          %s2726 = sshll.u32 %s2716, 4
          %s2727 = int_to_ptr.vmem [resolvable:$true] %s2726
          %2732 = dma.vmem_to_hbm [thread:$0]  %s2727, 832, %s2725, %s2713, 64, 64, 4
        $region68: #{tpu_custom_call.1} parent=51 // pred_fallthru
          _
      $region52: #{tpu_custom_call.1} parent=5 // pred_fallthru
        _
      %p2733 = scmp.le.s32.totalorder 2, %s19
      // Predicated region
      $region69: #{tpu_custom_call.1} parent=5 // pred_check
        %p2734 = pneg %p2733
      $region70: #{tpu_custom_call.1} parent=5 // pred_check_branch
        %2736 = sbr.rel (%p2734) target = $region72
      $region71: #{tpu_custom_call.1} parent=5 // pred_region
        %s2737 = ssub.s32 %s19, 2
        // Predicated region
        $region73: #{tpu_custom_call.1} parent=71 // pred_check
          %p2738 = pneg %p221
        $region74: #{tpu_custom_call.1} parent=71 // pred_check_branch
          %2740 = sbr.rel (%p2738) target = $region76
        $region75: #{tpu_custom_call.1} parent=71 // pred_region
          %s2741 = sand.u32 %s206, 1
          %s2742 = scalar_lea.sflag [#allocation4], %s2741
          %s2743 = sand.u32 %s206, 1
          %s2744 = smul.addr %s2743, 52
          %s2745 = scalar_lea.vmem [#allocation8], %s2744
          %2746 = dma.done %s2742, 832
        $region76: #{tpu_custom_call.1} parent=71 // pred_fallthru
          _
      $region72: #{tpu_custom_call.1} parent=5 // pred_fallthru
        _
    $region6: #{tpu_custom_call.1} parent=1 // loop_footer
      %s23 = sadd.s32 1, %s19
    $region7: #{tpu_custom_call.1} parent=1 // loop_footer_branch
      %18 = sbr.rel target = $region3
    $region8: #{tpu_custom_call.1} parent=1 // loop_exit
      _
    %2747 = vsyncpa [#allocation3], 1
    %s2748 = scalar_lea.sflag [#allocation3], 1
    %2749 = vsyncpa %s2748, 1
    %2750 = vsyncpa [#allocation6], 1
    %2751 = vsyncpa [#allocation4], 1
    %s2752 = scalar_lea.sflag [#allocation4], 1
    %2753 = vsyncpa %s2752, 1

// kernel: tpu_custom_call.1
$region0: #{tpu_custom_call.1}
  #allocation0 [shape = 'u32[]', space=smem, size = 0x4, offset = 0x4, fixed_abs, tag = 'smem constant byte address 0x4 - core index']
  #allocation1 [shape = 'u32[144,128]{1,0:T(1,128)}', space=vmem, size = 0x12000, scoped, tag = 'internal scratch']
  %s0 = inlined_call_operand.vmem [shape: bf16[2,104,128], index: 0, kind: input, shape index: {}]
  %s1 = inlined_call_operand.vmem [shape: f32[104,1], index: 1, kind: input, shape index: {}]
  %s2 = inlined_call_operand.hbm [shape: bf16[128,256], index: 2, kind: input, shape index: {}]
  %s3 = inlined_call_operand.vmem [shape: f32[1,256], index: 3, kind: input, shape index: {}]
  %s4 = inlined_call_operand.hbm [shape: bf16[1152,128], index: 4, kind: input, shape index: {}]
  %s5 = inlined_call_operand.vmem [shape: f32[1,128], index: 5, kind: input, shape index: {}]
  %s6 = inlined_call_operand.hbm [shape: bf16[128,128], index: 6, kind: input, shape index: {}]
  %s7 = inlined_call_operand.vmem [shape: f32[1,128], index: 7, kind: input, shape index: {}]
  %s8 = inlined_call_operand.hbm [shape: bf16[2,104,128], index: 8, kind: output, shape index: {}]
  %s9 = sld [smem:[#allocation0]]
  $region77: #{tpu_custom_call.1} parent=0
    _
  %s11 = ssub.s32 1, %s9
  %s12 = scalar_select 0, %s11, %s9
  $region1: #{tpu_custom_call.1} parent=0
    #allocation2 [shape = 'u8[65536]{0}', space=vmem, size = 0x10000, scoped, tag = 'input window, operand 2, single buffered']
    #allocation3 [shape = 's32[2]{0}', space=sflag, size = 0x8, scoped, tag = 'scoped memory for tpu_custom_call.1']
    #allocation4 [shape = 's32[2]{0}', space=sflag, size = 0x8, scoped, tag = 'scoped memory for tpu_custom_call.1']
    #allocation5 [shape = 'u8[294912]{0}', space=vmem, size = 0x48000, scoped, tag = 'input window, operand 4, single buffered']
    #allocation6 [shape = 's32[1]{0}', space=sflag, size = 0x4, scoped, tag = 'scoped memory for tpu_custom_call.1']
    #allocation7 [shape = 'u8[32768]{0}', space=vmem, size = 0x8000, scoped, tag = 'input window, operand 6, single buffered']
    #allocation8 [shape = 'u8[53248]{0}', space=vmem, size = 0xd000, scoped, tag = 'output window, operand 0']
    %13 = vsyncpa [#allocation3], 0
    %14 = vsyncpa [#allocation6], 0
    %15 = vsyncpa [#allocation4], 0
    %s16 = scalar_lea.sflag [#allocation4], 1
    %17 = vsyncpa %s16, 0
    loop: start=0, step=1, limit=4
    $region2: #{tpu_custom_call.1} parent=1 // loop_pre_header
      _
    $region3: #{tpu_custom_call.1} parent=1 // loop_header
      %s19 = sphi 0, %s23
      %p20 = scmp.ge.s32.totalorder %s19, 4
      %s29 = sphi 0, %s31
      %s32 = sphi 0, %s29
      %s33 = sphi 0, %s32
      %s49 = sphi 0, %s33
      %s53 = sphi 0, %s53
      %s55 = sphi 0, %s53
      %s56 = sphi 0, %s55
      %s70 = sphi 0, %s56
      %s74 = sphi 0, %s74
      %s76 = sphi 0, %s74
      %s77 = sphi 0, %s76
      %s91 = sphi 0, %s77
      %s95 = sphi 0, %s95
      %s97 = sphi 0, %s95
      %s98 = sphi 0, %s97
      %s112 = sphi 0, %s98
      %s116 = sphi 0, %s116
      %s118 = sphi 0, %s116
      %s119 = sphi 0, %s118
      %s133 = sphi 0, %s119
      %s137 = sphi 0, %s137
      %s139 = sphi 0, %s137
      %s140 = sphi 0, %s139
      %s154 = sphi 0, %s140
      %s158 = sphi 0, %s158
      %s160 = sphi 0, %s158
      %s161 = sphi 0, %s160
      %s175 = sphi 0, %s161
      %s179 = sphi 0, %s179
      %s181 = sphi 0, %s179
      %s182 = sphi 0, %s181
      %s196 = sphi 0, %s182
      %s202 = sphi 0, %s204
      %s205 = sphi 0, %s202
      %s206 = sphi 0, %s205
      %s222 = sphi 0, %s206
    $region4: #{tpu_custom_call.1} parent=1 // loop_header_branch
      %22 = sbr.rel (%p20) target = $region8
    $region5: #{tpu_custom_call.1} parent=1 // loop_body
      %s24 = ssub.s32 %s19, 1
      %s25 = ssub.s32 %s19, 2
      %s26 = sadd.s32 %s19, 1
      %s27 = ssub.s32 %s19, %s26
      %p28 = scmp.eq.s32.totalorder %s27, 0
      %s30 = sadd.s32 %s29, 1
      %s31 = scalar_select %p28, %s29, %s30
      %p34 = pneg %p28
      %p35 = scmp.eq.s32.totalorder %s19, 1
      %p36 = por %p34, %p35
      %p37 = scmp.ne.s32.totalorder %s29, %s32
      %p38 = scmp.eq.s32.totalorder %s19, 0
      %p39 = por %p37, %p38
      %p40 = scmp.ne.s32.totalorder %s29, %s32
      %p41 = scmp.eq.s32.totalorder %s24, 1
      %p42 = por %p40, %p41
      %p43 = scmp.ne.s32.totalorder %s32, %s33
      %p44 = scmp.eq.s32.totalorder %s24, 0
      %p45 = por %p43, %p44
      %p46 = scmp.ne.s32.totalorder %s32, %s33
      %p47 = scmp.eq.s32.totalorder %s25, 1
      %p48 = por %p46, %p47
      %p50 = scmp.ne.s32.totalorder %s33, %s49
      %p51 = scmp.eq.s32.totalorder %s25, 0
      %p52 = por %p50, %p51
      %s54 = sadd.s32 %s53, 1
      %p57 = scmp.eq.s32.totalorder %s19, 1
      %p58 = scmp.ne.s32.totalorder %s53, %s55
      %p59 = scmp.eq.s32.totalorder %s19, 0
      %p60 = por %p58, %p59
      %p61 = scmp.ne.s32.totalorder %s53, %s55
      %p62 = scmp.eq.s32.totalorder %s24, 1
      %p63 = por %p61, %p62
      %p64 = scmp.ne.s32.totalorder %s55, %s56
      %p65 = scmp.eq.s32.totalorder %s24, 0
      %p66 = por %p64, %p65
      %p67 = scmp.ne.s32.totalorder %s55, %s56
      %p68 = scmp.eq.s32.totalorder %s25, 1
      %p69 = por %p67, %p68
      %p71 = scmp.ne.s32.totalorder %s56, %s70
      %p72 = scmp.eq.s32.totalorder %s25, 0
      %p73 = por %p71, %p72
      %s75 = sadd.s32 %s74, 1
      %p78 = scmp.eq.s32.totalorder %s19, 1
      %p79 = scmp.ne.s32.totalorder %s74, %s76
      %p80 = scmp.eq.s32.totalorder %s19, 0
      %p81 = por %p79, %p80
      %p82 = scmp.ne.s32.totalorder %s74, %s76
      %p83 = scmp.eq.s32.totalorder %s24, 1
      %p84 = por %p82, %p83
      %p85 = scmp.ne.s32.totalorder %s76, %s77
      %p86 = scmp.eq.s32.totalorder %s24, 0
      %p87 = por %p85, %p86
      %p88 = scmp.ne.s32.totalorder %s76, %s77
      %p89 = scmp.eq.s32.totalorder %s25, 1
      %p90 = por %p88, %p89
      %p92 = scmp.ne.s32.totalorder %s77, %s91
      %p93 = scmp.eq.s32.totalorder %s25, 0
      %p94 = por %p92, %p93
      %s96 = sadd.s32 %s95, 1
      %p99 = scmp.eq.s32.totalorder %s19, 1
      %p100 = scmp.ne.s32.totalorder %s95, %s97
      %p101 = scmp.eq.s32.totalorder %s19, 0
      %p102 = por %p100, %p101
      %p103 = scmp.ne.s32.totalorder %s95, %s97
      %p104 = scmp.eq.s32.totalorder %s24, 1
      %p105 = por %p103, %p104
      %p106 = scmp.ne.s32.totalorder %s97, %s98
      %p107 = scmp.eq.s32.totalorder %s24, 0
      %p108 = por %p106, %p107
      %p109 = scmp.ne.s32.totalorder %s97, %s98
      %p110 = scmp.eq.s32.totalorder %s25, 1
      %p111 = por %p109, %p110
      %p113 = scmp.ne.s32.totalorder %s98, %s112
      %p114 = scmp.eq.s32.totalorder %s25, 0
      %p115 = por %p113, %p114
      %s117 = sadd.s32 %s116, 1
      %p120 = scmp.eq.s32.totalorder %s19, 1
      %p121 = scmp.ne.s32.totalorder %s116, %s118
      %p122 = scmp.eq.s32.totalorder %s19, 0
      %p123 = por %p121, %p122
      %p124 = scmp.ne.s32.totalorder %s116, %s118
      %p125 = scmp.eq.s32.totalorder %s24, 1
      %p126 = por %p124, %p125
      %p127 = scmp.ne.s32.totalorder %s118, %s119
      %p128 = scmp.eq.s32.totalorder %s24, 0
      %p129 = por %p127, %p128
      %p130 = scmp.ne.s32.totalorder %s118, %s119
      %p131 = scmp.eq.s32.totalorder %s25, 1
      %p132 = por %p130, %p131
      %p134 = scmp.ne.s32.totalorder %s119, %s133
      %p135 = scmp.eq.s32.totalorder %s25, 0
      %p136 = por %p134, %p135
      %s138 = sadd.s32 %s137, 1
      %p141 = scmp.eq.s32.totalorder %s19, 1
      %p142 = scmp.ne.s32.totalorder %s137, %s139
      %p143 = scmp.eq.s32.totalorder %s19, 0
      %p144 = por %p142, %p143
      %p145 = scmp.ne.s32.totalorder %s137, %s139
      %p146 = scmp.eq.s32.totalorder %s24, 1
      %p147 = por %p145, %p146
      %p148 = scmp.ne.s32.totalorder %s139, %s140
      %p149 = scmp.eq.s32.totalorder %s24, 0
      %p150 = por %p148, %p149
      %p151 = scmp.ne.s32.totalorder %s139, %s140
      %p152 = scmp.eq.s32.totalorder %s25, 1
      %p153 = por %p151, %p152
      %p155 = scmp.ne.s32.totalorder %s140, %s154
      %p156 = scmp.eq.s32.totalorder %s25, 0
      %p157 = por %p155, %p156
      %s159 = sadd.s32 %s158, 1
      %p162 = scmp.eq.s32.totalorder %s19, 1
      %p163 = scmp.ne.s32.totalorder %s158, %s160
      %p164 = scmp.eq.s32.totalorder %s19, 0
      %p165 = por %p163, %p164
      %p166 = scmp.ne.s32.totalorder %s158, %s160
      %p167 = scmp.eq.s32.totalorder %s24, 1
      %p168 = por %p166, %p167
      %p169 = scmp.ne.s32.totalorder %s160, %s161
      %p170 = scmp.eq.s32.totalorder %s24, 0
      %p171 = por %p169, %p170
      %p172 = scmp.ne.s32.totalorder %s160, %s161
      %p173 = scmp.eq.s32.totalorder %s25, 1
      %p174 = por %p172, %p173
      %p176 = scmp.ne.s32.totalorder %s161, %s175
      %p177 = scmp.eq.s32.totalorder %s25, 0
      %p178 = por %p176, %p177
      %s180 = sadd.s32 %s179, 1
      %p183 = scmp.eq.s32.totalorder %s19, 1
      %p184 = scmp.ne.s32.totalorder %s179, %s181
      %p185 = scmp.eq.s32.totalorder %s19, 0
      %p186 = por %p184, %p185
      %p187 = scmp.ne.s32.totalorder %s179, %s181
      %p188 = scmp.eq.s32.totalorder %s24, 1
      %p189 = por %p187, %p188
      %p190 = scmp.ne.s32.totalorder %s181, %s182
      %p191 = scmp.eq.s32.totalorder %s24, 0
      %p192 = por %p190, %p191
      %p193 = scmp.ne.s32.totalorder %s181, %s182
      %p194 = scmp.eq.s32.totalorder %s25, 1
      %p195 = por %p193, %p194
      %p197 = scmp.ne.s32.totalorder %s182, %s196
      %p198 = scmp.eq.s32.totalorder %s25, 0
      %p199 = por %p197, %p198
      %s200 = ssub.s32 %s19, %s26
      %p201 = scmp.eq.s32.totalorder %s200, 0
      %s203 = sadd.s32 %s202, 1
      %s204 = scalar_select %p201, %s202, %s203
      %p207 = pneg %p201
      %p208 = scmp.eq.s32.totalorder %s19, 1
      %p209 = por %p207, %p208
      %p210 = scmp.ne.s32.totalorder %s202, %s205
      %p211 = scmp.eq.s32.totalorder %s19, 0
      %p212 = por %p210, %p211
      %p213 = scmp.ne.s32.totalorder %s202, %s205
      %p214 = scmp.eq.s32.totalorder %s24, 1
      %p215 = por %p213, %p214
      %p216 = scmp.ne.s32.totalorder %s205, %s206
      %p217 = scmp.eq.s32.totalorder %s24, 0
      %p218 = por %p216, %p217
      %p219 = scmp.ne.s32.totalorder %s205, %s206
      %p220 = scmp.eq.s32.totalorder %s25, 1
      %p221 = por %p219, %p220
      %p223 = scmp.ne.s32.totalorder %s206, %s222
      %p224 = scmp.eq.s32.totalorder %s25, 0
      %p225 = por %p223, %p224
      %p226 = scmp.le.s32.totalorder 1, %s19
      %p227 = scmp.lt.s32.totalorder %s19, 3
      %p228 = pnand %p226, %p227
      %p229 = pneg %p228
      // Predicated region
      $region9: #{tpu_custom_call.1} parent=5 // pred_check
        _
      $region10: #{tpu_custom_call.1} parent=5 // pred_check_branch
        %231 = sbr.rel (%p228) target = $region12
      $region11: #{tpu_custom_call.1} parent=5 // pred_region
        %s232 = ssub.s32 %s19, 1
        // Predicated region
        $region13: #{tpu_custom_call.1} parent=11 // pred_check
          %p233 = pneg %p66
        $region14: #{tpu_custom_call.1} parent=11 // pred_check_branch
          %235 = sbr.rel (%p233) target = $region16
        $region15: #{tpu_custom_call.1} parent=11 // pred_region
          _
        $region16: #{tpu_custom_call.1} parent=11 // pred_fallthru
          _
        // Predicated region
        $region17: #{tpu_custom_call.1} parent=11 // pred_check
          %p236 = pneg %p87
        $region18: #{tpu_custom_call.1} parent=11 // pred_check_branch
          %238 = sbr.rel (%p236) target = $region20
        $region19: #{tpu_custom_call.1} parent=11 // pred_region
          %s240 = ssub.s32 2048, 2048
          %241 = vsyncadd [#allocation3], %s240
          %s242 = sshll.u32 [#allocation2], 4
          %s243 = int_to_ptr.vmem [resolvable:$true] %s242
          %248 = dma.hbm_to_vmem [thread:$0]  %s2, 2048, %s243, [#allocation3], 128, 128, 8
        $region20: #{tpu_custom_call.1} parent=11 // pred_fallthru
          _
        // Predicated region
        $region21: #{tpu_custom_call.1} parent=11 // pred_check
          %p249 = pneg %p108
        $region22: #{tpu_custom_call.1} parent=11 // pred_check_branch
          %251 = sbr.rel (%p249) target = $region24
        $region23: #{tpu_custom_call.1} parent=11 // pred_region
          _
        $region24: #{tpu_custom_call.1} parent=11 // pred_fallthru
          _
        // Predicated region
        $region25: #{tpu_custom_call.1} parent=11 // pred_check
          %p252 = pneg %p129
        $region26: #{tpu_custom_call.1} parent=11 // pred_check_branch
          %254 = sbr.rel (%p252) target = $region28
        $region27: #{tpu_custom_call.1} parent=11 // pred_region
          %s256 = ssub.s32 9216, 9216
          %257 = vsyncadd [#allocation6], %s256
          %s258 = sshll.u32 [#allocation5], 4
          %s259 = int_to_ptr.vmem [resolvable:$true] %s258
          %264 = dma.hbm_to_vmem [thread:$0]  %s4, 9216, %s259, [#allocation6], 64, 64, 4
        $region28: #{tpu_custom_call.1} parent=11 // pred_fallthru
          _
        // Predicated region
        $region29: #{tpu_custom_call.1} parent=11 // pred_check
          %p265 = pneg %p150
        $region30: #{tpu_custom_call.1} parent=11 // pred_check_branch
          %267 = sbr.rel (%p265) target = $region32
        $region31: #{tpu_custom_call.1} parent=11 // pred_region
          _
        $region32: #{tpu_custom_call.1} parent=11 // pred_fallthru
          _
        // Predicated region
        $region33: #{tpu_custom_call.1} parent=11 // pred_check
          %p268 = pneg %p171
        $region34: #{tpu_custom_call.1} parent=11 // pred_check_branch
          %270 = sbr.rel (%p268) target = $region36
        $region35: #{tpu_custom_call.1} parent=11 // pred_region
          %s272 = ssub.s32 1024, 1024
          %273 = vsyncadd [#allocation6], %s272
          %s274 = sshll.u32 [#allocation7], 4
          %s275 = int_to_ptr.vmem [resolvable:$true] %s274
          %280 = dma.hbm_to_vmem [thread:$0]  %s6, 1024, %s275, [#allocation6], 64, 64, 4
        $region36: #{tpu_custom_call.1} parent=11 // pred_fallthru
          _
        // Predicated region
        $region37: #{tpu_custom_call.1} parent=11 // pred_check
          %p281 = pneg %p192
        $region38: #{tpu_custom_call.1} parent=11 // pred_check_branch
          %283 = sbr.rel (%p281) target = $region40
        $region39: #{tpu_custom_call.1} parent=11 // pred_region
          _
        $region40: #{tpu_custom_call.1} parent=11 // pred_fallthru
          _
      $region12: #{tpu_custom_call.1} parent=5 // pred_fallthru
        _
      %p284 = scmp.lt.s32.totalorder %s19, 2
      // Predicated region
      $region41: #{tpu_custom_call.1} parent=5 // pred_check
        %p285 = pneg %p284
      $region42: #{tpu_custom_call.1} parent=5 // pred_check_branch
        %287 = sbr.rel (%p285) target = $region44
      $region43: #{tpu_custom_call.1} parent=5 // pred_region
        // Predicated region
        $region45: #{tpu_custom_call.1} parent=43 // pred_check
          %p288 = pneg %p39
        $region46: #{tpu_custom_call.1} parent=43 // pred_check_branch
          %290 = sbr.rel (%p288) target = $region48
        $region47: #{tpu_custom_call.1} parent=43 // pred_region
          %p291 = scmp.lt.s32.totalorder %s19, 1
          %s292 = scalar_select %p291, %s19, 1
          %s293 = smul.addr %s292, 13
          %s294 = smul.addr %s293, 4
          %s295 = scalar_lea.vmem %s0, %s294
        $region48: #{tpu_custom_call.1} parent=43 // pred_fallthru
          _
      $region44: #{tpu_custom_call.1} parent=5 // pred_fallthru
        _
      %p296 = scmp.le.s32.totalorder 1, %s19
      %p297 = scmp.lt.s32.totalorder %s19, 3
      %p298 = pnand %p296, %p297
      %p299 = pneg %p298
      // Predicated region
      $region49: #{tpu_custom_call.1} parent=5 // pred_check
        _
      $region50: #{tpu_custom_call.1} parent=5 // pred_check_branch
        %301 = sbr.rel (%p298) target = $region52
      $region51: #{tpu_custom_call.1} parent=5 // pred_region
        %s302 = ssub.s32 %s19, 1
        // Predicated region
        $region53: #{tpu_custom_call.1} parent=51 // pred_check
          %p303 = pneg %p87
        $region54: #{tpu_custom_call.1} parent=51 // pred_check_branch
          %305 = sbr.rel (%p303) target = $region56
        $region55: #{tpu_custom_call.1} parent=51 // pred_region
          %306 = dma.done [#allocation3], 2048
        $region56: #{tpu_custom_call.1} parent=51 // pred_fallthru
          _
        // Predicated region
        $region57: #{tpu_custom_call.1} parent=51 // pred_check
          %p307 = pneg %p129
        $region58: #{tpu_custom_call.1} parent=51 // pred_check_branch
          %309 = sbr.rel (%p307) target = $region60
        $region59: #{tpu_custom_call.1} parent=51 // pred_region
          %310 = dma.done [#allocation6], 9216
        $region60: #{tpu_custom_call.1} parent=51 // pred_fallthru
          _
        // Predicated region
        $region61: #{tpu_custom_call.1} parent=51 // pred_check
          %p311 = pneg %p171
        $region62: #{tpu_custom_call.1} parent=51 // pred_check_branch
          %313 = sbr.rel (%p311) target = $region64
        $region63: #{tpu_custom_call.1} parent=51 // pred_region
          %314 = dma.done [#allocation6], 1024
        $region64: #{tpu_custom_call.1} parent=51 // pred_fallthru
          _
        %p315 = scmp.lt.s32.totalorder %s24, 1
        %s316 = scalar_select %p315, %s24, 1
        %s317 = smul.addr %s316, 13
        %s318 = smul.addr %s317, 4
        %s319 = scalar_lea.vmem %s0, %s318
        %p320 = pneg %p45
        %p321 = pneg %p42
        %p322 = pneg %p66
        %p323 = pneg %p63
        %p324 = pneg %p87
        %p325 = pneg %p84
        %p326 = pneg %p108
        %p327 = pneg %p105
        %p328 = pneg %p129
        %p329 = pneg %p126
        %p330 = pneg %p150
        %p331 = pneg %p147
        %p332 = pneg %p171
        %p333 = pneg %p168
        %p334 = pneg %p192
        %p335 = pneg %p189
        %p336 = pneg %p218
        %p337 = pneg %p215
        %s338 = sand.u32 %s205, 1
        %s339 = scalar_lea.sflag [#allocation4], %s338
        %s340 = sand.u32 %s205, 1
        %s341 = smul.addr %s340, 52
        %s342 = scalar_lea.vmem [#allocation8], %s341
        %p343 = scmp.lt.s32.totalorder %s24, 1
        %s344 = scalar_select %p343, %s24, 1
        %s345 = smul.addr %s344, 13
        %s346 = smul.addr %s345, 4
        %s347 = scalar_lea.vmem %s0, %s346
        %v349 = vld [vmem:[%s347] sm:$0xf]
        %v350 = vld [vmem:[%s347 + $0x4] sm:$0xf]
        %v351 = vld [vmem:[%s347 + $0x8] sm:$0xf]
        %v352 = vld [vmem:[%s347 + $0xc] sm:$0xf]
        %v353 = vld [vmem:[%s347 + $0x10] sm:$0xf]
        %v354 = vld [vmem:[%s347 + $0x14] sm:$0xf]
        %v355 = vld [vmem:[%s347 + $0x18] sm:$0xf]
        %v356 = vld [vmem:[%s347 + $0x1c] sm:$0xf]
        %v357 = vld [vmem:[%s347 + $0x20] sm:$0xf]
        %v358 = vld [vmem:[%s347 + $0x24] sm:$0xf]
        %v359 = vld [vmem:[%s347 + $0x28] sm:$0xf]
        %v360 = vld [vmem:[%s347 + $0x2c] sm:$0xf]
        %v361 = vld [vmem:[%s347 + $0x30] sm:$0xf]
        %v362 = vld [vmem:[#allocation2] sm:$0xff]
        %v363 = vld [vmem:[#allocation2 + $0x8] sm:$0xff]
        %v364 = vld [vmem:[#allocation2 + $0x10] sm:$0xff]
        %v365 = vld [vmem:[#allocation2 + $0x18] sm:$0xff]
        %v366 = vld [vmem:[#allocation2 + $0x20] sm:$0xff]
        %v367 = vld [vmem:[#allocation2 + $0x28] sm:$0xff]
        %v368 = vld [vmem:[#allocation2 + $0x30] sm:$0xff]
        %v369 = vld [vmem:[#allocation2 + $0x38] sm:$0xff]
        %v370 = vld [vmem:[#allocation2 + $0x40] sm:$0xff]
        %v371 = vld [vmem:[#allocation2 + $0x48] sm:$0xff]
        %v372 = vld [vmem:[#allocation2 + $0x50] sm:$0xff]
        %v373 = vld [vmem:[#allocation2 + $0x58] sm:$0xff]
        %v374 = vld [vmem:[#allocation2 + $0x60] sm:$0xff]
        %v375 = vld [vmem:[#allocation2 + $0x68] sm:$0xff]
        %v376 = vld [vmem:[#allocation2 + $0x70] sm:$0xff]
        %v377 = vld [vmem:[#allocation2 + $0x78] sm:$0xff]
        %v378 = vld [vmem:[%s3] sm:$0x3]
        %v380 = vlaneseq
        %v381 = vshrl.u32 %v380, 7
        %v382 = vsub.s32 0, %v381
        %v383 = vrot.slane %v378, %v382
        %v384 = vlaneseq
        %v385 = vshrl.u32 %v384, 7
        %v386 = vsub.s32 1, %v385
        %v387 = vrot.slane %v378, %v386
        %v403 = vunpack.c.l.b16 %v349
        %v404 = vunpack.c.l.b16 %v350
        %v405 = vunpack.c.l.b16 %v351
        %v406 = vunpack.c.l.b16 %v352
        %v407 = vunpack.c.l.b16 %v353
        %v408 = vunpack.c.l.b16 %v354
        %v409 = vunpack.c.l.b16 %v355
        %v410 = vunpack.c.l.b16 %v356
        %v411 = vunpack.c.l.b16 %v357
        %v412 = vunpack.c.l.b16 %v358
        %v413 = vunpack.c.l.b16 %v359
        %v414 = vunpack.c.l.b16 %v360
        %v415 = vunpack.c.l.b16 %v361
        %v416 = vpack.c.b16 %v404, %v403
        %v417 = vpack.c.b16 %v406, %v405
        %v418 = vpack.c.b16 %v408, %v407
        %v419 = vpack.c.b16 %v410, %v409
        %v420 = vpack.c.b16 %v412, %v411
        %v421 = vpack.c.b16 %v414, %v413
        %v422 = vpack.c.b16 %v415, %v415
        %v446 = vunpack.c.l.b16 %v362
        %v447 = vunpack.c.h.b16 %v362
        %v448 = vunpack.c.l.b16 %v363
        %v449 = vunpack.c.h.b16 %v363
        %v450 = vunpack.c.l.b16 %v364
        %v451 = vunpack.c.h.b16 %v364
        %v452 = vunpack.c.l.b16 %v365
        %v453 = vunpack.c.h.b16 %v365
        %v454 = vunpack.c.l.b16 %v366
        %v455 = vunpack.c.h.b16 %v366
        %v456 = vunpack.c.l.b16 %v367
        %v457 = vunpack.c.h.b16 %v367
        %v458 = vunpack.c.l.b16 %v368
        %v459 = vunpack.c.h.b16 %v368
        %v460 = vunpack.c.l.b16 %v369
        %v461 = vunpack.c.h.b16 %v369
        %v462 = vunpack.c.l.b16 %v370
        %v463 = vunpack.c.h.b16 %v370
        %v464 = vunpack.c.l.b16 %v371
        %v465 = vunpack.c.h.b16 %v371
        %v466 = vunpack.c.l.b16 %v372
        %v467 = vunpack.c.h.b16 %v372
        %v468 = vunpack.c.l.b16 %v373
        %v469 = vunpack.c.h.b16 %v373
        %v470 = vunpack.c.l.b16 %v374
        %v471 = vunpack.c.h.b16 %v374
        %v472 = vunpack.c.l.b16 %v375
        %v473 = vunpack.c.h.b16 %v375
        %v474 = vunpack.c.l.b16 %v376
        %v475 = vunpack.c.h.b16 %v376
        %v476 = vunpack.c.l.b16 %v377
        %v477 = vunpack.c.h.b16 %v377
        %v478 = vpack.c.b16 %v448, %v446
        %v479 = vpack.c.b16 %v449, %v447
        %v480 = vpack.c.b16 %v452, %v450
        %v481 = vpack.c.b16 %v453, %v451
        %v482 = vpack.c.b16 %v456, %v454
        %v483 = vpack.c.b16 %v457, %v455
        %v484 = vpack.c.b16 %v460, %v458
        %v485 = vpack.c.b16 %v461, %v459
        %v486 = vpack.c.b16 %v464, %v462
        %v487 = vpack.c.b16 %v465, %v463
        %v488 = vpack.c.b16 %v468, %v466
        %v489 = vpack.c.b16 %v469, %v467
        %v490 = vpack.c.b16 %v472, %v470
        %v491 = vpack.c.b16 %v473, %v471
        %v492 = vpack.c.b16 %v476, %v474
        %v493 = vpack.c.b16 %v477, %v475
        %510 = vmatprep.subr.bf16.mxu0 %v479
        %511 = vmatpush1.bf16.msra.mxu0 %v478
        %512 = vmatprep.subr.bf16.mxu0 %v481
        %513 = vmatpush1.bf16.msra.mxu0 %v480
        %514 = vmatprep.subr.bf16.mxu0 %v483
        %515 = vmatpush1.bf16.msra.mxu0 %v482
        %516 = vmatprep.subr.bf16.mxu0 %v485
        %517 = vmatpush1.bf16.msra.mxu0 %v484
        %518 = vmatprep.subr.bf16.mxu0 %v487
        %519 = vmatpush1.bf16.msra.mxu0 %v486
        %520 = vmatprep.subr.bf16.mxu0 %v489
        %521 = vmatpush1.bf16.msra.mxu0 %v488
        %522 = vmatprep.subr.bf16.mxu0 %v491
        %523 = vmatpush1.bf16.msra.mxu0 %v490
        %524 = vmatprep.subr.bf16.mxu0 %v493
        %525 = vmatpush1.bf16.msra.mxu0 %v492
        %526 = vmatprep.subr.bf16.mxu0 0
        %527 = vmatpush1.bf16.msra.mxu0 0
        %528 = vmatprep.subr.bf16.mxu0 0
        %529 = vmatpush1.bf16.msra.mxu0 0
        %530 = vmatprep.subr.bf16.mxu0 0
        %531 = vmatpush1.bf16.msra.mxu0 0
        %532 = vmatprep.subr.bf16.mxu0 0
        %533 = vmatpush1.bf16.msra.mxu0 0
        %534 = vmatprep.subr.bf16.mxu0 0
        %535 = vmatpush1.bf16.msra.mxu0 0
        %536 = vmatprep.subr.bf16.mxu0 0
        %537 = vmatpush1.bf16.msra.mxu0 0
        %538 = vmatprep.subr.bf16.mxu0 0
        %539 = vmatpush1.bf16.msra.mxu0 0
        %540 = vmatprep.subr.bf16.mxu0 0
        %541 = vmatpush1.bf16.msra.mxu0 0
        %542 = vmatprep.mubr.bf16.mxu0 0
        %543 = vmatmul.mubr.bf16.gmra.mrb[0].mxu0 %v416
        %v544 = vpop.f32.mrb[0].mxu0
        %v545 = vadd.f32 %v383, %v544
        %v546 = vpop.f32.mrb[0].mxu0
        %v547 = vadd.f32 %v387, %v546
        %v548 = vpop.f32.mrb[0].mxu0
        %v549 = vadd.f32 %v383, %v548
        %v550 = vpop.f32.mrb[0].mxu0
        %v551 = vadd.f32 %v387, %v550
        %552 = vmatprep.mubr.bf16.mxu0 0
        %553 = vmatmul.mubr.bf16.gmra.mrb[0].mxu0 %v417
        %v554 = vpop.f32.mrb[0].mxu0
        %v555 = vadd.f32 %v383, %v554
        %v556 = vpop.f32.mrb[0].mxu0
        %v557 = vadd.f32 %v387, %v556
        %v558 = vpop.f32.mrb[0].mxu0
        %v559 = vadd.f32 %v383, %v558
        %v560 = vpop.f32.mrb[0].mxu0
        %v561 = vadd.f32 %v387, %v560
        %562 = vmatprep.mubr.bf16.mxu0 0
        %563 = vmatmul.mubr.bf16.gmra.mrb[0].mxu0 %v418
        %v564 = vpop.f32.mrb[0].mxu0
        %v565 = vadd.f32 %v383, %v564
        %v566 = vpop.f32.mrb[0].mxu0
        %v567 = vadd.f32 %v387, %v566
        %v568 = vpop.f32.mrb[0].mxu0
        %v569 = vadd.f32 %v383, %v568
        %v570 = vpop.f32.mrb[0].mxu0
        %v571 = vadd.f32 %v387, %v570
        %572 = vmatprep.mubr.bf16.mxu0 0
        %573 = vmatmul.mubr.bf16.gmra.mrb[0].mxu0 %v419
        %v574 = vpop.f32.mrb[0].mxu0
        %v575 = vadd.f32 %v383, %v574
        %v576 = vpop.f32.mrb[0].mxu0
        %v577 = vadd.f32 %v387, %v576
        %v578 = vpop.f32.mrb[0].mxu0
        %v579 = vadd.f32 %v383, %v578
        %v580 = vpop.f32.mrb[0].mxu0
        %v581 = vadd.f32 %v387, %v580
        %582 = vmatprep.mubr.bf16.mxu0 0
        %583 = vmatmul.mubr.bf16.gmra.mrb[0].mxu0 %v420
        %v584 = vpop.f32.mrb[0].mxu0
        %v585 = vadd.f32 %v383, %v584
        %v586 = vpop.f32.mrb[0].mxu0
        %v587 = vadd.f32 %v387, %v586
        %v588 = vpop.f32.mrb[0].mxu0
        %v589 = vadd.f32 %v383, %v588
        %v590 = vpop.f32.mrb[0].mxu0
        %v591 = vadd.f32 %v387, %v590
        %592 = vmatprep.mubr.bf16.mxu0 0
        %593 = vmatmul.mubr.bf16.gmra.mrb[0].mxu0 %v421
        %v594 = vpop.f32.mrb[0].mxu0
        %v595 = vadd.f32 %v383, %v594
        %v596 = vpop.f32.mrb[0].mxu0
        %v597 = vadd.f32 %v387, %v596
        %v598 = vpop.f32.mrb[0].mxu0
        %v599 = vadd.f32 %v383, %v598
        %v600 = vpop.f32.mrb[0].mxu0
        %v601 = vadd.f32 %v387, %v600
        %602 = vmatprep.mubr.bf16.mxu0 0
        %603 = vmatmul.mubr.bf16.gmra.mrb[0].mxu0 %v422
        %v604 = vpop.f32.mrb[0].mxu0
        %v605 = vadd.f32 %v383, %v604
        %v606 = vpop.f32.mrb[0].mxu0
        %v607 = vadd.f32 %v387, %v606
        %v608 = vpop.f32.mrb[0].mxu0
        %v609 = vpop.f32.mrb[0].mxu0
        %610 = vdwg.mxu0
        %v611 = vmax.f32 %v545, 0.0
        %v612 = vmax.f32 %v549, 0.0
        %v613 = vmax.f32 %v555, 0.0
        %v614 = vmax.f32 %v559, 0.0
        %v615 = vmax.f32 %v565, 0.0
        %v616 = vmax.f32 %v569, 0.0
        %v617 = vmax.f32 %v575, 0.0
        %v618 = vmax.f32 %v579, 0.0
        %v619 = vmax.f32 %v585, 0.0
        %v620 = vmax.f32 %v589, 0.0
        %v621 = vmax.f32 %v595, 0.0
        %v622 = vmax.f32 %v599, 0.0
        %v623 = vmax.f32 %v605, 0.0
        %v624 = vld [vmem:[%s1] sm:$0xff]
        %v625 = vld [vmem:[%s1 + $0x8] sm:$0xff]
        %v626 = vld [vmem:[%s1 + $0x10] sm:$0xff]
        %v627 = vld [vmem:[%s1 + $0x18] sm:$0xff]
        %v628 = vld [vmem:[%s1 + $0x20] sm:$0xff]
        %v629 = vld [vmem:[%s1 + $0x28] sm:$0xff]
        %v630 = vld [vmem:[%s1 + $0x30] sm:$0xff]
        %v631 = vld [vmem:[%s1 + $0x38] sm:$0xff]
        %v632 = vld [vmem:[%s1 + $0x40] sm:$0xff]
        %v633 = vld [vmem:[%s1 + $0x48] sm:$0xff]
        %v634 = vld [vmem:[%s1 + $0x50] sm:$0xff]
        %v635 = vld [vmem:[%s1 + $0x58] sm:$0xff]
        %v636 = vld [vmem:[%s1 + $0x60] sm:$0xff]
        %638 = vset.pattern.permute.xlu0 0
        %639 = vperm.xlu0 %638, %v624
        %v640 = vpop.permute.xlu0 %639
        %643 = vset.pattern.permute.xlu0 0
        %644 = vperm.xlu0 %643, %v625
        %v645 = vpop.permute.xlu0 %644
        %648 = vset.pattern.permute.xlu0 0
        %649 = vperm.xlu0 %648, %v626
        %v650 = vpop.permute.xlu0 %649
        %653 = vset.pattern.permute.xlu0 0
        %654 = vperm.xlu0 %653, %v627
        %v655 = vpop.permute.xlu0 %654
        %658 = vset.pattern.permute.xlu0 0
        %659 = vperm.xlu0 %658, %v628
        %v660 = vpop.permute.xlu0 %659
        %663 = vset.pattern.permute.xlu0 0
        %664 = vperm.xlu0 %663, %v629
        %v665 = vpop.permute.xlu0 %664
        %668 = vset.pattern.permute.xlu0 0
        %669 = vperm.xlu0 %668, %v630
        %v670 = vpop.permute.xlu0 %669
        %673 = vset.pattern.permute.xlu0 0
        %674 = vperm.xlu0 %673, %v631
        %v675 = vpop.permute.xlu0 %674
        %678 = vset.pattern.permute.xlu0 0
        %679 = vperm.xlu0 %678, %v632
        %v680 = vpop.permute.xlu0 %679
        %683 = vset.pattern.permute.xlu0 0
        %684 = vperm.xlu0 %683, %v633
        %v685 = vpop.permute.xlu0 %684
        %688 = vset.pattern.permute.xlu0 0
        %689 = vperm.xlu0 %688, %v634
        %v690 = vpop.permute.xlu0 %689
        %693 = vset.pattern.permute.xlu0 0
        %694 = vperm.xlu0 %693, %v635
        %v695 = vpop.permute.xlu0 %694
        %698 = vset.pattern.permute.xlu0 0
        %699 = vperm.xlu0 %698, %v636
        %v700 = vpop.permute.xlu0 %699
        %v702 = vmul.f32 %v611, %v640
        %v703 = vmul.f32 %v612, %v645
        %v704 = vmul.f32 %v613, %v650
        %v705 = vmul.f32 %v614, %v655
        %v706 = vmul.f32 %v615, %v660
        %v707 = vmul.f32 %v616, %v665
        %v708 = vmul.f32 %v617, %v670
        %v709 = vmul.f32 %v618, %v675
        %v710 = vmul.f32 %v619, %v680
        %v711 = vmul.f32 %v620, %v685
        %v712 = vmul.f32 %v621, %v690
        %v713 = vmul.f32 %v622, %v695
        %v714 = vmul.f32 %v623, %v700
        %v715 = vpack.c.bf16 %v551, %v547
        %v716 = vpack.c.bf16 %v561, %v557
        %v717 = vpack.c.bf16 %v571, %v567
        %v718 = vpack.c.bf16 %v581, %v577
        %v719 = vpack.c.bf16 %v591, %v587
        %v720 = vpack.c.bf16 %v601, %v597
        %v721 = vpack.c.bf16 %v607, %v607
        %v722 = vrot.slane %v702, 5
        %v723 = vrot.slane %v703, 5
        %v724 = vrot.slane %v704, 5
        %v725 = vrot.slane %v705, 5
        %v726 = vrot.slane %v706, 5
        %v727 = vrot.slane %v707, 5
        %v728 = vrot.slane %v708, 5
        %v729 = vrot.slane %v709, 5
        %v730 = vrot.slane %v710, 5
        %v731 = vrot.slane %v711, 5
        %v732 = vrot.slane %v712, 5
        %v733 = vrot.slane %v713, 5
        %v734 = vrot.slane %v714, 5
        %v735 = vlaneseq
        %v736 = vshrl.u32 %v735, 7
        %vm737 = vcmp.lt.s32.totalorder %v736, 3
        %v738 = vsel %vm737, %v733, %v734
        %v739 = vsel %vm737, %v732, %v733
        %v740 = vsel %vm737, %v731, %v732
        %v741 = vsel %vm737, %v730, %v731
        %v742 = vsel %vm737, %v729, %v730
        %v743 = vsel %vm737, %v728, %v729
        %v744 = vsel %vm737, %v727, %v728
        %v745 = vsel %vm737, %v726, %v727
        %v746 = vsel %vm737, %v725, %v726
        %v747 = vsel %vm737, %v724, %v725
        %v748 = vsel %vm737, %v723, %v724
        %v749 = vsel %vm737, %v722, %v723
        %v750 = vsel %vm737, %v734, %v722
        %v751 = vpack.c.bf16 %v750, %v738
        %v752 = vpack.c.bf16 %v748, %v749
        %v753 = vpack.c.bf16 %v746, %v747
        %v754 = vpack.c.bf16 %v744, %v745
        %v755 = vpack.c.bf16 %v742, %v743
        %v756 = vpack.c.bf16 %v740, %v741
        %v757 = vpack.c.bf16 %v739, %v739
        %v758 = vld [vmem:[#allocation5] sm:$0xf]
        %v759 = vld [vmem:[#allocation5 + $0x4] sm:$0xf]
        %v760 = vld [vmem:[#allocation5 + $0x8] sm:$0xf]
        %v761 = vld [vmem:[#allocation5 + $0xc] sm:$0xf]
        %v762 = vld [vmem:[#allocation5 + $0x10] sm:$0xf]
        %v763 = vld [vmem:[#allocation5 + $0x14] sm:$0xf]
        %v764 = vld [vmem:[#allocation5 + $0x18] sm:$0xf]
        %v765 = vld [vmem:[#allocation5 + $0x1c] sm:$0xf]
        %v766 = vld [vmem:[#allocation5 + $0x20] sm:$0xf]
        %v767 = vld [vmem:[#allocation5 + $0x24] sm:$0xf]
        %v768 = vld [vmem:[#allocation5 + $0x28] sm:$0xf]
        %v769 = vld [vmem:[#allocation5 + $0x2c] sm:$0xf]
        %v770 = vld [vmem:[#allocation5 + $0x30] sm:$0xf]
        %v771 = vld [vmem:[#allocation5 + $0x34] sm:$0xf]
        %v772 = vld [vmem:[#allocation5 + $0x38] sm:$0xf]
        %v773 = vld [vmem:[#allocation5 + $0x3c] sm:$0xf]
        %v774 = vrot.slane %v702, 6
        %v775 = vrot.slane %v703, 6
        %v776 = vrot.slane %v704, 6
        %v777 = vrot.slane %v705, 6
        %v778 = vrot.slane %v706, 6
        %v779 = vrot.slane %v707, 6
        %v780 = vrot.slane %v708, 6
        %v781 = vrot.slane %v709, 6
        %v782 = vrot.slane %v710, 6
        %v783 = vrot.slane %v711, 6
        %v784 = vrot.slane %v712, 6
        %v785 = vrot.slane %v713, 6
        %v786 = vrot.slane %v714, 6
        %vm787 = vcmp.lt.s32.totalorder %v736, 2
        %v788 = vsel %vm787, %v785, %v786
        %v789 = vsel %vm787, %v784, %v785
        %v790 = vsel %vm787, %v783, %v784
        %v791 = vsel %vm787, %v782, %v783
        %v792 = vsel %vm787, %v781, %v782
        %v793 = vsel %vm787, %v780, %v781
        %v794 = vsel %vm787, %v779, %v780
        %v795 = vsel %vm787, %v778, %v779
        %v796 = vsel %vm787, %v777, %v778
        %v797 = vsel %vm787, %v776, %v777
        %v798 = vsel %vm787, %v775, %v776
        %v799 = vsel %vm787, %v774, %v775
        %v800 = vsel %vm787, %v786, %v774
        %v801 = vpack.c.bf16 %v800, %v788
        %v802 = vpack.c.bf16 %v798, %v799
        %v803 = vpack.c.bf16 %v796, %v797
        %v804 = vpack.c.bf16 %v794, %v795
        %v805 = vpack.c.bf16 %v792, %v793
        %v806 = vpack.c.bf16 %v790, %v791
        %v807 = vpack.c.bf16 %v789, %v789
        %v808 = vld [vmem:[#allocation5 + $0x40] sm:$0xf]
        %v809 = vld [vmem:[#allocation5 + $0x44] sm:$0xf]
        %v810 = vld [vmem:[#allocation5 + $0x48] sm:$0xf]
        %v811 = vld [vmem:[#allocation5 + $0x4c] sm:$0xf]
        %v812 = vld [vmem:[#allocation5 + $0x50] sm:$0xf]
        %v813 = vld [vmem:[#allocation5 + $0x54] sm:$0xf]
        %v814 = vld [vmem:[#allocation5 + $0x58] sm:$0xf]
        %v815 = vld [vmem:[#allocation5 + $0x5c] sm:$0xf]
        %v816 = vld [vmem:[#allocation5 + $0x60] sm:$0xf]
        %v817 = vld [vmem:[#allocation5 + $0x64] sm:$0xf]
        %v818 = vld [vmem:[#allocation5 + $0x68] sm:$0xf]
        %v819 = vld [vmem:[#allocation5 + $0x6c] sm:$0xf]
        %v820 = vld [vmem:[#allocation5 + $0x70] sm:$0xf]
        %v821 = vld [vmem:[#allocation5 + $0x74] sm:$0xf]
        %v822 = vld [vmem:[#allocation5 + $0x78] sm:$0xf]
        %v823 = vld [vmem:[#allocation5 + $0x7c] sm:$0xf]
        %v840 = vunpack.c.l.b16 %v808
        %v841 = vunpack.c.l.b16 %v809
        %v842 = vunpack.c.l.b16 %v810
        %v843 = vunpack.c.l.b16 %v811
        %v844 = vunpack.c.l.b16 %v812
        %v845 = vunpack.c.l.b16 %v813
        %v846 = vunpack.c.l.b16 %v814
        %v847 = vunpack.c.l.b16 %v815
        %v848 = vunpack.c.l.b16 %v816
        %v849 = vunpack.c.l.b16 %v817
        %v850 = vunpack.c.l.b16 %v818
        %v851 = vunpack.c.l.b16 %v819
        %v852 = vunpack.c.l.b16 %v820
        %v853 = vunpack.c.l.b16 %v821
        %v854 = vunpack.c.l.b16 %v822
        %v855 = vunpack.c.l.b16 %v823
        %v856 = vpack.c.b16 %v841, %v840
        %v857 = vpack.c.b16 %v843, %v842
        %v858 = vpack.c.b16 %v845, %v844
        %v859 = vpack.c.b16 %v847, %v846
        %v860 = vpack.c.b16 %v849, %v848
        %v861 = vpack.c.b16 %v851, %v850
        %v862 = vpack.c.b16 %v853, %v852
        %v863 = vpack.c.b16 %v855, %v854
        %872 = vmatprep.subr.bf16.mxu0 0
        %873 = vmatpush1.bf16.msra.mxu0 %v856
        %874 = vmatprep.subr.bf16.mxu0 0
        %875 = vmatpush1.bf16.msra.mxu0 %v857
        %876 = vmatprep.subr.bf16.mxu0 0
        %877 = vmatpush1.bf16.msra.mxu0 %v858
        %878 = vmatprep.subr.bf16.mxu0 0
        %879 = vmatpush1.bf16.msra.mxu0 %v859
        %880 = vmatprep.subr.bf16.mxu0 0
        %881 = vmatpush1.bf16.msra.mxu0 %v860
        %882 = vmatprep.subr.bf16.mxu0 0
        %883 = vmatpush1.bf16.msra.mxu0 %v861
        %884 = vmatprep.subr.bf16.mxu0 0
        %885 = vmatpush1.bf16.msra.mxu0 %v862
        %886 = vmatprep.subr.bf16.mxu0 0
        %887 = vmatpush1.bf16.msra.mxu0 %v863
        %888 = vmatprep.subr.bf16.mxu0 0
        %889 = vmatpush1.bf16.msra.mxu0 0
        %890 = vmatprep.subr.bf16.mxu0 0
        %891 = vmatpush1.bf16.msra.mxu0 0
        %892 = vmatprep.subr.bf16.mxu0 0
        %893 = vmatpush1.bf16.msra.mxu0 0
        %894 = vmatprep.subr.bf16.mxu0 0
        %895 = vmatpush1.bf16.msra.mxu0 0
        %896 = vmatprep.subr.bf16.mxu0 0
        %897 = vmatpush1.bf16.msra.mxu0 0
        %898 = vmatprep.subr.bf16.mxu0 0
        %899 = vmatpush1.bf16.msra.mxu0 0
        %900 = vmatprep.subr.bf16.mxu0 0
        %901 = vmatpush1.bf16.msra.mxu0 0
        %902 = vmatprep.subr.bf16.mxu0 0
        %903 = vmatpush1.bf16.msra.mxu0 0
        %904 = vmatprep.mubr.bf16.mxu0 0
        %905 = vmatmul.mubr.bf16.gmra.mrb[0].mxu0 %v801
        %v906 = vpop.f32.mrb[0].mxu0
        %v907 = vadd.f32 0.0, %v906
        %v908 = vpop.f32.mrb[0].mxu0
        %v909 = vpop.f32.mrb[0].mxu0
        %v910 = vadd.f32 0.0, %v909
        %v911 = vpop.f32.mrb[0].mxu0
        %912 = vmatprep.mubr.bf16.mxu0 0
        %913 = vmatmul.mubr.bf16.gmra.mrb[0].mxu0 %v802
        %v914 = vpop.f32.mrb[0].mxu0
        %v915 = vadd.f32 0.0, %v914
        %v916 = vpop.f32.mrb[0].mxu0
        %v917 = vpop.f32.mrb[0].mxu0
        %v918 = vadd.f32 0.0, %v917
        %v919 = vpop.f32.mrb[0].mxu0
        %920 = vmatprep.mubr.bf16.mxu0 0
        %921 = vmatmul.mubr.bf16.gmra.mrb[0].mxu0 %v803
        %v922 = vpop.f32.mrb[0].mxu0
        %v923 = vadd.f32 0.0, %v922
        %v924 = vpop.f32.mrb[0].mxu0
        %v925 = vpop.f32.mrb[0].mxu0
        %v926 = vadd.f32 0.0, %v925
        %v927 = vpop.f32.mrb[0].mxu0
        %928 = vmatprep.mubr.bf16.mxu0 0
        %929 = vmatmul.mubr.bf16.gmra.mrb[0].mxu0 %v804
        %v930 = vpop.f32.mrb[0].mxu0
        %v931 = vadd.f32 0.0, %v930
        %v932 = vpop.f32.mrb[0].mxu0
        %v933 = vpop.f32.mrb[0].mxu0
        %v934 = vadd.f32 0.0, %v933
        %v935 = vpop.f32.mrb[0].mxu0
        %936 = vmatprep.mubr.bf16.mxu0 0
        %937 = vmatmul.mubr.bf16.gmra.mrb[0].mxu0 %v805
        %v938 = vpop.f32.mrb[0].mxu0
        %v939 = vadd.f32 0.0, %v938
        %v940 = vpop.f32.mrb[0].mxu0
        %v941 = vpop.f32.mrb[0].mxu0
        %v942 = vadd.f32 0.0, %v941
        %v943 = vpop.f32.mrb[0].mxu0
        %944 = vmatprep.mubr.bf16.mxu0 0
        %945 = vmatmul.mubr.bf16.gmra.mrb[0].mxu0 %v806
        %v946 = vpop.f32.mrb[0].mxu0
        %v947 = vadd.f32 0.0, %v946
        %v948 = vpop.f32.mrb[0].mxu0
        %v949 = vpop.f32.mrb[0].mxu0
        %v950 = vadd.f32 0.0, %v949
        %v951 = vpop.f32.mrb[0].mxu0
        %952 = vmatprep.mubr.bf16.mxu0 0
        %953 = vmatmul.mubr.bf16.gmra.mrb[0].mxu0 %v807
        %v954 = vpop.f32.mrb[0].mxu0
        %v955 = vadd.f32 0.0, %v954
        %v956 = vpop.f32.mrb[0].mxu0
        %v957 = vpop.f32.mrb[0].mxu0
        %v958 = vpop.f32.mrb[0].mxu0
        %959 = vdwg.mxu0
        %v976 = vunpack.c.l.b16 %v758
        %v977 = vunpack.c.l.b16 %v759
        %v978 = vunpack.c.l.b16 %v760
        %v979 = vunpack.c.l.b16 %v761
        %v980 = vunpack.c.l.b16 %v762
        %v981 = vunpack.c.l.b16 %v763
        %v982 = vunpack.c.l.b16 %v764
        %v983 = vunpack.c.l.b16 %v765
        %v984 = vunpack.c.l.b16 %v766
        %v985 = vunpack.c.l.b16 %v767
        %v986 = vunpack.c.l.b16 %v768
        %v987 = vunpack.c.l.b16 %v769
        %v988 = vunpack.c.l.b16 %v770
        %v989 = vunpack.c.l.b16 %v771
        %v990 = vunpack.c.l.b16 %v772
        %v991 = vunpack.c.l.b16 %v773
        %v992 = vpack.c.b16 %v977, %v976
        %v993 = vpack.c.b16 %v979, %v978
        %v994 = vpack.c.b16 %v981, %v980
        %v995 = vpack.c.b16 %v983, %v982
        %v996 = vpack.c.b16 %v985, %v984
        %v997 = vpack.c.b16 %v987, %v986
        %v998 = vpack.c.b16 %v989, %v988
        %v999 = vpack.c.b16 %v991, %v990
        %1008 = vmatprep.subr.bf16.mxu0 0
        %1009 = vmatpush1.bf16.msra.mxu0 %v992
        %1010 = vmatprep.subr.bf16.mxu0 0
        %1011 = vmatpush1.bf16.msra.mxu0 %v993
        %1012 = vmatprep.subr.bf16.mxu0 0
        %1013 = vmatpush1.bf16.msra.mxu0 %v994
        %1014 = vmatprep.subr.bf16.mxu0 0
        %1015 = vmatpush1.bf16.msra.mxu0 %v995
        %1016 = vmatprep.subr.bf16.mxu0 0
        %1017 = vmatpush1.bf16.msra.mxu0 %v996
        %1018 = vmatprep.subr.bf16.mxu0 0
        %1019 = vmatpush1.bf16.msra.mxu0 %v997
        %1020 = vmatprep.subr.bf16.mxu0 0
        %1021 = vmatpush1.bf16.msra.mxu0 %v998
        %1022 = vmatprep.subr.bf16.mxu0 0
        %1023 = vmatpush1.bf16.msra.mxu0 %v999
        %1024 = vmatprep.subr.bf16.mxu0 0
        %1025 = vmatpush1.bf16.msra.mxu0 0
        %1026 = vmatprep.subr.bf16.mxu0 0
        %1027 = vmatpush1.bf16.msra.mxu0 0
        %1028 = vmatprep.subr.bf16.mxu0 0
        %1029 = vmatpush1.bf16.msra.mxu0 0
        %1030 = vmatprep.subr.bf16.mxu0 0
        %1031 = vmatpush1.bf16.msra.mxu0 0
        %1032 = vmatprep.subr.bf16.mxu0 0
        %1033 = vmatpush1.bf16.msra.mxu0 0
        %1034 = vmatprep.subr.bf16.mxu0 0
        %1035 = vmatpush1.bf16.msra.mxu0 0
        %1036 = vmatprep.subr.bf16.mxu0 0
        %1037 = vmatpush1.bf16.msra.mxu0 0
        %1038 = vmatprep.subr.bf16.mxu0 0
        %1039 = vmatpush1.bf16.msra.mxu0 0
        %1040 = vmatprep.mubr.bf16.mxu0 0
        %1041 = vmatmul.mubr.bf16.gmra.mrb[0].mxu0 %v751
        %v1042 = vpop.f32.mrb[0].mxu0
        %v1043 = vadd.f32 %v907, %v1042
        %v1044 = vpop.f32.mrb[0].mxu0
        %v1045 = vpop.f32.mrb[0].mxu0
        %v1046 = vadd.f32 %v910, %v1045
        %v1047 = vpop.f32.mrb[0].mxu0
        %1048 = vmatprep.mubr.bf16.mxu0 0
        %1049 = vmatmul.mubr.bf16.gmra.mrb[0].mxu0 %v752
        %v1050 = vpop.f32.mrb[0].mxu0
        %v1051 = vadd.f32 %v915, %v1050
        %v1052 = vpop.f32.mrb[0].mxu0
        %v1053 = vpop.f32.mrb[0].mxu0
        %v1054 = vadd.f32 %v918, %v1053
        %v1055 = vpop.f32.mrb[0].mxu0
        %1056 = vmatprep.mubr.bf16.mxu0 0
        %1057 = vmatmul.mubr.bf16.gmra.mrb[0].mxu0 %v753
        %v1058 = vpop.f32.mrb[0].mxu0
        %v1059 = vadd.f32 %v923, %v1058
        %v1060 = vpop.f32.mrb[0].mxu0
        %v1061 = vpop.f32.mrb[0].mxu0
        %v1062 = vadd.f32 %v926, %v1061
        %v1063 = vpop.f32.mrb[0].mxu0
        %1064 = vmatprep.mubr.bf16.mxu0 0
        %1065 = vmatmul.mubr.bf16.gmra.mrb[0].mxu0 %v754
        %v1066 = vpop.f32.mrb[0].mxu0
        %v1067 = vadd.f32 %v931, %v1066
        %v1068 = vpop.f32.mrb[0].mxu0
        %v1069 = vpop.f32.mrb[0].mxu0
        %v1070 = vadd.f32 %v934, %v1069
        %v1071 = vpop.f32.mrb[0].mxu0
        %1072 = vmatprep.mubr.bf16.mxu0 0
        %1073 = vmatmul.mubr.bf16.gmra.mrb[0].mxu0 %v755
        %v1074 = vpop.f32.mrb[0].mxu0
        %v1075 = vadd.f32 %v939, %v1074
        %v1076 = vpop.f32.mrb[0].mxu0
        %v1077 = vpop.f32.mrb[0].mxu0
        %v1078 = vadd.f32 %v942, %v1077
        %v1079 = vpop.f32.mrb[0].mxu0
        %1080 = vmatprep.mubr.bf16.mxu0 0
        %1081 = vmatmul.mubr.bf16.gmra.mrb[0].mxu0 %v756
        %v1082 = vpop.f32.mrb[0].mxu0
        %v1083 = vadd.f32 %v947, %v1082
        %v1084 = vpop.f32.mrb[0].mxu0
        %v1085 = vpop.f32.mrb[0].mxu0
        %v1086 = vadd.f32 %v950, %v1085
        %v1087 = vpop.f32.mrb[0].mxu0
        %1088 = vmatprep.mubr.bf16.mxu0 0
        %1089 = vmatmul.mubr.bf16.gmra.mrb[0].mxu0 %v757
        %v1090 = vpop.f32.mrb[0].mxu0
        %v1091 = vadd.f32 %v955, %v1090
        %v1092 = vpop.f32.mrb[0].mxu0
        %v1093 = vpop.f32.mrb[0].mxu0
        %v1094 = vpop.f32.mrb[0].mxu0
        %1095 = vdwg.mxu0
        %v1096 = vrot.slane %v702, 7
        %v1097 = vrot.slane %v703, 7
        %v1098 = vrot.slane %v704, 7
        %v1099 = vrot.slane %v705, 7
        %v1100 = vrot.slane %v706, 7
        %v1101 = vrot.slane %v707, 7
        %v1102 = vrot.slane %v708, 7
        %v1103 = vrot.slane %v709, 7
        %v1104 = vrot.slane %v710, 7
        %v1105 = vrot.slane %v711, 7
        %v1106 = vrot.slane %v712, 7
        %v1107 = vrot.slane %v713, 7
        %v1108 = vrot.slane %v714, 7
        %vm1109 = vcmp.lt.s32.totalorder %v736, 1
        %v1110 = vsel %vm1109, %v1107, %v1108
        %v1111 = vsel %vm1109, %v1106, %v1107
        %v1112 = vsel %vm1109, %v1105, %v1106
        %v1113 = vsel %vm1109, %v1104, %v1105
        %v1114 = vsel %vm1109, %v1103, %v1104
        %v1115 = vsel %vm1109, %v1102, %v1103
        %v1116 = vsel %vm1109, %v1101, %v1102
        %v1117 = vsel %vm1109, %v1100, %v1101
        %v1118 = vsel %vm1109, %v1099, %v1100
        %v1119 = vsel %vm1109, %v1098, %v1099
        %v1120 = vsel %vm1109, %v1097, %v1098
        %v1121 = vsel %vm1109, %v1096, %v1097
        %v1122 = vsel %vm1109, %v1108, %v1096
        %v1123 = vpack.c.bf16 %v1122, %v1110
        %v1124 = vpack.c.bf16 %v1120, %v1121
        %v1125 = vpack.c.bf16 %v1118, %v1119
        %v1126 = vpack.c.bf16 %v1116, %v1117
        %v1127 = vpack.c.bf16 %v1114, %v1115
        %v1128 = vpack.c.bf16 %v1112, %v1113
        %v1129 = vpack.c.bf16 %v1111, %v1111
        %v1130 = vld [vmem:[#allocation5 + $0x80] sm:$0xf]
        %v1131 = vld [vmem:[#allocation5 + $0x84] sm:$0xf]
        %v1132 = vld [vmem:[#allocation5 + $0x88] sm:$0xf]
        %v1133 = vld [vmem:[#allocation5 + $0x8c] sm:$0xf]
        %v1134 = vld [vmem:[#allocation5 + $0x90] sm:$0xf]
        %v1135 = vld [vmem:[#allocation5 + $0x94] sm:$0xf]
        %v1136 = vld [vmem:[#allocation5 + $0x98] sm:$0xf]
        %v1137 = vld [vmem:[#allocation5 + $0x9c] sm:$0xf]
        %v1138 = vld [vmem:[#allocation5 + $0xa0] sm:$0xf]
        %v1139 = vld [vmem:[#allocation5 + $0xa4] sm:$0xf]
        %v1140 = vld [vmem:[#allocation5 + $0xa8] sm:$0xf]
        %v1141 = vld [vmem:[#allocation5 + $0xac] sm:$0xf]
        %v1142 = vld [vmem:[#allocation5 + $0xb0] sm:$0xf]
        %v1143 = vld [vmem:[#allocation5 + $0xb4] sm:$0xf]
        %v1144 = vld [vmem:[#allocation5 + $0xb8] sm:$0xf]
        %v1145 = vld [vmem:[#allocation5 + $0xbc] sm:$0xf]
        %v1162 = vunpack.c.l.b16 %v1130
        %v1163 = vunpack.c.l.b16 %v1131
        %v1164 = vunpack.c.l.b16 %v1132
        %v1165 = vunpack.c.l.b16 %v1133
        %v1166 = vunpack.c.l.b16 %v1134
        %v1167 = vunpack.c.l.b16 %v1135
        %v1168 = vunpack.c.l.b16 %v1136
        %v1169 = vunpack.c.l.b16 %v1137
        %v1170 = vunpack.c.l.b16 %v1138
        %v1171 = vunpack.c.l.b16 %v1139
        %v1172 = vunpack.c.l.b16 %v1140
        %v1173 = vunpack.c.l.b16 %v1141
        %v1174 = vunpack.c.l.b16 %v1142
        %v1175 = vunpack.c.l.b16 %v1143
        %v1176 = vunpack.c.l.b16 %v1144
        %v1177 = vunpack.c.l.b16 %v1145
        %v1178 = vpack.c.b16 %v1163, %v1162
        %v1179 = vpack.c.b16 %v1165, %v1164
        %v1180 = vpack.c.b16 %v1167, %v1166
        %v1181 = vpack.c.b16 %v1169, %v1168
        %v1182 = vpack.c.b16 %v1171, %v1170
        %v1183 = vpack.c.b16 %v1173, %v1172
        %v1184 = vpack.c.b16 %v1175, %v1174
        %v1185 = vpack.c.b16 %v1177, %v1176
        %1194 = vmatprep.subr.bf16.mxu0 0
        %1195 = vmatpush1.bf16.msra.mxu0 %v1178
        %1196 = vmatprep.subr.bf16.mxu0 0
        %1197 = vmatpush1.bf16.msra.mxu0 %v1179
        %1198 = vmatprep.subr.bf16.mxu0 0
        %1199 = vmatpush1.bf16.msra.mxu0 %v1180
        %1200 = vmatprep.subr.bf16.mxu0 0
        %1201 = vmatpush1.bf16.msra.mxu0 %v1181
        %1202 = vmatprep.subr.bf16.mxu0 0
        %1203 = vmatpush1.bf16.msra.mxu0 %v1182
        %1204 = vmatprep.subr.bf16.mxu0 0
        %1205 = vmatpush1.bf16.msra.mxu0 %v1183
        %1206 = vmatprep.subr.bf16.mxu0 0
        %1207 = vmatpush1.bf16.msra.mxu0 %v1184
        %1208 = vmatprep.subr.bf16.mxu0 0
        %1209 = vmatpush1.bf16.msra.mxu0 %v1185
        %1210 = vmatprep.subr.bf16.mxu0 0
        %1211 = vmatpush1.bf16.msra.mxu0 0
        %1212 = vmatprep.subr.bf16.mxu0 0
        %1213 = vmatpush1.bf16.msra.mxu0 0
        %1214 = vmatprep.subr.bf16.mxu0 0
        %1215 = vmatpush1.bf16.msra.mxu0 0
        %1216 = vmatprep.subr.bf16.mxu0 0
        %1217 = vmatpush1.bf16.msra.mxu0 0
        %1218 = vmatprep.subr.bf16.mxu0 0
        %1219 = vmatpush1.bf16.msra.mxu0 0
        %1220 = vmatprep.subr.bf16.mxu0 0
        %1221 = vmatpush1.bf16.msra.mxu0 0
        %1222 = vmatprep.subr.bf16.mxu0 0
        %1223 = vmatpush1.bf16.msra.mxu0 0
        %1224 = vmatprep.subr.bf16.mxu0 0
        %1225 = vmatpush1.bf16.msra.mxu0 0
        %1226 = vmatprep.mubr.bf16.mxu0 0
        %1227 = vmatmul.mubr.bf16.gmra.mrb[0].mxu0 %v1123
        %v1228 = vpop.f32.mrb[0].mxu0
        %v1229 = vadd.f32 0.0, %v1228
        %v1230 = vpop.f32.mrb[0].mxu0
        %v1231 = vpop.f32.mrb[0].mxu0
        %v1232 = vadd.f32 0.0, %v1231
        %v1233 = vpop.f32.mrb[0].mxu0
        %1234 = vmatprep.mubr.bf16.mxu0 0
        %1235 = vmatmul.mubr.bf16.gmra.mrb[0].mxu0 %v1124
        %v1236 = vpop.f32.mrb[0].mxu0
        %v1237 = vadd.f32 0.0, %v1236
        %v1238 = vpop.f32.mrb[0].mxu0
        %v1239 = vpop.f32.mrb[0].mxu0
        %v1240 = vadd.f32 0.0, %v1239
        %v1241 = vpop.f32.mrb[0].mxu0
        %1242 = vmatprep.mubr.bf16.mxu0 0
        %1243 = vmatmul.mubr.bf16.gmra.mrb[0].mxu0 %v1125
        %v1244 = vpop.f32.mrb[0].mxu0
        %v1245 = vadd.f32 0.0, %v1244
        %v1246 = vpop.f32.mrb[0].mxu0
        %v1247 = vpop.f32.mrb[0].mxu0
        %v1248 = vadd.f32 0.0, %v1247
        %v1249 = vpop.f32.mrb[0].mxu0
        %1250 = vmatprep.mubr.bf16.mxu0 0
        %1251 = vmatmul.mubr.bf16.gmra.mrb[0].mxu0 %v1126
        %v1252 = vpop.f32.mrb[0].mxu0
        %v1253 = vadd.f32 0.0, %v1252
        %v1254 = vpop.f32.mrb[0].mxu0
        %v1255 = vpop.f32.mrb[0].mxu0
        %v1256 = vadd.f32 0.0, %v1255
        %v1257 = vpop.f32.mrb[0].mxu0
        %1258 = vmatprep.mubr.bf16.mxu0 0
        %1259 = vmatmul.mubr.bf16.gmra.mrb[0].mxu0 %v1127
        %v1260 = vpop.f32.mrb[0].mxu0
        %v1261 = vadd.f32 0.0, %v1260
        %v1262 = vpop.f32.mrb[0].mxu0
        %v1263 = vpop.f32.mrb[0].mxu0
        %v1264 = vadd.f32 0.0, %v1263
        %v1265 = vpop.f32.mrb[0].mxu0
        %1266 = vmatprep.mubr.bf16.mxu0 0
        %1267 = vmatmul.mubr.bf16.gmra.mrb[0].mxu0 %v1128
        %v1268 = vpop.f32.mrb[0].mxu0
        %v1269 = vadd.f32 0.0, %v1268
        %v1270 = vpop.f32.mrb[0].mxu0
        %v1271 = vpop.f32.mrb[0].mxu0
        %v1272 = vadd.f32 0.0, %v1271
        %v1273 = vpop.f32.mrb[0].mxu0
        %1274 = vmatprep.mubr.bf16.mxu0 0
        %1275 = vmatmul.mubr.bf16.gmra.mrb[0].mxu0 %v1129
        %v1276 = vpop.f32.mrb[0].mxu0
        %v1277 = vadd.f32 0.0, %v1276
        %v1278 = vpop.f32.mrb[0].mxu0
        %v1279 = vpop.f32.mrb[0].mxu0
        %v1280 = vpop.f32.mrb[0].mxu0
        %1281 = vdwg.mxu0
        %v1282 = vadd.f32 %v1043, %v1229
        %v1283 = vadd.f32 %v1046, %v1232
        %v1284 = vadd.f32 %v1051, %v1237
        %v1285 = vadd.f32 %v1054, %v1240
        %v1286 = vadd.f32 %v1059, %v1245
        %v1287 = vadd.f32 %v1062, %v1248
        %v1288 = vadd.f32 %v1067, %v1253
        %v1289 = vadd.f32 %v1070, %v1256
        %v1290 = vadd.f32 %v1075, %v1261
        %v1291 = vadd.f32 %v1078, %v1264
        %v1292 = vadd.f32 %v1083, %v1269
        %v1293 = vadd.f32 %v1086, %v1272
        %v1294 = vadd.f32 %v1091, %v1277
        %v1295 = vpack.c.bf16 %v1121, %v1122
        %v1296 = vpack.c.bf16 %v1119, %v1120
        %v1297 = vpack.c.bf16 %v1117, %v1118
        %v1298 = vpack.c.bf16 %v1115, %v1116
        %v1299 = vpack.c.bf16 %v1113, %v1114
        %v1300 = vpack.c.bf16 %v1111, %v1112
        %v1301 = vpack.c.bf16 %v1110, %v1110
        %v1302 = vld [vmem:[#allocation5 + $0xc0] sm:$0xf]
        %v1303 = vld [vmem:[#allocation5 + $0xc4] sm:$0xf]
        %v1304 = vld [vmem:[#allocation5 + $0xc8] sm:$0xf]
        %v1305 = vld [vmem:[#allocation5 + $0xcc] sm:$0xf]
        %v1306 = vld [vmem:[#allocation5 + $0xd0] sm:$0xf]
        %v1307 = vld [vmem:[#allocation5 + $0xd4] sm:$0xf]
        %v1308 = vld [vmem:[#allocation5 + $0xd8] sm:$0xf]
        %v1309 = vld [vmem:[#allocation5 + $0xdc] sm:$0xf]
        %v1310 = vld [vmem:[#allocation5 + $0xe0] sm:$0xf]
        %v1311 = vld [vmem:[#allocation5 + $0xe4] sm:$0xf]
        %v1312 = vld [vmem:[#allocation5 + $0xe8] sm:$0xf]
        %v1313 = vld [vmem:[#allocation5 + $0xec] sm:$0xf]
        %v1314 = vld [vmem:[#allocation5 + $0xf0] sm:$0xf]
        %v1315 = vld [vmem:[#allocation5 + $0xf4] sm:$0xf]
        %v1316 = vld [vmem:[#allocation5 + $0xf8] sm:$0xf]
        %v1317 = vld [vmem:[#allocation5 + $0xfc] sm:$0xf]
        %v1334 = vunpack.c.l.b16 %v1302
        %v1335 = vunpack.c.l.b16 %v1303
        %v1336 = vunpack.c.l.b16 %v1304
        %v1337 = vunpack.c.l.b16 %v1305
        %v1338 = vunpack.c.l.b16 %v1306
        %v1339 = vunpack.c.l.b16 %v1307
        %v1340 = vunpack.c.l.b16 %v1308
        %v1341 = vunpack.c.l.b16 %v1309
        %v1342 = vunpack.c.l.b16 %v1310
        %v1343 = vunpack.c.l.b16 %v1311
        %v1344 = vunpack.c.l.b16 %v1312
        %v1345 = vunpack.c.l.b16 %v1313
        %v1346 = vunpack.c.l.b16 %v1314
        %v1347 = vunpack.c.l.b16 %v1315
        %v1348 = vunpack.c.l.b16 %v1316
        %v1349 = vunpack.c.l.b16 %v1317
        %v1350 = vpack.c.b16 %v1335, %v1334
        %v1351 = vpack.c.b16 %v1337, %v1336
        %v1352 = vpack.c.b16 %v1339, %v1338
        %v1353 = vpack.c.b16 %v1341, %v1340
        %v1354 = vpack.c.b16 %v1343, %v1342
        %v1355 = vpack.c.b16 %v1345, %v1344
        %v1356 = vpack.c.b16 %v1347, %v1346
        %v1357 = vpack.c.b16 %v1349, %v1348
        %1366 = vmatprep.subr.bf16.mxu0 0
        %1367 = vmatpush1.bf16.msra.mxu0 %v1350
        %1368 = vmatprep.subr.bf16.mxu0 0
        %1369 = vmatpush1.bf16.msra.mxu0 %v1351
        %1370 = vmatprep.subr.bf16.mxu0 0
        %1371 = vmatpush1.bf16.msra.mxu0 %v1352
        %1372 = vmatprep.subr.bf16.mxu0 0
        %1373 = vmatpush1.bf16.msra.mxu0 %v1353
        %1374 = vmatprep.subr.bf16.mxu0 0
        %1375 = vmatpush1.bf16.msra.mxu0 %v1354
        %1376 = vmatprep.subr.bf16.mxu0 0
        %1377 = vmatpush1.bf16.msra.mxu0 %v1355
        %1378 = vmatprep.subr.bf16.mxu0 0
        %1379 = vmatpush1.bf16.msra.mxu0 %v1356
        %1380 = vmatprep.subr.bf16.mxu0 0
        %1381 = vmatpush1.bf16.msra.mxu0 %v1357
        %1382 = vmatprep.subr.bf16.mxu0 0
        %1383 = vmatpush1.bf16.msra.mxu0 0
        %1384 = vmatprep.subr.bf16.mxu0 0
        %1385 = vmatpush1.bf16.msra.mxu0 0
        %1386 = vmatprep.subr.bf16.mxu0 0
        %1387 = vmatpush1.bf16.msra.mxu0 0
        %1388 = vmatprep.subr.bf16.mxu0 0
        %1389 = vmatpush1.bf16.msra.mxu0 0
        %1390 = vmatprep.subr.bf16.mxu0 0
        %1391 = vmatpush1.bf16.msra.mxu0 0
        %1392 = vmatprep.subr.bf16.mxu0 0
        %1393 = vmatpush1.bf16.msra.mxu0 0
        %1394 = vmatprep.subr.bf16.mxu0 0
        %1395 = vmatpush1.bf16.msra.mxu0 0
        %1396 = vmatprep.subr.bf16.mxu0 0
        %1397 = vmatpush1.bf16.msra.mxu0 0
        %1398 = vmatprep.mubr.bf16.mxu0 0
        %1399 = vmatmul.mubr.bf16.gmra.mrb[0].mxu0 %v1295
        %v1400 = vpop.f32.mrb[0].mxu0
        %v1401 = vadd.f32 0.0, %v1400
        %v1402 = vpop.f32.mrb[0].mxu0
        %v1403 = vpop.f32.mrb[0].mxu0
        %v1404 = vadd.f32 0.0, %v1403
        %v1405 = vpop.f32.mrb[0].mxu0
        %1406 = vmatprep.mubr.bf16.mxu0 0
        %1407 = vmatmul.mubr.bf16.gmra.mrb[0].mxu0 %v1296
        %v1408 = vpop.f32.mrb[0].mxu0
        %v1409 = vadd.f32 0.0, %v1408
        %v1410 = vpop.f32.mrb[0].mxu0
        %v1411 = vpop.f32.mrb[0].mxu0
        %v1412 = vadd.f32 0.0, %v1411
        %v1413 = vpop.f32.mrb[0].mxu0
        %1414 = vmatprep.mubr.bf16.mxu0 0
        %1415 = vmatmul.mubr.bf16.gmra.mrb[0].mxu0 %v1297
        %v1416 = vpop.f32.mrb[0].mxu0
        %v1417 = vadd.f32 0.0, %v1416
        %v1418 = vpop.f32.mrb[0].mxu0
        %v1419 = vpop.f32.mrb[0].mxu0
        %v1420 = vadd.f32 0.0, %v1419
        %v1421 = vpop.f32.mrb[0].mxu0
        %1422 = vmatprep.mubr.bf16.mxu0 0
        %1423 = vmatmul.mubr.bf16.gmra.mrb[0].mxu0 %v1298
        %v1424 = vpop.f32.mrb[0].mxu0
        %v1425 = vadd.f32 0.0, %v1424
        %v1426 = vpop.f32.mrb[0].mxu0
        %v1427 = vpop.f32.mrb[0].mxu0
        %v1428 = vadd.f32 0.0, %v1427
        %v1429 = vpop.f32.mrb[0].mxu0
        %1430 = vmatprep.mubr.bf16.mxu0 0
        %1431 = vmatmul.mubr.bf16.gmra.mrb[0].mxu0 %v1299
        %v1432 = vpop.f32.mrb[0].mxu0
        %v1433 = vadd.f32 0.0, %v1432
        %v1434 = vpop.f32.mrb[0].mxu0
        %v1435 = vpop.f32.mrb[0].mxu0
        %v1436 = vadd.f32 0.0, %v1435
        %v1437 = vpop.f32.mrb[0].mxu0
        %1438 = vmatprep.mubr.bf16.mxu0 0
        %1439 = vmatmul.mubr.bf16.gmra.mrb[0].mxu0 %v1300
        %v1440 = vpop.f32.mrb[0].mxu0
        %v1441 = vadd.f32 0.0, %v1440
        %v1442 = vpop.f32.mrb[0].mxu0
        %v1443 = vpop.f32.mrb[0].mxu0
        %v1444 = vadd.f32 0.0, %v1443
        %v1445 = vpop.f32.mrb[0].mxu0
        %1446 = vmatprep.mubr.bf16.mxu0 0
        %1447 = vmatmul.mubr.bf16.gmra.mrb[0].mxu0 %v1301
        %v1448 = vpop.f32.mrb[0].mxu0
        %v1449 = vadd.f32 0.0, %v1448
        %v1450 = vpop.f32.mrb[0].mxu0
        %v1451 = vpop.f32.mrb[0].mxu0
        %v1452 = vpop.f32.mrb[0].mxu0
        %1453 = vdwg.mxu0
        %v1454 = vadd.f32 %v1282, %v1401
        %v1455 = vadd.f32 %v1283, %v1404
        %v1456 = vadd.f32 %v1284, %v1409
        %v1457 = vadd.f32 %v1285, %v1412
        %v1458 = vadd.f32 %v1286, %v1417
        %v1459 = vadd.f32 %v1287, %v1420
        %v1460 = vadd.f32 %v1288, %v1425
        %v1461 = vadd.f32 %v1289, %v1428
        %v1462 = vadd.f32 %v1290, %v1433
        %v1463 = vadd.f32 %v1291, %v1436
        %v1464 = vadd.f32 %v1292, %v1441
        %v1465 = vadd.f32 %v1293, %v1444
        %v1466 = vadd.f32 %v1294, %v1449
        %v1467 = vpack.c.bf16 %v703, %v702
        %v1468 = vpack.c.bf16 %v705, %v704
        %v1469 = vpack.c.bf16 %v707, %v706
        %v1470 = vpack.c.bf16 %v709, %v708
        %v1471 = vpack.c.bf16 %v711, %v710
        %v1472 = vpack.c.bf16 %v713, %v712
        %v1473 = vpack.c.bf16 %v714, %v714
        %v1474 = vld [vmem:[#allocation5 + $0x100] sm:$0xf]
        %v1475 = vld [vmem:[#allocation5 + $0x104] sm:$0xf]
        %v1476 = vld [vmem:[#allocation5 + $0x108] sm:$0xf]
        %v1477 = vld [vmem:[#allocation5 + $0x10c] sm:$0xf]
        %v1478 = vld [vmem:[#allocation5 + $0x110] sm:$0xf]
        %v1479 = vld [vmem:[#allocation5 + $0x114] sm:$0xf]
        %v1480 = vld [vmem:[#allocation5 + $0x118] sm:$0xf]
        %v1481 = vld [vmem:[#allocation5 + $0x11c] sm:$0xf]
        %v1482 = vld [vmem:[#allocation5 + $0x120] sm:$0xf]
        %v1483 = vld [vmem:[#allocation5 + $0x124] sm:$0xf]
        %v1484 = vld [vmem:[#allocation5 + $0x128] sm:$0xf]
        %v1485 = vld [vmem:[#allocation5 + $0x12c] sm:$0xf]
        %v1486 = vld [vmem:[#allocation5 + $0x130] sm:$0xf]
        %v1487 = vld [vmem:[#allocation5 + $0x134] sm:$0xf]
        %v1488 = vld [vmem:[#allocation5 + $0x138] sm:$0xf]
        %v1489 = vld [vmem:[#allocation5 + $0x13c] sm:$0xf]
        %v1506 = vunpack.c.l.b16 %v1474
        %v1507 = vunpack.c.l.b16 %v1475
        %v1508 = vunpack.c.l.b16 %v1476
        %v1509 = vunpack.c.l.b16 %v1477
        %v1510 = vunpack.c.l.b16 %v1478
        %v1511 = vunpack.c.l.b16 %v1479
        %v1512 = vunpack.c.l.b16 %v1480
        %v1513 = vunpack.c.l.b16 %v1481
        %v1514 = vunpack.c.l.b16 %v1482
        %v1515 = vunpack.c.l.b16 %v1483
        %v1516 = vunpack.c.l.b16 %v1484
        %v1517 = vunpack.c.l.b16 %v1485
        %v1518 = vunpack.c.l.b16 %v1486
        %v1519 = vunpack.c.l.b16 %v1487
        %v1520 = vunpack.c.l.b16 %v1488
        %v1521 = vunpack.c.l.b16 %v1489
        %v1522 = vpack.c.b16 %v1507, %v1506
        %v1523 = vpack.c.b16 %v1509, %v1508
        %v1524 = vpack.c.b16 %v1511, %v1510
        %v1525 = vpack.c.b16 %v1513, %v1512
        %v1526 = vpack.c.b16 %v1515, %v1514
        %v1527 = vpack.c.b16 %v1517, %v1516
        %v1528 = vpack.c.b16 %v1519, %v1518
        %v1529 = vpack.c.b16 %v1521, %v1520
        %1538 = vmatprep.subr.bf16.mxu0 0
        %1539 = vmatpush1.bf16.msra.mxu0 %v1522
        %1540 = vmatprep.subr.bf16.mxu0 0
        %1541 = vmatpush1.bf16.msra.mxu0 %v1523
        %1542 = vmatprep.subr.bf16.mxu0 0
        %1543 = vmatpush1.bf16.msra.mxu0 %v1524
        %1544 = vmatprep.subr.bf16.mxu0 0
        %1545 = vmatpush1.bf16.msra.mxu0 %v1525
        %1546 = vmatprep.subr.bf16.mxu0 0
        %1547 = vmatpush1.bf16.msra.mxu0 %v1526
        %1548 = vmatprep.subr.bf16.mxu0 0
        %1549 = vmatpush1.bf16.msra.mxu0 %v1527
        %1550 = vmatprep.subr.bf16.mxu0 0
        %1551 = vmatpush1.bf16.msra.mxu0 %v1528
        %1552 = vmatprep.subr.bf16.mxu0 0
        %1553 = vmatpush1.bf16.msra.mxu0 %v1529
        %1554 = vmatprep.subr.bf16.mxu0 0
        %1555 = vmatpush1.bf16.msra.mxu0 0
        %1556 = vmatprep.subr.bf16.mxu0 0
        %1557 = vmatpush1.bf16.msra.mxu0 0
        %1558 = vmatprep.subr.bf16.mxu0 0
        %1559 = vmatpush1.bf16.msra.mxu0 0
        %1560 = vmatprep.subr.bf16.mxu0 0
        %1561 = vmatpush1.bf16.msra.mxu0 0
        %1562 = vmatprep.subr.bf16.mxu0 0
        %1563 = vmatpush1.bf16.msra.mxu0 0
        %1564 = vmatprep.subr.bf16.mxu0 0
        %1565 = vmatpush1.bf16.msra.mxu0 0
        %1566 = vmatprep.subr.bf16.mxu0 0
        %1567 = vmatpush1.bf16.msra.mxu0 0
        %1568 = vmatprep.subr.bf16.mxu0 0
        %1569 = vmatpush1.bf16.msra.mxu0 0
        %1570 = vmatprep.mubr.bf16.mxu0 0
        %1571 = vmatmul.mubr.bf16.gmra.mrb[0].mxu0 %v1467
        %v1572 = vpop.f32.mrb[0].mxu0
        %v1573 = vadd.f32 0.0, %v1572
        %v1574 = vpop.f32.mrb[0].mxu0
        %v1575 = vpop.f32.mrb[0].mxu0
        %v1576 = vadd.f32 0.0, %v1575
        %v1577 = vpop.f32.mrb[0].mxu0
        %1578 = vmatprep.mubr.bf16.mxu0 0
        %1579 = vmatmul.mubr.bf16.gmra.mrb[0].mxu0 %v1468
        %v1580 = vpop.f32.mrb[0].mxu0
        %v1581 = vadd.f32 0.0, %v1580
        %v1582 = vpop.f32.mrb[0].mxu0
        %v1583 = vpop.f32.mrb[0].mxu0
        %v1584 = vadd.f32 0.0, %v1583
        %v1585 = vpop.f32.mrb[0].mxu0
        %1586 = vmatprep.mubr.bf16.mxu0 0
        %1587 = vmatmul.mubr.bf16.gmra.mrb[0].mxu0 %v1469
        %v1588 = vpop.f32.mrb[0].mxu0
        %v1589 = vadd.f32 0.0, %v1588
        %v1590 = vpop.f32.mrb[0].mxu0
        %v1591 = vpop.f32.mrb[0].mxu0
        %v1592 = vadd.f32 0.0, %v1591
        %v1593 = vpop.f32.mrb[0].mxu0
        %1594 = vmatprep.mubr.bf16.mxu0 0
        %1595 = vmatmul.mubr.bf16.gmra.mrb[0].mxu0 %v1470
        %v1596 = vpop.f32.mrb[0].mxu0
        %v1597 = vadd.f32 0.0, %v1596
        %v1598 = vpop.f32.mrb[0].mxu0
        %v1599 = vpop.f32.mrb[0].mxu0
        %v1600 = vadd.f32 0.0, %v1599
        %v1601 = vpop.f32.mrb[0].mxu0
        %1602 = vmatprep.mubr.bf16.mxu0 0
        %1603 = vmatmul.mubr.bf16.gmra.mrb[0].mxu0 %v1471
        %v1604 = vpop.f32.mrb[0].mxu0
        %v1605 = vadd.f32 0.0, %v1604
        %v1606 = vpop.f32.mrb[0].mxu0
        %v1607 = vpop.f32.mrb[0].mxu0
        %v1608 = vadd.f32 0.0, %v1607
        %v1609 = vpop.f32.mrb[0].mxu0
        %1610 = vmatprep.mubr.bf16.mxu0 0
        %1611 = vmatmul.mubr.bf16.gmra.mrb[0].mxu0 %v1472
        %v1612 = vpop.f32.mrb[0].mxu0
        %v1613 = vadd.f32 0.0, %v1612
        %v1614 = vpop.f32.mrb[0].mxu0
        %v1615 = vpop.f32.mrb[0].mxu0
        %v1616 = vadd.f32 0.0, %v1615
        %v1617 = vpop.f32.mrb[0].mxu0
        %1618 = vmatprep.mubr.bf16.mxu0 0
        %1619 = vmatmul.mubr.bf16.gmra.mrb[0].mxu0 %v1473
        %v1620 = vpop.f32.mrb[0].mxu0
        %v1621 = vadd.f32 0.0, %v1620
        %v1622 = vpop.f32.mrb[0].mxu0
        %v1623 = vpop.f32.mrb[0].mxu0
        %v1624 = vpop.f32.mrb[0].mxu0
        %1625 = vdwg.mxu0
        %v1626 = vadd.f32 %v1454, %v1573
        %v1627 = vadd.f32 %v1455, %v1576
        %v1628 = vadd.f32 %v1456, %v1581
        %v1629 = vadd.f32 %v1457, %v1584
        %v1630 = vadd.f32 %v1458, %v1589
        %v1631 = vadd.f32 %v1459, %v1592
        %v1632 = vadd.f32 %v1460, %v1597
        %v1633 = vadd.f32 %v1461, %v1600
        %v1634 = vadd.f32 %v1462, %v1605
        %v1635 = vadd.f32 %v1463, %v1608
        %v1636 = vadd.f32 %v1464, %v1613
        %v1637 = vadd.f32 %v1465, %v1616
        %v1638 = vadd.f32 %v1466, %v1621
        %v1639 = vrot.slane %v702, 1
        %v1640 = vrot.slane %v703, 1
        %v1641 = vrot.slane %v704, 1
        %v1642 = vrot.slane %v705, 1
        %v1643 = vrot.slane %v706, 1
        %v1644 = vrot.slane %v707, 1
        %v1645 = vrot.slane %v708, 1
        %v1646 = vrot.slane %v709, 1
        %v1647 = vrot.slane %v710, 1
        %v1648 = vrot.slane %v711, 1
        %v1649 = vrot.slane %v712, 1
        %v1650 = vrot.slane %v713, 1
        %v1651 = vrot.slane %v714, 1
        %vm1652 = vcmp.lt.s32.totalorder %v736, 7
        %v1653 = vsel %vm1652, %v1650, %v1651
        %v1654 = vsel %vm1652, %v1649, %v1650
        %v1655 = vsel %vm1652, %v1648, %v1649
        %v1656 = vsel %vm1652, %v1647, %v1648
        %v1657 = vsel %vm1652, %v1646, %v1647
        %v1658 = vsel %vm1652, %v1645, %v1646
        %v1659 = vsel %vm1652, %v1644, %v1645
        %v1660 = vsel %vm1652, %v1643, %v1644
        %v1661 = vsel %vm1652, %v1642, %v1643
        %v1662 = vsel %vm1652, %v1641, %v1642
        %v1663 = vsel %vm1652, %v1640, %v1641
        %v1664 = vsel %vm1652, %v1639, %v1640
        %v1665 = vsel %vm1652, %v1651, %v1639
        %v1666 = vpack.c.bf16 %v1663, %v1664
        %v1667 = vpack.c.bf16 %v1661, %v1662
        %v1668 = vpack.c.bf16 %v1659, %v1660
        %v1669 = vpack.c.bf16 %v1657, %v1658
        %v1670 = vpack.c.bf16 %v1655, %v1656
        %v1671 = vpack.c.bf16 %v1653, %v1654
        %v1672 = vpack.c.bf16 %v1665, %v1665
        %v1673 = vld [vmem:[#allocation5 + $0x140] sm:$0xf]
        %v1674 = vld [vmem:[#allocation5 + $0x144] sm:$0xf]
        %v1675 = vld [vmem:[#allocation5 + $0x148] sm:$0xf]
        %v1676 = vld [vmem:[#allocation5 + $0x14c] sm:$0xf]
        %v1677 = vld [vmem:[#allocation5 + $0x150] sm:$0xf]
        %v1678 = vld [vmem:[#allocation5 + $0x154] sm:$0xf]
        %v1679 = vld [vmem:[#allocation5 + $0x158] sm:$0xf]
        %v1680 = vld [vmem:[#allocation5 + $0x15c] sm:$0xf]
        %v1681 = vld [vmem:[#allocation5 + $0x160] sm:$0xf]
        %v1682 = vld [vmem:[#allocation5 + $0x164] sm:$0xf]
        %v1683 = vld [vmem:[#allocation5 + $0x168] sm:$0xf]
        %v1684 = vld [vmem:[#allocation5 + $0x16c] sm:$0xf]
        %v1685 = vld [vmem:[#allocation5 + $0x170] sm:$0xf]
        %v1686 = vld [vmem:[#allocation5 + $0x174] sm:$0xf]
        %v1687 = vld [vmem:[#allocation5 + $0x178] sm:$0xf]
        %v1688 = vld [vmem:[#allocation5 + $0x17c] sm:$0xf]
        %v1705 = vunpack.c.l.b16 %v1673
        %v1706 = vunpack.c.l.b16 %v1674
        %v1707 = vunpack.c.l.b16 %v1675
        %v1708 = vunpack.c.l.b16 %v1676
        %v1709 = vunpack.c.l.b16 %v1677
        %v1710 = vunpack.c.l.b16 %v1678
        %v1711 = vunpack.c.l.b16 %v1679
        %v1712 = vunpack.c.l.b16 %v1680
        %v1713 = vunpack.c.l.b16 %v1681
        %v1714 = vunpack.c.l.b16 %v1682
        %v1715 = vunpack.c.l.b16 %v1683
        %v1716 = vunpack.c.l.b16 %v1684
        %v1717 = vunpack.c.l.b16 %v1685
        %v1718 = vunpack.c.l.b16 %v1686
        %v1719 = vunpack.c.l.b16 %v1687
        %v1720 = vunpack.c.l.b16 %v1688
        %v1721 = vpack.c.b16 %v1706, %v1705
        %v1722 = vpack.c.b16 %v1708, %v1707
        %v1723 = vpack.c.b16 %v1710, %v1709
        %v1724 = vpack.c.b16 %v1712, %v1711
        %v1725 = vpack.c.b16 %v1714, %v1713
        %v1726 = vpack.c.b16 %v1716, %v1715
        %v1727 = vpack.c.b16 %v1718, %v1717
        %v1728 = vpack.c.b16 %v1720, %v1719
        %1737 = vmatprep.subr.bf16.mxu0 0
        %1738 = vmatpush1.bf16.msra.mxu0 %v1721
        %1739 = vmatprep.subr.bf16.mxu0 0
        %1740 = vmatpush1.bf16.msra.mxu0 %v1722
        %1741 = vmatprep.subr.bf16.mxu0 0
        %1742 = vmatpush1.bf16.msra.mxu0 %v1723
        %1743 = vmatprep.subr.bf16.mxu0 0
        %1744 = vmatpush1.bf16.msra.mxu0 %v1724
        %1745 = vmatprep.subr.bf16.mxu0 0
        %1746 = vmatpush1.bf16.msra.mxu0 %v1725
        %1747 = vmatprep.subr.bf16.mxu0 0
        %1748 = vmatpush1.bf16.msra.mxu0 %v1726
        %1749 = vmatprep.subr.bf16.mxu0 0
        %1750 = vmatpush1.bf16.msra.mxu0 %v1727
        %1751 = vmatprep.subr.bf16.mxu0 0
        %1752 = vmatpush1.bf16.msra.mxu0 %v1728
        %1753 = vmatprep.subr.bf16.mxu0 0
        %1754 = vmatpush1.bf16.msra.mxu0 0
        %1755 = vmatprep.subr.bf16.mxu0 0
        %1756 = vmatpush1.bf16.msra.mxu0 0
        %1757 = vmatprep.subr.bf16.mxu0 0
        %1758 = vmatpush1.bf16.msra.mxu0 0
        %1759 = vmatprep.subr.bf16.mxu0 0
        %1760 = vmatpush1.bf16.msra.mxu0 0
        %1761 = vmatprep.subr.bf16.mxu0 0
        %1762 = vmatpush1.bf16.msra.mxu0 0
        %1763 = vmatprep.subr.bf16.mxu0 0
        %1764 = vmatpush1.bf16.msra.mxu0 0
        %1765 = vmatprep.subr.bf16.mxu0 0
        %1766 = vmatpush1.bf16.msra.mxu0 0
        %1767 = vmatprep.subr.bf16.mxu0 0
        %1768 = vmatpush1.bf16.msra.mxu0 0
        %1769 = vmatprep.mubr.bf16.mxu0 0
        %1770 = vmatmul.mubr.bf16.gmra.mrb[0].mxu0 %v1666
        %v1771 = vpop.f32.mrb[0].mxu0
        %v1772 = vadd.f32 0.0, %v1771
        %v1773 = vpop.f32.mrb[0].mxu0
        %v1774 = vpop.f32.mrb[0].mxu0
        %v1775 = vadd.f32 0.0, %v1774
        %v1776 = vpop.f32.mrb[0].mxu0
        %1777 = vmatprep.mubr.bf16.mxu0 0
        %1778 = vmatmul.mubr.bf16.gmra.mrb[0].mxu0 %v1667
        %v1779 = vpop.f32.mrb[0].mxu0
        %v1780 = vadd.f32 0.0, %v1779
        %v1781 = vpop.f32.mrb[0].mxu0
        %v1782 = vpop.f32.mrb[0].mxu0
        %v1783 = vadd.f32 0.0, %v1782
        %v1784 = vpop.f32.mrb[0].mxu0
        %1785 = vmatprep.mubr.bf16.mxu0 0
        %1786 = vmatmul.mubr.bf16.gmra.mrb[0].mxu0 %v1668
        %v1787 = vpop.f32.mrb[0].mxu0
        %v1788 = vadd.f32 0.0, %v1787
        %v1789 = vpop.f32.mrb[0].mxu0
        %v1790 = vpop.f32.mrb[0].mxu0
        %v1791 = vadd.f32 0.0, %v1790
        %v1792 = vpop.f32.mrb[0].mxu0
        %1793 = vmatprep.mubr.bf16.mxu0 0
        %1794 = vmatmul.mubr.bf16.gmra.mrb[0].mxu0 %v1669
        %v1795 = vpop.f32.mrb[0].mxu0
        %v1796 = vadd.f32 0.0, %v1795
        %v1797 = vpop.f32.mrb[0].mxu0
        %v1798 = vpop.f32.mrb[0].mxu0
        %v1799 = vadd.f32 0.0, %v1798
        %v1800 = vpop.f32.mrb[0].mxu0
        %1801 = vmatprep.mubr.bf16.mxu0 0
        %1802 = vmatmul.mubr.bf16.gmra.mrb[0].mxu0 %v1670
        %v1803 = vpop.f32.mrb[0].mxu0
        %v1804 = vadd.f32 0.0, %v1803
        %v1805 = vpop.f32.mrb[0].mxu0
        %v1806 = vpop.f32.mrb[0].mxu0
        %v1807 = vadd.f32 0.0, %v1806
        %v1808 = vpop.f32.mrb[0].mxu0
        %1809 = vmatprep.mubr.bf16.mxu0 0
        %1810 = vmatmul.mubr.bf16.gmra.mrb[0].mxu0 %v1671
        %v1811 = vpop.f32.mrb[0].mxu0
        %v1812 = vadd.f32 0.0, %v1811
        %v1813 = vpop.f32.mrb[0].mxu0
        %v1814 = vpop.f32.mrb[0].mxu0
        %v1815 = vadd.f32 0.0, %v1814
        %v1816 = vpop.f32.mrb[0].mxu0
        %1817 = vmatprep.mubr.bf16.mxu0 0
        %1818 = vmatmul.mubr.bf16.gmra.mrb[0].mxu0 %v1672
        %v1819 = vpop.f32.mrb[0].mxu0
        %v1820 = vadd.f32 0.0, %v1819
        %v1821 = vpop.f32.mrb[0].mxu0
        %v1822 = vpop.f32.mrb[0].mxu0
        %v1823 = vpop.f32.mrb[0].mxu0
        %1824 = vdwg.mxu0
        %v1825 = vadd.f32 %v1626, %v1772
        %v1826 = vadd.f32 %v1627, %v1775
        %v1827 = vadd.f32 %v1628, %v1780
        %v1828 = vadd.f32 %v1629, %v1783
        %v1829 = vadd.f32 %v1630, %v1788
        %v1830 = vadd.f32 %v1631, %v1791
        %v1831 = vadd.f32 %v1632, %v1796
        %v1832 = vadd.f32 %v1633, %v1799
        %v1833 = vadd.f32 %v1634, %v1804
        %v1834 = vadd.f32 %v1635, %v1807
        %v1835 = vadd.f32 %v1636, %v1812
        %v1836 = vadd.f32 %v1637, %v1815
        %v1837 = vadd.f32 %v1638, %v1820
        %v1838 = vpack.c.bf16 %v1662, %v1663
        %v1839 = vpack.c.bf16 %v1660, %v1661
        %v1840 = vpack.c.bf16 %v1658, %v1659
        %v1841 = vpack.c.bf16 %v1656, %v1657
        %v1842 = vpack.c.bf16 %v1654, %v1655
        %v1843 = vpack.c.bf16 %v1665, %v1653
        %v1844 = vpack.c.bf16 %v1664, %v1664
        %v1845 = vld [vmem:[#allocation5 + $0x180] sm:$0xf]
        %v1846 = vld [vmem:[#allocation5 + $0x184] sm:$0xf]
        %v1847 = vld [vmem:[#allocation5 + $0x188] sm:$0xf]
        %v1848 = vld [vmem:[#allocation5 + $0x18c] sm:$0xf]
        %v1849 = vld [vmem:[#allocation5 + $0x190] sm:$0xf]
        %v1850 = vld [vmem:[#allocation5 + $0x194] sm:$0xf]
        %v1851 = vld [vmem:[#allocation5 + $0x198] sm:$0xf]
        %v1852 = vld [vmem:[#allocation5 + $0x19c] sm:$0xf]
        %v1853 = vld [vmem:[#allocation5 + $0x1a0] sm:$0xf]
        %v1854 = vld [vmem:[#allocation5 + $0x1a4] sm:$0xf]
        %v1855 = vld [vmem:[#allocation5 + $0x1a8] sm:$0xf]
        %v1856 = vld [vmem:[#allocation5 + $0x1ac] sm:$0xf]
        %v1857 = vld [vmem:[#allocation5 + $0x1b0] sm:$0xf]
        %v1858 = vld [vmem:[#allocation5 + $0x1b4] sm:$0xf]
        %v1859 = vld [vmem:[#allocation5 + $0x1b8] sm:$0xf]
        %v1860 = vld [vmem:[#allocation5 + $0x1bc] sm:$0xf]
        %v1877 = vunpack.c.l.b16 %v1845
        %v1878 = vunpack.c.l.b16 %v1846
        %v1879 = vunpack.c.l.b16 %v1847
        %v1880 = vunpack.c.l.b16 %v1848
        %v1881 = vunpack.c.l.b16 %v1849
        %v1882 = vunpack.c.l.b16 %v1850
        %v1883 = vunpack.c.l.b16 %v1851
        %v1884 = vunpack.c.l.b16 %v1852
        %v1885 = vunpack.c.l.b16 %v1853
        %v1886 = vunpack.c.l.b16 %v1854
        %v1887 = vunpack.c.l.b16 %v1855
        %v1888 = vunpack.c.l.b16 %v1856
        %v1889 = vunpack.c.l.b16 %v1857
        %v1890 = vunpack.c.l.b16 %v1858
        %v1891 = vunpack.c.l.b16 %v1859
        %v1892 = vunpack.c.l.b16 %v1860
        %v1893 = vpack.c.b16 %v1878, %v1877
        %v1894 = vpack.c.b16 %v1880, %v1879
        %v1895 = vpack.c.b16 %v1882, %v1881
        %v1896 = vpack.c.b16 %v1884, %v1883
        %v1897 = vpack.c.b16 %v1886, %v1885
        %v1898 = vpack.c.b16 %v1888, %v1887
        %v1899 = vpack.c.b16 %v1890, %v1889
        %v1900 = vpack.c.b16 %v1892, %v1891
        %1909 = vmatprep.subr.bf16.mxu0 0
        %1910 = vmatpush1.bf16.msra.mxu0 %v1893
        %1911 = vmatprep.subr.bf16.mxu0 0
        %1912 = vmatpush1.bf16.msra.mxu0 %v1894
        %1913 = vmatprep.subr.bf16.mxu0 0
        %1914 = vmatpush1.bf16.msra.mxu0 %v1895
        %1915 = vmatprep.subr.bf16.mxu0 0
        %1916 = vmatpush1.bf16.msra.mxu0 %v1896
        %1917 = vmatprep.subr.bf16.mxu0 0
        %1918 = vmatpush1.bf16.msra.mxu0 %v1897
        %1919 = vmatprep.subr.bf16.mxu0 0
        %1920 = vmatpush1.bf16.msra.mxu0 %v1898
        %1921 = vmatprep.subr.bf16.mxu0 0
        %1922 = vmatpush1.bf16.msra.mxu0 %v1899
        %1923 = vmatprep.subr.bf16.mxu0 0
        %1924 = vmatpush1.bf16.msra.mxu0 %v1900
        %1925 = vmatprep.subr.bf16.mxu0 0
        %1926 = vmatpush1.bf16.msra.mxu0 0
        %1927 = vmatprep.subr.bf16.mxu0 0
        %1928 = vmatpush1.bf16.msra.mxu0 0
        %1929 = vmatprep.subr.bf16.mxu0 0
        %1930 = vmatpush1.bf16.msra.mxu0 0
        %1931 = vmatprep.subr.bf16.mxu0 0
        %1932 = vmatpush1.bf16.msra.mxu0 0
        %1933 = vmatprep.subr.bf16.mxu0 0
        %1934 = vmatpush1.bf16.msra.mxu0 0
        %1935 = vmatprep.subr.bf16.mxu0 0
        %1936 = vmatpush1.bf16.msra.mxu0 0
        %1937 = vmatprep.subr.bf16.mxu0 0
        %1938 = vmatpush1.bf16.msra.mxu0 0
        %1939 = vmatprep.subr.bf16.mxu0 0
        %1940 = vmatpush1.bf16.msra.mxu0 0
        %1941 = vmatprep.mubr.bf16.mxu0 0
        %1942 = vmatmul.mubr.bf16.gmra.mrb[0].mxu0 %v1838
        %v1943 = vpop.f32.mrb[0].mxu0
        %v1944 = vadd.f32 0.0, %v1943
        %v1945 = vpop.f32.mrb[0].mxu0
        %v1946 = vpop.f32.mrb[0].mxu0
        %v1947 = vadd.f32 0.0, %v1946
        %v1948 = vpop.f32.mrb[0].mxu0
        %1949 = vmatprep.mubr.bf16.mxu0 0
        %1950 = vmatmul.mubr.bf16.gmra.mrb[0].mxu0 %v1839
        %v1951 = vpop.f32.mrb[0].mxu0
        %v1952 = vadd.f32 0.0, %v1951
        %v1953 = vpop.f32.mrb[0].mxu0
        %v1954 = vpop.f32.mrb[0].mxu0
        %v1955 = vadd.f32 0.0, %v1954
        %v1956 = vpop.f32.mrb[0].mxu0
        %1957 = vmatprep.mubr.bf16.mxu0 0
        %1958 = vmatmul.mubr.bf16.gmra.mrb[0].mxu0 %v1840
        %v1959 = vpop.f32.mrb[0].mxu0
        %v1960 = vadd.f32 0.0, %v1959
        %v1961 = vpop.f32.mrb[0].mxu0
        %v1962 = vpop.f32.mrb[0].mxu0
        %v1963 = vadd.f32 0.0, %v1962
        %v1964 = vpop.f32.mrb[0].mxu0
        %1965 = vmatprep.mubr.bf16.mxu0 0
        %1966 = vmatmul.mubr.bf16.gmra.mrb[0].mxu0 %v1841
        %v1967 = vpop.f32.mrb[0].mxu0
        %v1968 = vadd.f32 0.0, %v1967
        %v1969 = vpop.f32.mrb[0].mxu0
        %v1970 = vpop.f32.mrb[0].mxu0
        %v1971 = vadd.f32 0.0, %v1970
        %v1972 = vpop.f32.mrb[0].mxu0
        %1973 = vmatprep.mubr.bf16.mxu0 0
        %1974 = vmatmul.mubr.bf16.gmra.mrb[0].mxu0 %v1842
        %v1975 = vpop.f32.mrb[0].mxu0
        %v1976 = vadd.f32 0.0, %v1975
        %v1977 = vpop.f32.mrb[0].mxu0
        %v1978 = vpop.f32.mrb[0].mxu0
        %v1979 = vadd.f32 0.0, %v1978
        %v1980 = vpop.f32.mrb[0].mxu0
        %1981 = vmatprep.mubr.bf16.mxu0 0
        %1982 = vmatmul.mubr.bf16.gmra.mrb[0].mxu0 %v1843
        %v1983 = vpop.f32.mrb[0].mxu0
        %v1984 = vadd.f32 0.0, %v1983
        %v1985 = vpop.f32.mrb[0].mxu0
        %v1986 = vpop.f32.mrb[0].mxu0
        %v1987 = vadd.f32 0.0, %v1986
        %v1988 = vpop.f32.mrb[0].mxu0
        %1989 = vmatprep.mubr.bf16.mxu0 0
        %1990 = vmatmul.mubr.bf16.gmra.mrb[0].mxu0 %v1844
        %v1991 = vpop.f32.mrb[0].mxu0
        %v1992 = vadd.f32 0.0, %v1991
        %v1993 = vpop.f32.mrb[0].mxu0
        %v1994 = vpop.f32.mrb[0].mxu0
        %v1995 = vpop.f32.mrb[0].mxu0
        %1996 = vdwg.mxu0
        %v1997 = vadd.f32 %v1825, %v1944
        %v1998 = vadd.f32 %v1826, %v1947
        %v1999 = vadd.f32 %v1827, %v1952
        %v2000 = vadd.f32 %v1828, %v1955
        %v2001 = vadd.f32 %v1829, %v1960
        %v2002 = vadd.f32 %v1830, %v1963
        %v2003 = vadd.f32 %v1831, %v1968
        %v2004 = vadd.f32 %v1832, %v1971
        %v2005 = vadd.f32 %v1833, %v1976
        %v2006 = vadd.f32 %v1834, %v1979
        %v2007 = vadd.f32 %v1835, %v1984
        %v2008 = vadd.f32 %v1836, %v1987
        %v2009 = vadd.f32 %v1837, %v1992
        %v2010 = vrot.slane %v702, 2
        %v2011 = vrot.slane %v703, 2
        %v2012 = vrot.slane %v704, 2
        %v2013 = vrot.slane %v705, 2
        %v2014 = vrot.slane %v706, 2
        %v2015 = vrot.slane %v707, 2
        %v2016 = vrot.slane %v708, 2
        %v2017 = vrot.slane %v709, 2
        %v2018 = vrot.slane %v710, 2
        %v2019 = vrot.slane %v711, 2
        %v2020 = vrot.slane %v712, 2
        %v2021 = vrot.slane %v713, 2
        %v2022 = vrot.slane %v714, 2
        %vm2023 = vcmp.lt.s32.totalorder %v736, 6
        %v2024 = vsel %vm2023, %v2021, %v2022
        %v2025 = vsel %vm2023, %v2020, %v2021
        %v2026 = vsel %vm2023, %v2019, %v2020
        %v2027 = vsel %vm2023, %v2018, %v2019
        %v2028 = vsel %vm2023, %v2017, %v2018
        %v2029 = vsel %vm2023, %v2016, %v2017
        %v2030 = vsel %vm2023, %v2015, %v2016
        %v2031 = vsel %vm2023, %v2014, %v2015
        %v2032 = vsel %vm2023, %v2013, %v2014
        %v2033 = vsel %vm2023, %v2012, %v2013
        %v2034 = vsel %vm2023, %v2011, %v2012
        %v2035 = vsel %vm2023, %v2010, %v2011
        %v2036 = vsel %vm2023, %v2022, %v2010
        %v2037 = vpack.c.bf16 %v2033, %v2034
        %v2038 = vpack.c.bf16 %v2031, %v2032
        %v2039 = vpack.c.bf16 %v2029, %v2030
        %v2040 = vpack.c.bf16 %v2027, %v2028
        %v2041 = vpack.c.bf16 %v2025, %v2026
        %v2042 = vpack.c.bf16 %v2036, %v2024
        %v2043 = vpack.c.bf16 %v2035, %v2035
        %v2044 = vld [vmem:[#allocation5 + $0x1c0] sm:$0xf]
        %v2045 = vld [vmem:[#allocation5 + $0x1c4] sm:$0xf]
        %v2046 = vld [vmem:[#allocation5 + $0x1c8] sm:$0xf]
        %v2047 = vld [vmem:[#allocation5 + $0x1cc] sm:$0xf]
        %v2048 = vld [vmem:[#allocation5 + $0x1d0] sm:$0xf]
        %v2049 = vld [vmem:[#allocation5 + $0x1d4] sm:$0xf]
        %v2050 = vld [vmem:[#allocation5 + $0x1d8] sm:$0xf]
        %v2051 = vld [vmem:[#allocation5 + $0x1dc] sm:$0xf]
        %v2052 = vld [vmem:[#allocation5 + $0x1e0] sm:$0xf]
        %v2053 = vld [vmem:[#allocation5 + $0x1e4] sm:$0xf]
        %v2054 = vld [vmem:[#allocation5 + $0x1e8] sm:$0xf]
        %v2055 = vld [vmem:[#allocation5 + $0x1ec] sm:$0xf]
        %v2056 = vld [vmem:[#allocation5 + $0x1f0] sm:$0xf]
        %v2057 = vld [vmem:[#allocation5 + $0x1f4] sm:$0xf]
        %v2058 = vld [vmem:[#allocation5 + $0x1f8] sm:$0xf]
        %v2059 = vld [vmem:[#allocation5 + $0x1fc] sm:$0xf]
        %v2076 = vunpack.c.l.b16 %v2044
        %v2077 = vunpack.c.l.b16 %v2045
        %v2078 = vunpack.c.l.b16 %v2046
        %v2079 = vunpack.c.l.b16 %v2047
        %v2080 = vunpack.c.l.b16 %v2048
        %v2081 = vunpack.c.l.b16 %v2049
        %v2082 = vunpack.c.l.b16 %v2050
        %v2083 = vunpack.c.l.b16 %v2051
        %v2084 = vunpack.c.l.b16 %v2052
        %v2085 = vunpack.c.l.b16 %v2053
        %v2086 = vunpack.c.l.b16 %v2054
        %v2087 = vunpack.c.l.b16 %v2055
        %v2088 = vunpack.c.l.b16 %v2056
        %v2089 = vunpack.c.l.b16 %v2057
        %v2090 = vunpack.c.l.b16 %v2058
        %v2091 = vunpack.c.l.b16 %v2059
        %v2092 = vpack.c.b16 %v2077, %v2076
        %v2093 = vpack.c.b16 %v2079, %v2078
        %v2094 = vpack.c.b16 %v2081, %v2080
        %v2095 = vpack.c.b16 %v2083, %v2082
        %v2096 = vpack.c.b16 %v2085, %v2084
        %v2097 = vpack.c.b16 %v2087, %v2086
        %v2098 = vpack.c.b16 %v2089, %v2088
        %v2099 = vpack.c.b16 %v2091, %v2090
        %2108 = vmatprep.subr.bf16.mxu0 0
        %2109 = vmatpush1.bf16.msra.mxu0 %v2092
        %2110 = vmatprep.subr.bf16.mxu0 0
        %2111 = vmatpush1.bf16.msra.mxu0 %v2093
        %2112 = vmatprep.subr.bf16.mxu0 0
        %2113 = vmatpush1.bf16.msra.mxu0 %v2094
        %2114 = vmatprep.subr.bf16.mxu0 0
        %2115 = vmatpush1.bf16.msra.mxu0 %v2095
        %2116 = vmatprep.subr.bf16.mxu0 0
        %2117 = vmatpush1.bf16.msra.mxu0 %v2096
        %2118 = vmatprep.subr.bf16.mxu0 0
        %2119 = vmatpush1.bf16.msra.mxu0 %v2097
        %2120 = vmatprep.subr.bf16.mxu0 0
        %2121 = vmatpush1.bf16.msra.mxu0 %v2098
        %2122 = vmatprep.subr.bf16.mxu0 0
        %2123 = vmatpush1.bf16.msra.mxu0 %v2099
        %2124 = vmatprep.subr.bf16.mxu0 0
        %2125 = vmatpush1.bf16.msra.mxu0 0
        %2126 = vmatprep.subr.bf16.mxu0 0
        %2127 = vmatpush1.bf16.msra.mxu0 0
        %2128 = vmatprep.subr.bf16.mxu0 0
        %2129 = vmatpush1.bf16.msra.mxu0 0
        %2130 = vmatprep.subr.bf16.mxu0 0
        %2131 = vmatpush1.bf16.msra.mxu0 0
        %2132 = vmatprep.subr.bf16.mxu0 0
        %2133 = vmatpush1.bf16.msra.mxu0 0
        %2134 = vmatprep.subr.bf16.mxu0 0
        %2135 = vmatpush1.bf16.msra.mxu0 0
        %2136 = vmatprep.subr.bf16.mxu0 0
        %2137 = vmatpush1.bf16.msra.mxu0 0
        %2138 = vmatprep.subr.bf16.mxu0 0
        %2139 = vmatpush1.bf16.msra.mxu0 0
        %2140 = vmatprep.mubr.bf16.mxu0 0
        %2141 = vmatmul.mubr.bf16.gmra.mrb[0].mxu0 %v2037
        %v2142 = vpop.f32.mrb[0].mxu0
        %v2143 = vadd.f32 0.0, %v2142
        %v2144 = vpop.f32.mrb[0].mxu0
        %v2145 = vpop.f32.mrb[0].mxu0
        %v2146 = vadd.f32 0.0, %v2145
        %v2147 = vpop.f32.mrb[0].mxu0
        %2148 = vmatprep.mubr.bf16.mxu0 0
        %2149 = vmatmul.mubr.bf16.gmra.mrb[0].mxu0 %v2038
        %v2150 = vpop.f32.mrb[0].mxu0
        %v2151 = vadd.f32 0.0, %v2150
        %v2152 = vpop.f32.mrb[0].mxu0
        %v2153 = vpop.f32.mrb[0].mxu0
        %v2154 = vadd.f32 0.0, %v2153
        %v2155 = vpop.f32.mrb[0].mxu0
        %2156 = vmatprep.mubr.bf16.mxu0 0
        %2157 = vmatmul.mubr.bf16.gmra.mrb[0].mxu0 %v2039
        %v2158 = vpop.f32.mrb[0].mxu0
        %v2159 = vadd.f32 0.0, %v2158
        %v2160 = vpop.f32.mrb[0].mxu0
        %v2161 = vpop.f32.mrb[0].mxu0
        %v2162 = vadd.f32 0.0, %v2161
        %v2163 = vpop.f32.mrb[0].mxu0
        %2164 = vmatprep.mubr.bf16.mxu0 0
        %2165 = vmatmul.mubr.bf16.gmra.mrb[0].mxu0 %v2040
        %v2166 = vpop.f32.mrb[0].mxu0
        %v2167 = vadd.f32 0.0, %v2166
        %v2168 = vpop.f32.mrb[0].mxu0
        %v2169 = vpop.f32.mrb[0].mxu0
        %v2170 = vadd.f32 0.0, %v2169
        %v2171 = vpop.f32.mrb[0].mxu0
        %2172 = vmatprep.mubr.bf16.mxu0 0
        %2173 = vmatmul.mubr.bf16.gmra.mrb[0].mxu0 %v2041
        %v2174 = vpop.f32.mrb[0].mxu0
        %v2175 = vadd.f32 0.0, %v2174
        %v2176 = vpop.f32.mrb[0].mxu0
        %v2177 = vpop.f32.mrb[0].mxu0
        %v2178 = vadd.f32 0.0, %v2177
        %v2179 = vpop.f32.mrb[0].mxu0
        %2180 = vmatprep.mubr.bf16.mxu0 0
        %2181 = vmatmul.mubr.bf16.gmra.mrb[0].mxu0 %v2042
        %v2182 = vpop.f32.mrb[0].mxu0
        %v2183 = vadd.f32 0.0, %v2182
        %v2184 = vpop.f32.mrb[0].mxu0
        %v2185 = vpop.f32.mrb[0].mxu0
        %v2186 = vadd.f32 0.0, %v2185
        %v2187 = vpop.f32.mrb[0].mxu0
        %2188 = vmatprep.mubr.bf16.mxu0 0
        %2189 = vmatmul.mubr.bf16.gmra.mrb[0].mxu0 %v2043
        %v2190 = vpop.f32.mrb[0].mxu0
        %v2191 = vadd.f32 0.0, %v2190
        %v2192 = vpop.f32.mrb[0].mxu0
        %v2193 = vpop.f32.mrb[0].mxu0
        %v2194 = vpop.f32.mrb[0].mxu0
        %2195 = vdwg.mxu0
        %v2196 = vadd.f32 %v1997, %v2143
        %v2197 = vadd.f32 %v1998, %v2146
        %v2198 = vadd.f32 %v1999, %v2151
        %v2199 = vadd.f32 %v2000, %v2154
        %v2200 = vadd.f32 %v2001, %v2159
        %v2201 = vadd.f32 %v2002, %v2162
        %v2202 = vadd.f32 %v2003, %v2167
        %v2203 = vadd.f32 %v2004, %v2170
        %v2204 = vadd.f32 %v2005, %v2175
        %v2205 = vadd.f32 %v2006, %v2178
        %v2206 = vadd.f32 %v2007, %v2183
        %v2207 = vadd.f32 %v2008, %v2186
        %v2208 = vadd.f32 %v2009, %v2191
        %v2209 = vrot.slane %v702, 3
        %v2210 = vrot.slane %v703, 3
        %v2211 = vrot.slane %v704, 3
        %v2212 = vrot.slane %v705, 3
        %v2213 = vrot.slane %v706, 3
        %v2214 = vrot.slane %v707, 3
        %v2215 = vrot.slane %v708, 3
        %v2216 = vrot.slane %v709, 3
        %v2217 = vrot.slane %v710, 3
        %v2218 = vrot.slane %v711, 3
        %v2219 = vrot.slane %v712, 3
        %v2220 = vrot.slane %v713, 3
        %v2221 = vrot.slane %v714, 3
        %vm2222 = vcmp.lt.s32.totalorder %v736, 5
        %v2223 = vsel %vm2222, %v2220, %v2221
        %v2224 = vsel %vm2222, %v2219, %v2220
        %v2225 = vsel %vm2222, %v2218, %v2219
        %v2226 = vsel %vm2222, %v2217, %v2218
        %v2227 = vsel %vm2222, %v2216, %v2217
        %v2228 = vsel %vm2222, %v2215, %v2216
        %v2229 = vsel %vm2222, %v2214, %v2215
        %v2230 = vsel %vm2222, %v2213, %v2214
        %v2231 = vsel %vm2222, %v2212, %v2213
        %v2232 = vsel %vm2222, %v2211, %v2212
        %v2233 = vsel %vm2222, %v2210, %v2211
        %v2234 = vsel %vm2222, %v2209, %v2210
        %v2235 = vsel %vm2222, %v2221, %v2209
        %v2236 = vpack.c.bf16 %v2232, %v2233
        %v2237 = vpack.c.bf16 %v2230, %v2231
        %v2238 = vpack.c.bf16 %v2228, %v2229
        %v2239 = vpack.c.bf16 %v2226, %v2227
        %v2240 = vpack.c.bf16 %v2224, %v2225
        %v2241 = vpack.c.bf16 %v2235, %v2223
        %v2242 = vpack.c.bf16 %v2234, %v2234
        %v2243 = vld [vmem:[#allocation5 + $0x200] sm:$0xf]
        %v2244 = vld [vmem:[#allocation5 + $0x204] sm:$0xf]
        %v2245 = vld [vmem:[#allocation5 + $0x208] sm:$0xf]
        %v2246 = vld [vmem:[#allocation5 + $0x20c] sm:$0xf]
        %v2247 = vld [vmem:[#allocation5 + $0x210] sm:$0xf]
        %v2248 = vld [vmem:[#allocation5 + $0x214] sm:$0xf]
        %v2249 = vld [vmem:[#allocation5 + $0x218] sm:$0xf]
        %v2250 = vld [vmem:[#allocation5 + $0x21c] sm:$0xf]
        %v2251 = vld [vmem:[#allocation5 + $0x220] sm:$0xf]
        %v2252 = vld [vmem:[#allocation5 + $0x224] sm:$0xf]
        %v2253 = vld [vmem:[#allocation5 + $0x228] sm:$0xf]
        %v2254 = vld [vmem:[#allocation5 + $0x22c] sm:$0xf]
        %v2255 = vld [vmem:[#allocation5 + $0x230] sm:$0xf]
        %v2256 = vld [vmem:[#allocation5 + $0x234] sm:$0xf]
        %v2257 = vld [vmem:[#allocation5 + $0x238] sm:$0xf]
        %v2258 = vld [vmem:[#allocation5 + $0x23c] sm:$0xf]
        %v2275 = vunpack.c.l.b16 %v2243
        %v2276 = vunpack.c.l.b16 %v2244
        %v2277 = vunpack.c.l.b16 %v2245
        %v2278 = vunpack.c.l.b16 %v2246
        %v2279 = vunpack.c.l.b16 %v2247
        %v2280 = vunpack.c.l.b16 %v2248
        %v2281 = vunpack.c.l.b16 %v2249
        %v2282 = vunpack.c.l.b16 %v2250
        %v2283 = vunpack.c.l.b16 %v2251
        %v2284 = vunpack.c.l.b16 %v2252
        %v2285 = vunpack.c.l.b16 %v2253
        %v2286 = vunpack.c.l.b16 %v2254
        %v2287 = vunpack.c.l.b16 %v2255
        %v2288 = vunpack.c.l.b16 %v2256
        %v2289 = vunpack.c.l.b16 %v2257
        %v2290 = vunpack.c.l.b16 %v2258
        %v2291 = vpack.c.b16 %v2276, %v2275
        %v2292 = vpack.c.b16 %v2278, %v2277
        %v2293 = vpack.c.b16 %v2280, %v2279
        %v2294 = vpack.c.b16 %v2282, %v2281
        %v2295 = vpack.c.b16 %v2284, %v2283
        %v2296 = vpack.c.b16 %v2286, %v2285
        %v2297 = vpack.c.b16 %v2288, %v2287
        %v2298 = vpack.c.b16 %v2290, %v2289
        %2307 = vmatprep.subr.bf16.mxu0 0
        %2308 = vmatpush1.bf16.msra.mxu0 %v2291
        %2309 = vmatprep.subr.bf16.mxu0 0
        %2310 = vmatpush1.bf16.msra.mxu0 %v2292
        %2311 = vmatprep.subr.bf16.mxu0 0
        %2312 = vmatpush1.bf16.msra.mxu0 %v2293
        %2313 = vmatprep.subr.bf16.mxu0 0
        %2314 = vmatpush1.bf16.msra.mxu0 %v2294
        %2315 = vmatprep.subr.bf16.mxu0 0
        %2316 = vmatpush1.bf16.msra.mxu0 %v2295
        %2317 = vmatprep.subr.bf16.mxu0 0
        %2318 = vmatpush1.bf16.msra.mxu0 %v2296
        %2319 = vmatprep.subr.bf16.mxu0 0
        %2320 = vmatpush1.bf16.msra.mxu0 %v2297
        %2321 = vmatprep.subr.bf16.mxu0 0
        %2322 = vmatpush1.bf16.msra.mxu0 %v2298
        %2323 = vmatprep.subr.bf16.mxu0 0
        %2324 = vmatpush1.bf16.msra.mxu0 0
        %2325 = vmatprep.subr.bf16.mxu0 0
        %2326 = vmatpush1.bf16.msra.mxu0 0
        %2327 = vmatprep.subr.bf16.mxu0 0
        %2328 = vmatpush1.bf16.msra.mxu0 0
        %2329 = vmatprep.subr.bf16.mxu0 0
        %2330 = vmatpush1.bf16.msra.mxu0 0
        %2331 = vmatprep.subr.bf16.mxu0 0
        %2332 = vmatpush1.bf16.msra.mxu0 0
        %2333 = vmatprep.subr.bf16.mxu0 0
        %2334 = vmatpush1.bf16.msra.mxu0 0
        %2335 = vmatprep.subr.bf16.mxu0 0
        %2336 = vmatpush1.bf16.msra.mxu0 0
        %2337 = vmatprep.subr.bf16.mxu0 0
        %2338 = vmatpush1.bf16.msra.mxu0 0
        %2339 = vmatprep.mubr.bf16.mxu0 0
        %2340 = vmatmul.mubr.bf16.gmra.mrb[0].mxu0 %v2236
        %v2341 = vpop.f32.mrb[0].mxu0
        %v2342 = vadd.f32 0.0, %v2341
        %v2343 = vpop.f32.mrb[0].mxu0
        %v2344 = vpop.f32.mrb[0].mxu0
        %v2345 = vadd.f32 0.0, %v2344
        %v2346 = vpop.f32.mrb[0].mxu0
        %2347 = vmatprep.mubr.bf16.mxu0 0
        %2348 = vmatmul.mubr.bf16.gmra.mrb[0].mxu0 %v2237
        %v2349 = vpop.f32.mrb[0].mxu0
        %v2350 = vadd.f32 0.0, %v2349
        %v2351 = vpop.f32.mrb[0].mxu0
        %v2352 = vpop.f32.mrb[0].mxu0
        %v2353 = vadd.f32 0.0, %v2352
        %v2354 = vpop.f32.mrb[0].mxu0
        %2355 = vmatprep.mubr.bf16.mxu0 0
        %2356 = vmatmul.mubr.bf16.gmra.mrb[0].mxu0 %v2238
        %v2357 = vpop.f32.mrb[0].mxu0
        %v2358 = vadd.f32 0.0, %v2357
        %v2359 = vpop.f32.mrb[0].mxu0
        %v2360 = vpop.f32.mrb[0].mxu0
        %v2361 = vadd.f32 0.0, %v2360
        %v2362 = vpop.f32.mrb[0].mxu0
        %2363 = vmatprep.mubr.bf16.mxu0 0
        %2364 = vmatmul.mubr.bf16.gmra.mrb[0].mxu0 %v2239
        %v2365 = vpop.f32.mrb[0].mxu0
        %v2366 = vadd.f32 0.0, %v2365
        %v2367 = vpop.f32.mrb[0].mxu0
        %v2368 = vpop.f32.mrb[0].mxu0
        %v2369 = vadd.f32 0.0, %v2368
        %v2370 = vpop.f32.mrb[0].mxu0
        %2371 = vmatprep.mubr.bf16.mxu0 0
        %2372 = vmatmul.mubr.bf16.gmra.mrb[0].mxu0 %v2240
        %v2373 = vpop.f32.mrb[0].mxu0
        %v2374 = vadd.f32 0.0, %v2373
        %v2375 = vpop.f32.mrb[0].mxu0
        %v2376 = vpop.f32.mrb[0].mxu0
        %v2377 = vadd.f32 0.0, %v2376
        %v2378 = vpop.f32.mrb[0].mxu0
        %2379 = vmatprep.mubr.bf16.mxu0 0
        %2380 = vmatmul.mubr.bf16.gmra.mrb[0].mxu0 %v2241
        %v2381 = vpop.f32.mrb[0].mxu0
        %v2382 = vadd.f32 0.0, %v2381
        %v2383 = vpop.f32.mrb[0].mxu0
        %v2384 = vpop.f32.mrb[0].mxu0
        %v2385 = vadd.f32 0.0, %v2384
        %v2386 = vpop.f32.mrb[0].mxu0
        %2387 = vmatprep.mubr.bf16.mxu0 0
        %2388 = vmatmul.mubr.bf16.gmra.mrb[0].mxu0 %v2242
        %v2389 = vpop.f32.mrb[0].mxu0
        %v2390 = vadd.f32 0.0, %v2389
        %v2391 = vpop.f32.mrb[0].mxu0
        %v2392 = vpop.f32.mrb[0].mxu0
        %v2393 = vpop.f32.mrb[0].mxu0
        %2394 = vdwg.mxu0
        %v2395 = vadd.f32 %v2196, %v2342
        %v2396 = vadd.f32 %v2197, %v2345
        %v2397 = vadd.f32 %v2198, %v2350
        %v2398 = vadd.f32 %v2199, %v2353
        %v2399 = vadd.f32 %v2200, %v2358
        %v2400 = vadd.f32 %v2201, %v2361
        %v2401 = vadd.f32 %v2202, %v2366
        %v2402 = vadd.f32 %v2203, %v2369
        %v2403 = vadd.f32 %v2204, %v2374
        %v2404 = vadd.f32 %v2205, %v2377
        %v2405 = vadd.f32 %v2206, %v2382
        %v2406 = vadd.f32 %v2207, %v2385
        %v2407 = vadd.f32 %v2208, %v2390
        %v2408 = vld [vmem:[%s5] sm:$0x1]
        %v2410 = vlaneseq
        %v2411 = vshrl.u32 %v2410, 7
        %v2412 = vsub.s32 0, %v2411
        %v2413 = vrot.slane %v2408, %v2412
        %v2415 = vadd.f32 %v2395, %v2413
        %v2416 = vadd.f32 %v2396, %v2413
        %v2417 = vadd.f32 %v2397, %v2413
        %v2418 = vadd.f32 %v2398, %v2413
        %v2419 = vadd.f32 %v2399, %v2413
        %v2420 = vadd.f32 %v2400, %v2413
        %v2421 = vadd.f32 %v2401, %v2413
        %v2422 = vadd.f32 %v2402, %v2413
        %v2423 = vadd.f32 %v2403, %v2413
        %v2424 = vadd.f32 %v2404, %v2413
        %v2425 = vadd.f32 %v2405, %v2413
        %v2426 = vadd.f32 %v2406, %v2413
        %v2427 = vadd.f32 %v2407, %v2413
        %v2428 = vmax.f32 %v2415, 0.0
        %v2429 = vmax.f32 %v2416, 0.0
        %v2430 = vmax.f32 %v2417, 0.0
        %v2431 = vmax.f32 %v2418, 0.0
        %v2432 = vmax.f32 %v2419, 0.0
        %v2433 = vmax.f32 %v2420, 0.0
        %v2434 = vmax.f32 %v2421, 0.0
        %v2435 = vmax.f32 %v2422, 0.0
        %v2436 = vmax.f32 %v2423, 0.0
        %v2437 = vmax.f32 %v2424, 0.0
        %v2438 = vmax.f32 %v2425, 0.0
        %v2439 = vmax.f32 %v2426, 0.0
        %v2440 = vmax.f32 %v2427, 0.0
        %v2441 = vpack.c.bf16 %v2429, %v2428
        %v2442 = vpack.c.bf16 %v2431, %v2430
        %v2443 = vpack.c.bf16 %v2433, %v2432
        %v2444 = vpack.c.bf16 %v2435, %v2434
        %v2445 = vpack.c.bf16 %v2437, %v2436
        %v2446 = vpack.c.bf16 %v2439, %v2438
        %v2447 = vpack.c.bf16 %v2440, %v2440
        %v2448 = vld [vmem:[#allocation7] sm:$0xf]
        %v2449 = vld [vmem:[#allocation7 + $0x4] sm:$0xf]
        %v2450 = vld [vmem:[#allocation7 + $0x8] sm:$0xf]
        %v2451 = vld [vmem:[#allocation7 + $0xc] sm:$0xf]
        %v2452 = vld [vmem:[#allocation7 + $0x10] sm:$0xf]
        %v2453 = vld [vmem:[#allocation7 + $0x14] sm:$0xf]
        %v2454 = vld [vmem:[#allocation7 + $0x18] sm:$0xf]
        %v2455 = vld [vmem:[#allocation7 + $0x1c] sm:$0xf]
        %v2456 = vld [vmem:[#allocation7 + $0x20] sm:$0xf]
        %v2457 = vld [vmem:[#allocation7 + $0x24] sm:$0xf]
        %v2458 = vld [vmem:[#allocation7 + $0x28] sm:$0xf]
        %v2459 = vld [vmem:[#allocation7 + $0x2c] sm:$0xf]
        %v2460 = vld [vmem:[#allocation7 + $0x30] sm:$0xf]
        %v2461 = vld [vmem:[#allocation7 + $0x34] sm:$0xf]
        %v2462 = vld [vmem:[#allocation7 + $0x38] sm:$0xf]
        %v2463 = vld [vmem:[#allocation7 + $0x3c] sm:$0xf]
        %v2464 = vld [vmem:[%s7] sm:$0x1]
        %v2466 = vlaneseq
        %v2467 = vshrl.u32 %v2466, 7
        %v2468 = vsub.s32 0, %v2467
        %v2469 = vrot.slane %v2464, %v2468
        %v2487 = vunpack.c.l.b16 %v2448
        %v2488 = vunpack.c.l.b16 %v2449
        %v2489 = vunpack.c.l.b16 %v2450
        %v2490 = vunpack.c.l.b16 %v2451
        %v2491 = vunpack.c.l.b16 %v2452
        %v2492 = vunpack.c.l.b16 %v2453
        %v2493 = vunpack.c.l.b16 %v2454
        %v2494 = vunpack.c.l.b16 %v2455
        %v2495 = vunpack.c.l.b16 %v2456
        %v2496 = vunpack.c.l.b16 %v2457
        %v2497 = vunpack.c.l.b16 %v2458
        %v2498 = vunpack.c.l.b16 %v2459
        %v2499 = vunpack.c.l.b16 %v2460
        %v2500 = vunpack.c.l.b16 %v2461
        %v2501 = vunpack.c.l.b16 %v2462
        %v2502 = vunpack.c.l.b16 %v2463
        %v2503 = vpack.c.b16 %v2488, %v2487
        %v2504 = vpack.c.b16 %v2490, %v2489
        %v2505 = vpack.c.b16 %v2492, %v2491
        %v2506 = vpack.c.b16 %v2494, %v2493
        %v2507 = vpack.c.b16 %v2496, %v2495
        %v2508 = vpack.c.b16 %v2498, %v2497
        %v2509 = vpack.c.b16 %v2500, %v2499
        %v2510 = vpack.c.b16 %v2502, %v2501
        %2519 = vmatprep.subr.bf16.mxu0 0
        %2520 = vmatpush1.bf16.msra.mxu0 %v2503
        %2521 = vmatprep.subr.bf16.mxu0 0
        %2522 = vmatpush1.bf16.msra.mxu0 %v2504
        %2523 = vmatprep.subr.bf16.mxu0 0
        %2524 = vmatpush1.bf16.msra.mxu0 %v2505
        %2525 = vmatprep.subr.bf16.mxu0 0
        %2526 = vmatpush1.bf16.msra.mxu0 %v2506
        %2527 = vmatprep.subr.bf16.mxu0 0
        %2528 = vmatpush1.bf16.msra.mxu0 %v2507
        %2529 = vmatprep.subr.bf16.mxu0 0
        %2530 = vmatpush1.bf16.msra.mxu0 %v2508
        %2531 = vmatprep.subr.bf16.mxu0 0
        %2532 = vmatpush1.bf16.msra.mxu0 %v2509
        %2533 = vmatprep.subr.bf16.mxu0 0
        %2534 = vmatpush1.bf16.msra.mxu0 %v2510
        %2535 = vmatprep.subr.bf16.mxu0 0
        %2536 = vmatpush1.bf16.msra.mxu0 0
        %2537 = vmatprep.subr.bf16.mxu0 0
        %2538 = vmatpush1.bf16.msra.mxu0 0
        %2539 = vmatprep.subr.bf16.mxu0 0
        %2540 = vmatpush1.bf16.msra.mxu0 0
        %2541 = vmatprep.subr.bf16.mxu0 0
        %2542 = vmatpush1.bf16.msra.mxu0 0
        %2543 = vmatprep.subr.bf16.mxu0 0
        %2544 = vmatpush1.bf16.msra.mxu0 0
        %2545 = vmatprep.subr.bf16.mxu0 0
        %2546 = vmatpush1.bf16.msra.mxu0 0
        %2547 = vmatprep.subr.bf16.mxu0 0
        %2548 = vmatpush1.bf16.msra.mxu0 0
        %2549 = vmatprep.subr.bf16.mxu0 0
        %2550 = vmatpush1.bf16.msra.mxu0 0
        %2551 = vmatprep.mubr.bf16.mxu0 0
        %2552 = vmatmul.mubr.bf16.gmra.mrb[0].mxu0 %v2441
        %v2553 = vpop.f32.mrb[0].mxu0
        %v2554 = vadd.f32 %v2469, %v2553
        %v2555 = vpop.f32.mrb[0].mxu0
        %v2556 = vpop.f32.mrb[0].mxu0
        %v2557 = vadd.f32 %v2469, %v2556
        %v2558 = vpop.f32.mrb[0].mxu0
        %2559 = vmatprep.mubr.bf16.mxu0 0
        %2560 = vmatmul.mubr.bf16.gmra.mrb[0].mxu0 %v2442
        %v2561 = vpop.f32.mrb[0].mxu0
        %v2562 = vadd.f32 %v2469, %v2561
        %v2563 = vpop.f32.mrb[0].mxu0
        %v2564 = vpop.f32.mrb[0].mxu0
        %v2565 = vadd.f32 %v2469, %v2564
        %v2566 = vpop.f32.mrb[0].mxu0
        %2567 = vmatprep.mubr.bf16.mxu0 0
        %2568 = vmatmul.mubr.bf16.gmra.mrb[0].mxu0 %v2443
        %v2569 = vpop.f32.mrb[0].mxu0
        %v2570 = vadd.f32 %v2469, %v2569
        %v2571 = vpop.f32.mrb[0].mxu0
        %v2572 = vpop.f32.mrb[0].mxu0
        %v2573 = vadd.f32 %v2469, %v2572
        %v2574 = vpop.f32.mrb[0].mxu0
        %2575 = vmatprep.mubr.bf16.mxu0 0
        %2576 = vmatmul.mubr.bf16.gmra.mrb[0].mxu0 %v2444
        %v2577 = vpop.f32.mrb[0].mxu0
        %v2578 = vadd.f32 %v2469, %v2577
        %v2579 = vpop.f32.mrb[0].mxu0
        %v2580 = vpop.f32.mrb[0].mxu0
        %v2581 = vadd.f32 %v2469, %v2580
        %v2582 = vpop.f32.mrb[0].mxu0
        %2583 = vmatprep.mubr.bf16.mxu0 0
        %2584 = vmatmul.mubr.bf16.gmra.mrb[0].mxu0 %v2445
        %v2585 = vpop.f32.mrb[0].mxu0
        %v2586 = vadd.f32 %v2469, %v2585
        %v2587 = vpop.f32.mrb[0].mxu0
        %v2588 = vpop.f32.mrb[0].mxu0
        %v2589 = vadd.f32 %v2469, %v2588
        %v2590 = vpop.f32.mrb[0].mxu0
        %2591 = vmatprep.mubr.bf16.mxu0 0
        %2592 = vmatmul.mubr.bf16.gmra.mrb[0].mxu0 %v2446
        %v2593 = vpop.f32.mrb[0].mxu0
        %v2594 = vadd.f32 %v2469, %v2593
        %v2595 = vpop.f32.mrb[0].mxu0
        %v2596 = vpop.f32.mrb[0].mxu0
        %v2597 = vadd.f32 %v2469, %v2596
        %v2598 = vpop.f32.mrb[0].mxu0
        %2599 = vmatprep.mubr.bf16.mxu0 0
        %2600 = vmatmul.mubr.bf16.gmra.mrb[0].mxu0 %v2447
        %v2601 = vpop.f32.mrb[0].mxu0
        %v2602 = vadd.f32 %v2469, %v2601
        %v2603 = vpop.f32.mrb[0].mxu0
        %v2604 = vpop.f32.mrb[0].mxu0
        %v2605 = vpop.f32.mrb[0].mxu0
        %2606 = vdwg.mxu0
        %v2607 = vunpack.c.l.bf16 %v715
        %v2608 = vunpack.c.h.bf16 %v715
        %v2609 = vunpack.c.l.bf16 %v716
        %v2610 = vunpack.c.h.bf16 %v716
        %v2611 = vunpack.c.l.bf16 %v717
        %v2612 = vunpack.c.h.bf16 %v717
        %v2613 = vunpack.c.l.bf16 %v718
        %v2614 = vunpack.c.h.bf16 %v718
        %v2615 = vunpack.c.l.bf16 %v719
        %v2616 = vunpack.c.h.bf16 %v719
        %v2617 = vunpack.c.l.bf16 %v720
        %v2618 = vunpack.c.h.bf16 %v720
        %v2619 = vunpack.c.l.bf16 %v721
        %v2620 = vadd.f32 %v2554, %v2607
        %v2621 = vadd.f32 %v2557, %v2608
        %v2622 = vadd.f32 %v2562, %v2609
        %v2623 = vadd.f32 %v2565, %v2610
        %v2624 = vadd.f32 %v2570, %v2611
        %v2625 = vadd.f32 %v2573, %v2612
        %v2626 = vadd.f32 %v2578, %v2613
        %v2627 = vadd.f32 %v2581, %v2614
        %v2628 = vadd.f32 %v2586, %v2615
        %v2629 = vadd.f32 %v2589, %v2616
        %v2630 = vadd.f32 %v2594, %v2617
        %v2631 = vadd.f32 %v2597, %v2618
        %v2632 = vadd.f32 %v2602, %v2619
        %v2633 = vmax.f32 %v2620, 0.0
        %v2634 = vmax.f32 %v2621, 0.0
        %v2635 = vmax.f32 %v2622, 0.0
        %v2636 = vmax.f32 %v2623, 0.0
        %v2637 = vmax.f32 %v2624, 0.0
        %v2638 = vmax.f32 %v2625, 0.0
        %v2639 = vmax.f32 %v2626, 0.0
        %v2640 = vmax.f32 %v2627, 0.0
        %v2641 = vmax.f32 %v2628, 0.0
        %v2642 = vmax.f32 %v2629, 0.0
        %v2643 = vmax.f32 %v2630, 0.0
        %v2644 = vmax.f32 %v2631, 0.0
        %v2645 = vmax.f32 %v2632, 0.0
        %v2646 = vpack.c.bf16 %v2634, %v2633
        %v2647 = vpack.c.bf16 %v2636, %v2635
        %v2648 = vpack.c.bf16 %v2638, %v2637
        %v2649 = vpack.c.bf16 %v2640, %v2639
        %v2650 = vpack.c.bf16 %v2642, %v2641
        %v2651 = vpack.c.bf16 %v2644, %v2643
        %v2652 = vpack.c.bf16 %v2645, %v2645
        %v2660 = vunpack.c.l.b16 %v2646
        %v2661 = vunpack.c.h.b16 %v2646
        %v2662 = vunpack.c.l.b16 %v2647
        %v2663 = vunpack.c.h.b16 %v2647
        %v2664 = vunpack.c.l.b16 %v2648
        %v2665 = vunpack.c.h.b16 %v2648
        %v2666 = vunpack.c.l.b16 %v2649
        %v2667 = vunpack.c.h.b16 %v2649
        %v2668 = vunpack.c.l.b16 %v2650
        %v2669 = vunpack.c.h.b16 %v2650
        %v2670 = vunpack.c.l.b16 %v2651
        %v2671 = vunpack.c.h.b16 %v2651
        %v2672 = vunpack.c.l.b16 %v2652
        %v2673 = vpack.c.b16 %v2660, %v2660
        %v2674 = vpack.c.b16 %v2661, %v2661
        %v2675 = vpack.c.b16 %v2662, %v2662
        %v2676 = vpack.c.b16 %v2663, %v2663
        %v2677 = vpack.c.b16 %v2664, %v2664
        %v2678 = vpack.c.b16 %v2665, %v2665
        %v2679 = vpack.c.b16 %v2666, %v2666
        %v2680 = vpack.c.b16 %v2667, %v2667
        %v2681 = vpack.c.b16 %v2668, %v2668
        %v2682 = vpack.c.b16 %v2669, %v2669
        %v2683 = vpack.c.b16 %v2670, %v2670
        %v2684 = vpack.c.b16 %v2671, %v2671
        %v2685 = vpack.c.b16 %v2672, %v2672
        %2699 = vst [vmem:[%s342] sm:$0xf] %v2673
        %2700 = vst [vmem:[%s342 + $0x4] sm:$0xf] %v2674
        %2701 = vst [vmem:[%s342 + $0x8] sm:$0xf] %v2675
        %2702 = vst [vmem:[%s342 + $0xc] sm:$0xf] %v2676
        %2703 = vst [vmem:[%s342 + $0x10] sm:$0xf] %v2677
        %2704 = vst [vmem:[%s342 + $0x14] sm:$0xf] %v2678
        %2705 = vst [vmem:[%s342 + $0x18] sm:$0xf] %v2679
        %2706 = vst [vmem:[%s342 + $0x1c] sm:$0xf] %v2680
        %2707 = vst [vmem:[%s342 + $0x20] sm:$0xf] %v2681
        %2708 = vst [vmem:[%s342 + $0x24] sm:$0xf] %v2682
        %2709 = vst [vmem:[%s342 + $0x28] sm:$0xf] %v2683
        %2710 = vst [vmem:[%s342 + $0x2c] sm:$0xf] %v2684
        %2711 = vst [vmem:[%s342 + $0x30] sm:$0xf] %v2685
        %s2712 = sand.u32 %s205, 1
        %s2713 = scalar_lea.sflag [#allocation4], %s2712
        %s2714 = sand.u32 %s205, 1
        %s2715 = smul.addr %s2714, 52
        %s2716 = scalar_lea.vmem [#allocation8], %s2715
        // Predicated region
        $region65: #{tpu_custom_call.1} parent=51 // pred_check
          %p2717 = pneg %p215
        $region66: #{tpu_custom_call.1} parent=51 // pred_check_branch
          %2719 = sbr.rel (%p2717) target = $region68
        $region67: #{tpu_custom_call.1} parent=51 // pred_region
          %s2721 = ssub.s32 832, 832
          %2722 = vsyncadd %s2713, %s2721
          %s2723 = smul.addr %s24, 13
          %s2724 = smul.addr %s2723, 64
          %s2725 = scalar_lea.hbm %s8, %s2724
          %s2726 = sshll.u32 %s2716, 4
          %s2727 = int_to_ptr.vmem [resolvable:$true] %s2726
          %2732 = dma.vmem_to_hbm [thread:$0]  %s2727, 832, %s2725, %s2713, 64, 64, 4
        $region68: #{tpu_custom_call.1} parent=51 // pred_fallthru
          _
      $region52: #{tpu_custom_call.1} parent=5 // pred_fallthru
        _
      %p2733 = scmp.le.s32.totalorder 2, %s19
      // Predicated region
      $region69: #{tpu_custom_call.1} parent=5 // pred_check
        %p2734 = pneg %p2733
      $region70: #{tpu_custom_call.1} parent=5 // pred_check_branch
        %2736 = sbr.rel (%p2734) target = $region72
      $region71: #{tpu_custom_call.1} parent=5 // pred_region
        %s2737 = ssub.s32 %s19, 2
        // Predicated region
        $region73: #{tpu_custom_call.1} parent=71 // pred_check
          %p2738 = pneg %p221
        $region74: #{tpu_custom_call.1} parent=71 // pred_check_branch
          %2740 = sbr.rel (%p2738) target = $region76
        $region75: #{tpu_custom_call.1} parent=71 // pred_region
          %s2741 = sand.u32 %s206, 1
          %s2742 = scalar_lea.sflag [#allocation4], %s2741
          %s2743 = sand.u32 %s206, 1
          %s2744 = smul.addr %s2743, 52
          %s2745 = scalar_lea.vmem [#allocation8], %s2744
          %2746 = dma.done %s2742, 832
        $region76: #{tpu_custom_call.1} parent=71 // pred_fallthru
          _
      $region72: #{tpu_custom_call.1} parent=5 // pred_fallthru
        _
    $region6: #{tpu_custom_call.1} parent=1 // loop_footer
      %s23 = sadd.s32 1, %s19
    $region7: #{tpu_custom_call.1} parent=1 // loop_footer_branch
      %18 = sbr.rel target = $region3
    $region8: #{tpu_custom_call.1} parent=1 // loop_exit
      _
    %2747 = vsyncpa [#allocation3], 1
    %s2748 = scalar_lea.sflag [#allocation3], 1
    %2749 = vsyncpa %s2748, 1
    %2750 = vsyncpa [#allocation6], 1
    %2751 = vsyncpa [#allocation4], 1
    %s2752 = scalar_lea.sflag [#allocation4], 1
    %2753 = vsyncpa %s2752, 1

</llo_original>
